<compile_context>
chip_gen: v5e
topology: v5e:2x2
jax: 0.10.0
libtpu: 0.0.40
codegen_flags: <defaults>
</compile_context>

<pallas_src>
import functools
import math

import numpy as np
import jax
import jax.numpy as jnp
from jax import lax
from jax.experimental import pallas as pl
from jax.experimental.pallas import tpu as pltpu


# --------------------------------------------------------------------------
# In-kernel helpers
# --------------------------------------------------------------------------

def _leaky(x):
    return jnp.where(x >= 0, x, 0.01 * x)            # nn.LeakyReLU default slope


def _mm(a, b):                                        # exact f32: a @ b
    return jnp.dot(a, b, preferred_element_type=jnp.float32)


def _mm_tb(a, b):                                     # exact f32: a @ b.T
    return lax.dot_general(a, b, (((1,), (1,)), ((), ())),
                           preferred_element_type=jnp.float32)


def _mmb(a, b):                                       # bf16 operands, f32 accumulate
    return jnp.dot(a.astype(jnp.bfloat16), b.astype(jnp.bfloat16),
                   preferred_element_type=jnp.float32)


def _mmb_tb(a, b):                                    # bf16 operands: a @ b.T
    return lax.dot_general(a.astype(jnp.bfloat16), b.astype(jnp.bfloat16),
                           (((1,), (1,)), ((), ())),
                           preferred_element_type=jnp.float32)


# --------------------------------------------------------------------------
# The single fused kernel
# --------------------------------------------------------------------------

def _region_fused_kernel(dims,
                         scal_ref,
                         mem_ref, lu_ref, rmem_ref, rlu_ref, gmem_ref, glu_ref,
                         nfeat_ref, feat_ref, semb_ref, lamb_lane_ref,
                         tgt_oh_ref, mask_ref, ts_ref, etd_ref, lamb_row_ref,
                         selu_ref, seluT_ref,
                         te_r_ref, hm_r_ref, sh_r_ref, gr_r_ref,
                         te_g_ref, hm_g_ref, sh_g_ref, gr_g_ref,
                         wqk_ref, wvr_e_ref, wvr_f_ref, wvg_ref,
                         mw1_e_ref, mw1_f_ref, mb1_ref, mw2_ref, mb2_ref,
                         fr1_ref, fr1b_ref, fr2_ref, fr2b_ref,
                         fg1_ref, fg1b_ref, fg2_ref, fg2b_ref,
                         fu1w_ref, fu1b_ref, fu2w_ref, fu2b_ref,
                         etw_ref, etb_ref, spw_rec_ref, spw_reg_ref, spw_gra_ref,
                         spb_ref,
                         out_ref):
    H = dims["H"]; F = dims["F"]; L = dims["L"]; U = dims["U"]; HF = dims["HF"]
    scale = 1.0 / math.sqrt(F)
    inv_H = 1.0 / H

    lamb_p = scal_ref[0]
    now_t = scal_ref[1]
    begin_t = scal_ref[2]

    lamb_lane = lamb_lane_ref[...]                    # (1, L*D)
    memory = mem_ref[...]                             # (N, L*D)
    last_update = lu_ref[...]                         # (N, 1)

    # ===== target embeddings (exp decay) & per-edge source-message pieces =====
    tgt_oh = tgt_oh_ref[...]                                          # (B, N) one-hot
    tgt_emb = _mm(tgt_oh, memory) * jnp.exp(-etd_ref[...] * lamb_lane)   # (B, LD)
    tgt_feat = _mm(tgt_oh, nfeat_ref[...])                            # (B, nf)

    # ===== exp_lambs aggregation: lamb axis folded into the SUBLANE axis =====
    # rows of every stacked tensor are indexed l*U + u (U padded to a multiple of 8).
    mask_s = mask_ref[...]                                            # (L*U, B)
    ts = ts_ref[...]                                                  # (1, B)
    lamb_row = lamb_row_ref[...]                                      # (L*U, 1)
    t_max_s = jnp.max(jnp.where(mask_s > 0,
                                jnp.broadcast_to(ts, mask_s.shape), -1e30),
                      axis=1, keepdims=True)                          # (L*U, 1)
    expo = jnp.minimum(-lamb_row * (t_max_s - ts), 0.0)               # clamp: no inf
    w_s = jnp.where(mask_s > 0, jnp.exp(expo), 0.0)                   # (L*U, B)
    cnt_s = jnp.sum(w_s, axis=1, keepdims=True)                       # (L*U, 1)
    inv_cnt = jnp.where(cnt_s > 0, 1.0 / jnp.maximum(cnt_s, 1e-30), 0.0)

    raw_e = _mm(w_s, tgt_emb)                                         # (L*U, LD)
    raw_f = _mm(w_s, tgt_feat)                                        # (L*U, nf)

    # MLP message function (shared weights over L, split emb/feat weight blocks)
    h1 = jnp.maximum(_mmb(raw_e, mw1_e_ref[...]) + _mmb(raw_f, mw1_f_ref[...])
                     + mb1_ref[...], 0.0)                             # (L*U, RM//2)
    msg_s = _mmb(h1, mw2_ref[...]) + mb2_ref[...]                     # (L*U, M)
    # TODO(synk): the trailing per-lamb edge-count column of unique_messages is dropped;
    #             only the M-dim MLP message is injected into memory (as before).

    # normalised V_r input (raw / count), shared W_Vr over L, split weight blocks
    vr_s = (_mmb(raw_e * inv_cnt, wvr_e_ref[...])
            + _mmb(raw_f * inv_cnt, wvr_f_ref[...]))                  # (L*U, HM)

    # ===== static node embedding (decay to begin_time) + feature fusion gate =====
    static_raw = memory * jnp.exp(-(begin_t - last_update) * lamb_lane)   # (N, LD)
    feats = feat_ref[...]
    a1 = _mm(static_raw, fu1w_ref[...]) + fu1b_ref[...]               # (N, 1)
    a2 = _mm(feats, fu2w_ref[...]) + fu2b_ref[...]                    # (N, 1)
    amax = jnp.maximum(a1, a2)
    e1 = jnp.exp(a1 - amax)
    e2 = jnp.exp(a2 - amax)
    inv12 = pl.reciprocal(e1 + e2, approx=True)                       # denom >= 1
    static_emb = (e1 * inv12) * static_raw + (e2 * inv12) * feats     # (N, LD)

    # ===== region / graph identity embeddings =====
    region_emb = rmem_ref[...]                                        # (R, LD)
    graph_emb = gmem_ref[...]                                         # (G, LD)
    # TODO(synk): RADFA treated as identity on region_emb.

    # ===== Q/K projections (one lane-dense concatenated weight, bf16 MXU) =====
    wqk = wqk_ref[...]                                                # (LD, 4*HF)
    proj_r = _mmb(region_emb, wqk)                                    # (R, 4*HF)
    proj_n = _mmb(static_emb, wqk)                                    # (N, 4*HF)
    proj_g = _mmb(graph_emb, wqk)                                     # (G, 4*HF)
    Qr = proj_r[:, 0:HF];          Kr = proj_n[:, HF:2 * HF]
    Qg = proj_g[:, 2 * HF:3 * HF]; Kg = proj_r[:, 3 * HF:4 * HF]

    # ===== attention scores, heads folded into sublanes (host-built selectors) =====
    hm_r = hm_r_ref[...]                                              # (H*R, HF)
    hm_g = hm_g_ref[...]                                              # (H*G, HF)
    Qexp_r = _mm(te_r_ref[...], Qr) * hm_r                            # (H*R, HF)
    Qexp_g = _mm(te_g_ref[...], Qg) * hm_g                            # (H*G, HF)

    sel_u = selu_ref[...]                                             # (N, U)
    sel_uT = seluT_ref[...]                                           # (U, N)
    uvalid_row = jnp.sum(sel_uT, axis=1, keepdims=True)               # (U, 1) 1=real 0=pad
    uvalid_lane = jnp.sum(sel_u, axis=0, keepdims=True)               # (1, U)

    Kr_u = _mm(sel_uT, Kr)                                            # (U, HF) gathered keys
    A_ru = _mmb_tb(Qexp_r, Kr_u) * scale                              # (H*R, U)
    A_ru = jnp.where(uvalid_lane > 0, A_ru, -1e30)                    # mask padded cols
    er = jnp.exp(A_ru - jnp.max(A_ru, axis=1, keepdims=True))
    P_r = er * pl.reciprocal(jnp.sum(er, axis=1, keepdims=True), approx=True)

    A_g = _mmb_tb(Qexp_g, Kg) * scale                                 # (H*G, R)
    eg = jnp.exp(A_g - jnp.max(A_g, axis=1, keepdims=True))
    P_g = eg * pl.reciprocal(jnp.sum(eg, axis=1, keepdims=True), approx=True)

    # ===== attention messages (per-lamb sublane blocks; shared ff weights) =====
    gr_r = gr_r_ref[...]                                              # (R, H*R)
    gr_g = gr_g_ref[...]                                              # (G, H*G)
    fr1 = fr1_ref[...]; fr1b = fr1b_ref[...]; fr2 = fr2_ref[...]; fr2b = fr2b_ref[...]
    fg1 = fg1_ref[...]; fg1b = fg1b_ref[...]; fg2 = fg2_ref[...]; fg2b = fg2b_ref[...]
    wvg = wvg_ref[...]

    reg_msg_parts, gra_msg_parts = [], []
    for l in range(L):                                # L independent small chains
        vr_l = vr_s[l * U:(l + 1) * U, :]                             # (U, HM)
        # HM == HF (M == D asserted), so the head mask is reused for the message lanes
        rm_mid_l = _mm(gr_r, _mmb(P_r, vr_l) * hm_r)                  # (R, HM)
        reg_msg_parts.append(
            _leaky(_mmb(_leaky(_mmb(rm_mid_l, fr1) + fr1b), fr2) + fr2b))   # (R, M)
        vg_l = _mmb(rm_mid_l, wvg)                                    # (R, HM)
        gm_mid_l = _mm(gr_g, _mmb(P_g, vg_l) * hm_g)                  # (G, HM)
        gra_msg_parts.append(
            _leaky(_mmb(_leaky(_mmb(gm_mid_l, fg1) + fg1b), fg2) + fg2b))   # (G, M)
    region_msgs = jnp.concatenate(reg_msg_parts, axis=1)              # (R, L*M)
    graph_msgs = jnp.concatenate(gra_msg_parts, axis=1)               # (G, L*M)

    # ===== memory updates (exp_lambs updater: decay + message injection) =====
    t_max_u = t_max_s[0:U, :]                                         # (U, 1)
    mem_u = _mm(sel_uT, memory)                                       # (U, LD) gather
    last_u = _mm(sel_uT, last_update)                                 # (U, 1)
    t_max_u = jnp.where(uvalid_row > 0, t_max_u, last_u)              # keep pad rows finite
    msg_core = jnp.concatenate([msg_s[l * U:(l + 1) * U, :] for l in range(L)],
                               axis=1)                                # (U, L*M)
    new_mem_u = mem_u * jnp.exp(-(t_max_u - last_u) * lamb_lane) + msg_core
    row_sel = jnp.sum(sel_u, axis=1, keepdims=True)                   # (N, 1)
    upd_mem = memory * (1.0 - row_sel) + _mm(sel_u, new_mem_u)        # scatter back
    upd_last = last_update * (1.0 - row_sel) + _mm(sel_u, t_max_u)

    new_rmem = region_emb * jnp.exp(-(now_t - rlu_ref[...]) * lamb_lane) + region_msgs
    new_gmem = graph_emb * jnp.exp(-(now_t - glu_ref[...]) * lamb_lane) + graph_msgs

    # ===== final embeddings =====
    recent_node = upd_mem * jnp.exp(-(now_t - upd_last) * lamb_lane)  # (N, LD)

    # r2n / g2r: softmax over the query axis within each head group, mean over heads,
    # computed directly in transposed orientation (node-major / region-major).
    A_rT = _mmb_tb(Kr, Qexp_r) * scale                                # (N, H*R)
    exr = jnp.exp(A_rT - jnp.max(A_rT, axis=1, keepdims=True))
    den_r = _mm(exr, sh_r_ref[...])                                   # per-head-group sums
    r2nT = _mm_tb(exr * (1.0 / jnp.maximum(den_r, 1e-30)), gr_r) * inv_H   # (N, R)

    A_gT = _mmb_tb(Kg, Qexp_g) * scale                                # (R, H*G)
    exg = jnp.exp(A_gT - jnp.max(A_gT, axis=1, keepdims=True))
    den_g = _mm(exg, sh_g_ref[...])
    g2rT = _mm_tb(exg * (1.0 / jnp.maximum(den_g, 1e-30)), gr_g) * inv_H   # (R, G)

    region_node = _mm(r2nT, new_rmem)                                 # (N, LD)
    graph_node = _mm(r2nT, _mm(g2rT, new_gmem))                       # (N, LD)

    etw = etw_ref[...]; etb = etb_ref[...]
    e_rec = _leaky(_mmb(recent_node, etw) + etb)                      # (N, D)
    e_reg = _leaky(_mmb(region_node, etw) + etb)                      # (N, D)
    e_gra = _leaky(_mmb(graph_node, etw) + etb)                       # (N, D)
    # spatial transform with split row-blocks of spw (no (N, 3D) concat)
    sp = _leaky(_mmb(e_rec, spw_rec_ref[...]) + _mmb(e_reg, spw_reg_ref[...])
                + _mmb(e_gra, spw_gra_ref[...]) + spb_ref[...])       # (N, E)

    out_ref[...] = lamb_p * semb_ref[...] + (1.0 - lamb_p) * sp


# --------------------------------------------------------------------------
# Host-side constant / weight packing (done once, outside the hot path)
# --------------------------------------------------------------------------

def _group_consts(H, n, F):
    """Selector / mask constants for n queries with H heads of F features."""
    rows = H * n
    r = np.arange(rows)
    te = (r[:, None] % n == np.arange(n)[None, :]).astype(np.float32)           # (rows, n)
    hm = (np.arange(H * F)[None, :] // F == r[:, None] // n).astype(np.float32)  # (rows, HF)
    sh = (r[:, None] // n == r[None, :] // n).astype(np.float32)                 # (rows, rows)
    gr = np.ascontiguousarray(te.T)                                               # (n, rows)
    return te, hm, sh, gr


def prepare_kernel_params(cfg, params):
    L = cfg["lamb_len"]; D = cfg["memory_dimension"]; H = cfg["n_heads"]
    nf = cfg["node_feature_dim"]; R = cfg["n_regions"]; G = cfg["n_graphs"]
    F = D // H; LD = L * D

    bf = lambda w: jnp.asarray(w, jnp.bfloat16)
    f32r = lambda b: jnp.asarray(b, jnp.float32).reshape(1, -1)

    lambs_np = np.asarray(params["lambs"], np.float32)
    te_r, hm_r, sh_r, gr_r = _group_consts(H, R, F)
    te_g, hm_g, sh_g, gr_g = _group_consts(H, G, F)

    wvr = np.asarray(params["W_Vr"], np.float32)
    mw1 = np.asarray(params["msg_w1"], np.float32)
    spw = np.asarray(params["sp_tr_w"], np.float32)

    return dict(
        lamb=jnp.asarray(params["lamb"], jnp.float32),
        lambs_np=lambs_np,
        lamb_lane=jnp.asarray(np.repeat(lambs_np, D).reshape(1, LD), jnp.float32),
        node_features=jnp.asarray(params["node_features"], jnp.float32),
        features=jnp.asarray(params["features"], jnp.float32),
        static_embedding=jnp.asarray(params["static_embedding"], jnp.float32),
        # host-built selector / mask constants (0/1, f32)
        te_r=jnp.asarray(te_r), hm_r=jnp.asarray(hm_r),
        sh_r=jnp.asarray(sh_r), gr_r=jnp.asarray(gr_r),
        te_g=jnp.asarray(te_g), hm_g=jnp.asarray(hm_g),
        sh_g=jnp.asarray(sh_g), gr_g=jnp.asarray(gr_g),
        # learned weights (bf16 MXU operands), biases in f32
        wqk=bf(jnp.concatenate([params["W_Qr"], params["W_Kr"],
                                params["W_Qg"], params["W_Kg"]], axis=1)),
        wvr_e=bf(wvr[:LD]), wvr_f=bf(wvr[LD:]),
        wvg=bf(params["W_Vg"]),
        mw1_e=bf(mw1[:LD]), mw1_f=bf(mw1[LD:]), mb1=f32r(params["msg_b1"]),
        mw2=bf(params["msg_w2"]), mb2=f32r(params["msg_b2"]),
        fr1=bf(params["ff_r_w1"]), fr1b=f32r(params["ff_r_b1"]),
        fr2=bf(params["ff_r_w2"]), fr2b=f32r(params["ff_r_b2"]),
        fg1=bf(params["ff_g_w1"]), fg1b=f32r(params["ff_g_b1"]),
        fg2=bf(params["ff_g_w2"]), fg2b=f32r(params["ff_g_b2"]),
        fu1w=jnp.asarray(params["fution1_w"], jnp.float32).reshape(-1, 1),
        fu1b=jnp.asarray(params["fution1_b"], jnp.float32).reshape(1, 1),
        fu2w=jnp.asarray(params["fution2_w"], jnp.float32).reshape(-1, 1),
        fu2b=jnp.asarray(params["fution2_b"], jnp.float32).reshape(1, 1),
        etw=bf(params["emb_tr_w"]), etb=f32r(params["emb_tr_b"]),
        spw_rec=bf(spw[0:D]), spw_reg=bf(spw[D:2 * D]), spw_gra=bf(spw[2 * D:3 * D]),
        spb=f32r(params["sp_tr_b"]),
    )


# --------------------------------------------------------------------------
# Region forward pass: host glue (numpy one-hots) + one fused Pallas kernel
# --------------------------------------------------------------------------

def region_forward(cfg, prep, state, source_nodes, target_nodes,
                   edge_timediff, timestamps, now_time, begin_time):
    N = cfg["n_nodes"]; R = cfg["n_regions"]; G = cfg["n_graphs"]
    H = cfg["n_heads"]; L = cfg["lamb_len"]
    D = cfg["memory_dimension"]; M = cfg["message_dimension"]
    E = cfg["embedding_dimension"]
    assert M == D, "memory updater adds messages to memory; dims must match"
    assert D % H == 0
    F = D // H
    LD = L * D

    source_nodes = np.asarray(source_nodes)
    target_nodes = np.asarray(target_nodes)
    B = int(source_nodes.shape[0])
    unique_nodes = np.unique(source_nodes)                 # host-side glue
    U = int(unique_nodes.shape[0])
    U_pad = max(8, ((U + 7) // 8) * 8)                     # sublane-aligned slices

    # one-hot gather/scatter matrices from numpy indices (no runtime XLA gathers)
    tgt_oh = np.zeros((B, N), np.float32)
    tgt_oh[np.arange(B), target_nodes] = 1.0
    mask_ub = np.zeros((U_pad, B), np.float32)
    mask_ub[:U] = (source_nodes[None, :] == unique_nodes[:, None])
    mask_s = np.tile(mask_ub, (L, 1))                      # (L*U_pad, B)
    sel_u = np.zeros((N, U_pad), np.float32)
    sel_u[unique_nodes, np.arange(U)] = 1.0
    sel_uT = np.ascontiguousarray(sel_u.T)
    lamb_row = np.repeat(prep["lambs_np"], U_pad).reshape(-1, 1).astype(np.float32)

    scal = jnp.stack([prep["lamb"].reshape(()),
                      jnp.asarray(now_time, jnp.float32).reshape(()),
                      jnp.asarray(begin_time, jnp.float32).reshape(())]).astype(jnp.float32)

    mem2 = jnp.asarray(state["memory"], jnp.float32).reshape(N, LD)
    lu2 = jnp.asarray(state["last_update"], jnp.float32).reshape(N, 1)
    rmem2 = jnp.asarray(state["region_memory"], jnp.float32).reshape(R, LD)
    rlu2 = jnp.asarray(state["region_last_update"], jnp.float32).reshape(R, 1)
    gmem2 = jnp.asarray(state["graph_memory"], jnp.float32).reshape(G, LD)
    glu2 = jnp.asarray(state["graph_last_update"], jnp.float32).reshape(G, 1)

    dims = dict(H=H, F=F, L=L, U=U_pad, HF=H * F)

    args = (scal,
            mem2, lu2, rmem2, rlu2, gmem2, glu2,
            prep["node_features"], prep["features"], prep["static_embedding"],
            prep["lamb_lane"],
            jnp.asarray(tgt_oh), jnp.asarray(mask_s),
            jnp.asarray(timestamps, jnp.float32).reshape(1, B),
            jnp.asarray(edge_timediff, jnp.float32).reshape(B, 1),
            jnp.asarray(lamb_row),
            jnp.asarray(sel_u), jnp.asarray(sel_uT),
            prep["te_r"], prep["hm_r"], prep["sh_r"], prep["gr_r"],
            prep["te_g"], prep["hm_g"], prep["sh_g"], prep["gr_g"],
            prep["wqk"], prep["wvr_e"], prep["wvr_f"], prep["wvg"],
            prep["mw1_e"], prep["mw1_f"], prep["mb1"], prep["mw2"], prep["mb2"],
            prep["fr1"], prep["fr1b"], prep["fr2"], prep["fr2b"],
            prep["fg1"], prep["fg1b"], prep["fg2"], prep["fg2b"],
            prep["fu1w"], prep["fu1b"], prep["fu2w"], prep["fu2b"],
            prep["etw"], prep["etb"],
            prep["spw_rec"], prep["spw_reg"], prep["spw_gra"], prep["spb"])

    in_specs = ([pl.BlockSpec(memory_space=pltpu.MemorySpace.SMEM)] +
                [pl.BlockSpec(memory_space=pltpu.MemorySpace.VMEM)] * (len(args) - 1))

    return pl.pallas_call(
        functools.partial(_region_fused_kernel, dims),
        out_shape=jax.ShapeDtypeStruct((N, E), jnp.float32),
        in_specs=in_specs,
        out_specs=pl.BlockSpec(memory_space=pltpu.MemorySpace.VMEM),
    )(*args)


# --------------------------------------------------------------------------
# Deterministic parameter / state construction
# --------------------------------------------------------------------------

def make_params(key, cfg):
    N = cfg["n_nodes"]; D = cfg["memory_dimension"]; M = cfg["message_dimension"]
    E = cfg["embedding_dimension"]; L = cfg["lamb_len"]; H = cfg["n_heads"]
    nf = cfg["node_feature_dim"]
    F = D // H; HF = F * H; mph = M // H; HM = mph * H
    LD = L * D; RM = D * L + nf

    keys = iter(jax.random.split(key, 32))

    def w(shape, scale=0.1):
        return jax.random.normal(next(keys), shape, jnp.float32) * scale

    return dict(
        lamb=jnp.float32(cfg["init_lamb"]),
        lambs=jnp.asarray(cfg["lambs"], jnp.float32) * cfg["output"],
        node_features=w((N, nf)),
        static_embedding=w((N, E)),
        features=w((N, LD)),                      # synthetic stand-in for CSV features
        W_Qr=w((LD, HF)), W_Kr=w((LD, HF)), W_Vr=w((RM, HM)),
        W_Qg=w((LD, HF)), W_Kg=w((LD, HF)), W_Vg=w((HM, HM)),
        fution1_w=w((LD,)), fution1_b=jnp.zeros((1,), jnp.float32),
        fution2_w=w((LD,)), fution2_b=jnp.zeros((1,), jnp.float32),
        ff_r_w1=w((HM, HM)), ff_r_b1=jnp.zeros((HM,), jnp.float32),
        ff_r_w2=w((HM, M)), ff_r_b2=jnp.zeros((M,), jnp.float32),
        ff_g_w1=w((HM, HM)), ff_g_b1=jnp.zeros((HM,), jnp.float32),
        ff_g_w2=w((HM, M)), ff_g_b2=jnp.zeros((M,), jnp.float32),
        msg_w1=w((RM, RM // 2)), msg_b1=jnp.zeros((RM // 2,), jnp.float32),
        msg_w2=w((RM // 2, M)), msg_b2=jnp.zeros((M,), jnp.float32),
        emb_tr_w=w((LD, D)), emb_tr_b=jnp.zeros((D,), jnp.float32),
        sp_tr_w=w((3 * D, E)), sp_tr_b=jnp.zeros((E,), jnp.float32),
    )


def make_state(key, cfg):
    N = cfg["n_nodes"]; R = cfg["n_regions"]; G = cfg["n_graphs"]
    L = cfg["lamb_len"]; D = cfg["memory_dimension"]
    k1, k2, k3 = jax.random.split(key, 3)
    return dict(
        memory=jax.random.normal(k1, (N, L, D), jnp.float32) * 0.1,
        last_update=jnp.zeros((N,), jnp.float32),
        region_memory=jax.random.normal(k2, (R, L, D), jnp.float32) * 0.1,
        region_last_update=jnp.zeros((R,), jnp.float32),
        graph_memory=jax.random.normal(k3, (G, L, D), jnp.float32) * 0.1,
        graph_last_update=jnp.zeros((G,), jnp.float32),
    )


# --------------------------------------------------------------------------
# Main
# --------------------------------------------------------------------------

if __name__ == "__main__":
    cfg = dict(
        n_nodes=16, node_feature_dim=8,
        memory_dimension=32, message_dimension=32, embedding_dimension=32,
        lambs=[0.5, 1.0], lamb_len=2, n_heads=8,
        output=1.0, init_lamb=0.2,
    )
    cfg["n_regions"] = math.ceil(math.sqrt(cfg["n_nodes"]))   # = 4
    cfg["n_graphs"] = 4

    key = jax.random.PRNGKey(0)
    kp, ks = jax.random.split(key, 2)
    params = make_params(kp, cfg)
    state = make_state(ks, cfg)
    prep = prepare_kernel_params(cfg, params)                 # one-off weight packing

    B = 8
    rng = np.random.RandomState(0)
    source_nodes = rng.randint(0, cfg["n_nodes"], size=B).astype(np.int32)
    target_nodes = rng.randint(0, cfg["n_nodes"], size=B).astype(np.int32)
    timestamps = jnp.asarray(np.sort(rng.uniform(0.0, 10.0, size=B)), jnp.float32)
    edge_timediff = jnp.asarray(rng.uniform(0.0, 2.0, size=B), jnp.float32)
    now_time = jnp.float32(12.0)
    begin_time = jnp.float32(0.0)

    embeddings = region_forward(cfg, prep, state, source_nodes, target_nodes,
                                edge_timediff, timestamps, now_time, begin_time)
    embeddings = jax.block_until_ready(embeddings)

    assert embeddings.shape == (cfg["n_nodes"], cfg["embedding_dimension"])
    assert bool(jnp.all(jnp.isfinite(embeddings)))
    print("KERNEL_OK")
</pallas_src>

<mosaic_0001>
module attributes {stable_mosaic.version = 11 : i64} {
  func.func @_region_fused_kernel(%arg0: memref<3xf32, #tpu.memory_space<smem>>, %arg1: memref<16x64xf32, #tpu.memory_space<vmem>>, %arg2: memref<16x1xf32, #tpu.memory_space<vmem>>, %arg3: memref<4x64xf32, #tpu.memory_space<vmem>>, %arg4: memref<4x1xf32, #tpu.memory_space<vmem>>, %arg5: memref<4x64xf32, #tpu.memory_space<vmem>>, %arg6: memref<4x1xf32, #tpu.memory_space<vmem>>, %arg7: memref<16x8xf32, #tpu.memory_space<vmem>>, %arg8: memref<16x64xf32, #tpu.memory_space<vmem>>, %arg9: memref<16x32xf32, #tpu.memory_space<vmem>>, %arg10: memref<1x64xf32, #tpu.memory_space<vmem>>, %arg11: memref<8x16xf32, #tpu.memory_space<vmem>>, %arg12: memref<16x8xf32, #tpu.memory_space<vmem>>, %arg13: memref<1x8xf32, #tpu.memory_space<vmem>>, %arg14: memref<8x1xf32, #tpu.memory_space<vmem>>, %arg15: memref<16x1xf32, #tpu.memory_space<vmem>>, %arg16: memref<16x8xf32, #tpu.memory_space<vmem>>, %arg17: memref<8x16xf32, #tpu.memory_space<vmem>>, %arg18: memref<32x4xf32, #tpu.memory_space<vmem>>, %arg19: memref<32x32xf32, #tpu.memory_space<vmem>>, %arg20: memref<32x32xf32, #tpu.memory_space<vmem>>, %arg21: memref<4x32xf32, #tpu.memory_space<vmem>>, %arg22: memref<32x4xf32, #tpu.memory_space<vmem>>, %arg23: memref<32x32xf32, #tpu.memory_space<vmem>>, %arg24: memref<32x32xf32, #tpu.memory_space<vmem>>, %arg25: memref<4x32xf32, #tpu.memory_space<vmem>>, %arg26: memref<64x128xbf16, #tpu.memory_space<vmem>>, %arg27: memref<64x32xbf16, #tpu.memory_space<vmem>>, %arg28: memref<8x32xbf16, #tpu.memory_space<vmem>>, %arg29: memref<32x32xbf16, #tpu.memory_space<vmem>>, %arg30: memref<64x36xbf16, #tpu.memory_space<vmem>>, %arg31: memref<8x36xbf16, #tpu.memory_space<vmem>>, %arg32: memref<1x36xf32, #tpu.memory_space<vmem>>, %arg33: memref<36x32xbf16, #tpu.memory_space<vmem>>, %arg34: memref<1x32xf32, #tpu.memory_space<vmem>>, %arg35: memref<32x32xbf16, #tpu.memory_space<vmem>>, %arg36: memref<1x32xf32, #tpu.memory_space<vmem>>, %arg37: memref<32x32xbf16, #tpu.memory_space<vmem>>, %arg38: memref<1x32xf32, #tpu.memory_space<vmem>>, %arg39: memref<32x32xbf16, #tpu.memory_space<vmem>>, %arg40: memref<1x32xf32, #tpu.memory_space<vmem>>, %arg41: memref<32x32xbf16, #tpu.memory_space<vmem>>, %arg42: memref<1x32xf32, #tpu.memory_space<vmem>>, %arg43: memref<64x1xf32, #tpu.memory_space<vmem>>, %arg44: memref<1x1xf32, #tpu.memory_space<vmem>>, %arg45: memref<64x1xf32, #tpu.memory_space<vmem>>, %arg46: memref<1x1xf32, #tpu.memory_space<vmem>>, %arg47: memref<64x32xbf16, #tpu.memory_space<vmem>>, %arg48: memref<1x32xf32, #tpu.memory_space<vmem>>, %arg49: memref<32x32xbf16, #tpu.memory_space<vmem>>, %arg50: memref<32x32xbf16, #tpu.memory_space<vmem>>, %arg51: memref<32x32xbf16, #tpu.memory_space<vmem>>, %arg52: memref<1x32xf32, #tpu.memory_space<vmem>>, %arg53: memref<16x32xf32, #tpu.memory_space<vmem>>) attributes {dimension_semantics = [], scalar_prefetch = 0 : i64, scratch_operands = 0 : i64, tpu.core_type = #tpu.core_type<tc>} {
    %c0 = arith.constant 0 : index
    %0 = memref.load %arg0[%c0] : memref<3xf32, #tpu.memory_space<smem>>
    %c1 = arith.constant 1 : index
    %1 = memref.load %arg0[%c1] : memref<3xf32, #tpu.memory_space<smem>>
    %c2 = arith.constant 2 : index
    %2 = memref.load %arg0[%c2] : memref<3xf32, #tpu.memory_space<smem>>
    %c0_0 = arith.constant 0 : index
    %c0_1 = arith.constant 0 : index
    %3 = vector.load %arg10[%c0_0, %c0_1] : memref<1x64xf32, #tpu.memory_space<vmem>>, vector<1x64xf32>
    %c0_2 = arith.constant 0 : index
    %c0_3 = arith.constant 0 : index
    %4 = vector.load %arg1[%c0_2, %c0_3] : memref<16x64xf32, #tpu.memory_space<vmem>>, vector<16x64xf32>
    %c0_4 = arith.constant 0 : index
    %c0_5 = arith.constant 0 : index
    %5 = vector.load %arg2[%c0_4, %c0_5] : memref<16x1xf32, #tpu.memory_space<vmem>>, vector<16x1xf32>
    %c0_6 = arith.constant 0 : index
    %c0_7 = arith.constant 0 : index
    %6 = vector.load %arg11[%c0_6, %c0_7] : memref<8x16xf32, #tpu.memory_space<vmem>>, vector<8x16xf32>
    %cst = arith.constant dense<0.000000e+00> : vector<8x64xf32>
    %7 = tpu.matmul %6, %4, %cst {dimension_numbers = #tpu.dot_dimension_numbers<[1], [0], [0], [1], [0, 0, 1, 1], [], []>} : vector<8x16xf32>, vector<16x64xf32>, vector<8x64xf32> -> vector<8x64xf32>
    %c0_8 = arith.constant 0 : index
    %c0_9 = arith.constant 0 : index
    %8 = vector.load %arg14[%c0_8, %c0_9] : memref<8x1xf32, #tpu.memory_space<vmem>>, vector<8x1xf32>
    %cst_10 = arith.constant 0.000000e+00 : f32
    %9 = vector.broadcast %cst_10 : f32 to vector<8x1xf32>
    %10 = arith.subf %9, %8 : vector<8x1xf32>
    %11 = vector.broadcast %10 : vector<8x1xf32> to vector<8x64xf32>
    %12 = vector.broadcast %3 : vector<1x64xf32> to vector<8x64xf32>
    %13 = arith.mulf %11, %12 : vector<8x64xf32>
    %14 = math.exp %13 : vector<8x64xf32>
    %15 = arith.mulf %7, %14 : vector<8x64xf32>
    %c0_11 = arith.constant 0 : index
    %c0_12 = arith.constant 0 : index
    %16 = vector.load %arg7[%c0_11, %c0_12] : memref<16x8xf32, #tpu.memory_space<vmem>>, vector<16x8xf32>
    %cst_13 = arith.constant dense<0.000000e+00> : vector<8x8xf32>
    %17 = tpu.matmul %6, %16, %cst_13 {dimension_numbers = #tpu.dot_dimension_numbers<[1], [0], [0], [1], [0, 0, 1, 1], [], []>} : vector<8x16xf32>, vector<16x8xf32>, vector<8x8xf32> -> vector<8x8xf32>
    %c0_14 = arith.constant 0 : index
    %c0_15 = arith.constant 0 : index
    %18 = vector.load %arg12[%c0_14, %c0_15] : memref<16x8xf32, #tpu.memory_space<vmem>>, vector<16x8xf32>
    %c0_16 = arith.constant 0 : index
    %c0_17 = arith.constant 0 : index
    %19 = vector.load %arg13[%c0_16, %c0_17] : memref<1x8xf32, #tpu.memory_space<vmem>>, vector<1x8xf32>
    %c0_18 = arith.constant 0 : index
    %c0_19 = arith.constant 0 : index
    %20 = vector.load %arg15[%c0_18, %c0_19] : memref<16x1xf32, #tpu.memory_space<vmem>>, vector<16x1xf32>
    %cst_20 = arith.constant 0.000000e+00 : f32
    %21 = vector.broadcast %cst_20 : f32 to vector<16x8xf32>
    %22 = arith.cmpf ogt, %18, %21 : vector<16x8xf32>
    %23 = vector.shape_cast %19 : vector<1x8xf32> to vector<1x8xf32>
    %24 = vector.broadcast %23 : vector<1x8xf32> to vector<16x8xf32>
    %cst_21 = arith.constant -1.000000e+30 : f32
    %25 = vector.broadcast %cst_21 : f32 to vector<16x8xf32>
    %26 = arith.select %22, %24, %25 : vector<16x8xi1>, vector<16x8xf32>
    %cst_22 = arith.constant dense<0xFF800000> : vector<16xf32>
    %27 = vector.multi_reduction <maximumf>, %26, %cst_22 [1] : vector<16x8xf32> to vector<16xf32>
    %28 = vector.shape_cast %27 : vector<16xf32> to vector<16x1xf32>
    %cst_23 = arith.constant 0.000000e+00 : f32
    %29 = vector.broadcast %cst_23 : f32 to vector<16x1xf32>
    %30 = arith.subf %29, %20 : vector<16x1xf32>
    %31 = vector.broadcast %28 : vector<16x1xf32> to vector<16x8xf32>
    %32 = vector.broadcast %19 : vector<1x8xf32> to vector<16x8xf32>
    %33 = arith.subf %31, %32 : vector<16x8xf32>
    %34 = vector.broadcast %30 : vector<16x1xf32> to vector<16x8xf32>
    %35 = arith.mulf %34, %33 : vector<16x8xf32>
    %cst_24 = arith.constant 0.000000e+00 : f32
    %36 = vector.broadcast %cst_24 : f32 to vector<16x8xf32>
    %37 = arith.minimumf %35, %36 : vector<16x8xf32>
    %cst_25 = arith.constant 0.000000e+00 : f32
    %38 = vector.broadcast %cst_25 : f32 to vector<16x8xf32>
    %39 = arith.cmpf ogt, %18, %38 : vector<16x8xf32>
    %40 = math.exp %37 : vector<16x8xf32>
    %cst_26 = arith.constant 0.000000e+00 : f32
    %41 = vector.broadcast %cst_26 : f32 to vector<16x8xf32>
    %42 = arith.select %39, %40, %41 : vector<16x8xi1>, vector<16x8xf32>
    %cst_27 = arith.constant dense<0.000000e+00> : vector<16xf32>
    %43 = vector.multi_reduction <add>, %42, %cst_27 [1] : vector<16x8xf32> to vector<16xf32>
    %44 = vector.shape_cast %43 : vector<16xf32> to vector<16x1xf32>
    %cst_28 = arith.constant 0.000000e+00 : f32
    %45 = vector.broadcast %cst_28 : f32 to vector<16x1xf32>
    %46 = arith.cmpf ogt, %44, %45 : vector<16x1xf32>
    %cst_29 = arith.constant 1.000000e-30 : f32
    %47 = vector.broadcast %cst_29 : f32 to vector<16x1xf32>
    %48 = arith.maximumf %44, %47 : vector<16x1xf32>
    %cst_30 = arith.constant 1.000000e+00 : f32
    %49 = vector.broadcast %cst_30 : f32 to vector<16x1xf32>
    %50 = arith.divf %49, %48 : vector<16x1xf32>
    %cst_31 = arith.constant 0.000000e+00 : f32
    %51 = vector.broadcast %cst_31 : f32 to vector<16x1xf32>
    %52 = arith.select %46, %50, %51 : vector<16x1xi1>, vector<16x1xf32>
    %cst_32 = arith.constant dense<0.000000e+00> : vector<16x64xf32>
    %53 = tpu.matmul %42, %15, %cst_32 {dimension_numbers = #tpu.dot_dimension_numbers<[1], [0], [0], [1], [0, 0, 1, 1], [], []>} : vector<16x8xf32>, vector<8x64xf32>, vector<16x64xf32> -> vector<16x64xf32>
    %cst_33 = arith.constant dense<0.000000e+00> : vector<16x8xf32>
    %54 = tpu.matmul %42, %17, %cst_33 {dimension_numbers = #tpu.dot_dimension_numbers<[1], [0], [0], [1], [0, 0, 1, 1], [], []>} : vector<16x8xf32>, vector<8x8xf32>, vector<16x8xf32> -> vector<16x8xf32>
    %c0_34 = arith.constant 0 : index
    %c0_35 = arith.constant 0 : index
    %55 = vector.load %arg30[%c0_34, %c0_35] : memref<64x36xbf16, #tpu.memory_space<vmem>>, vector<64x36xbf16>
    %56 = arith.truncf %53 : vector<16x64xf32> to vector<16x64xbf16>
    %cst_36 = arith.constant dense<0.000000e+00> : vector<16x36xf32>
    %57 = tpu.matmul %56, %55, %cst_36 {dimension_numbers = #tpu.dot_dimension_numbers<[1], [0], [0], [1], [0, 0, 1, 1], [], []>} : vector<16x64xbf16>, vector<64x36xbf16>, vector<16x36xf32> -> vector<16x36xf32>
    %c0_37 = arith.constant 0 : index
    %c0_38 = arith.constant 0 : index
    %58 = vector.load %arg31[%c0_37, %c0_38] : memref<8x36xbf16, #tpu.memory_space<vmem>>, vector<8x36xbf16>
    %59 = arith.truncf %54 : vector<16x8xf32> to vector<16x8xbf16>
    %cst_39 = arith.constant dense<0.000000e+00> : vector<16x36xf32>
    %60 = tpu.matmul %59, %58, %cst_39 {dimension_numbers = #tpu.dot_dimension_numbers<[1], [0], [0], [1], [0, 0, 1, 1], [], []>} : vector<16x8xbf16>, vector<8x36xbf16>, vector<16x36xf32> -> vector<16x36xf32>
    %61 = arith.addf %57, %60 : vector<16x36xf32>
    %c0_40 = arith.constant 0 : index
    %c0_41 = arith.constant 0 : index
    %62 = vector.load %arg32[%c0_40, %c0_41] : memref<1x36xf32, #tpu.memory_space<vmem>>, vector<1x36xf32>
    %63 = vector.broadcast %62 : vector<1x36xf32> to vector<16x36xf32>
    %64 = arith.addf %61, %63 : vector<16x36xf32>
    %cst_42 = arith.constant 0.000000e+00 : f32
    %65 = vector.broadcast %cst_42 : f32 to vector<16x36xf32>
    %66 = arith.maximumf %64, %65 : vector<16x36xf32>
    %c0_43 = arith.constant 0 : index
    %c0_44 = arith.constant 0 : index
    %67 = vector.load %arg33[%c0_43, %c0_44] : memref<36x32xbf16, #tpu.memory_space<vmem>>, vector<36x32xbf16>
    %68 = arith.truncf %66 : vector<16x36xf32> to vector<16x36xbf16>
    %cst_45 = arith.constant dense<0.000000e+00> : vector<16x32xf32>
    %69 = tpu.matmul %68, %67, %cst_45 {dimension_numbers = #tpu.dot_dimension_numbers<[1], [0], [0], [1], [0, 0, 1, 1], [], []>} : vector<16x36xbf16>, vector<36x32xbf16>, vector<16x32xf32> -> vector<16x32xf32>
    %c0_46 = arith.constant 0 : index
    %c0_47 = arith.constant 0 : index
    %70 = vector.load %arg34[%c0_46, %c0_47] : memref<1x32xf32, #tpu.memory_space<vmem>>, vector<1x32xf32>
    %71 = vector.broadcast %70 : vector<1x32xf32> to vector<16x32xf32>
    %72 = arith.addf %69, %71 : vector<16x32xf32>
    %73 = vector.broadcast %52 : vector<16x1xf32> to vector<16x64xf32>
    %74 = arith.mulf %53, %73 : vector<16x64xf32>
    %c0_48 = arith.constant 0 : index
    %c0_49 = arith.constant 0 : index
    %75 = vector.load %arg27[%c0_48, %c0_49] : memref<64x32xbf16, #tpu.memory_space<vmem>>, vector<64x32xbf16>
    %76 = arith.truncf %74 : vector<16x64xf32> to vector<16x64xbf16>
    %cst_50 = arith.constant dense<0.000000e+00> : vector<16x32xf32>
    %77 = tpu.matmul %76, %75, %cst_50 {dimension_numbers = #tpu.dot_dimension_numbers<[1], [0], [0], [1], [0, 0, 1, 1], [], []>} : vector<16x64xbf16>, vector<64x32xbf16>, vector<16x32xf32> -> vector<16x32xf32>
    %78 = vector.broadcast %52 : vector<16x1xf32> to vector<16x8xf32>
    %79 = arith.mulf %54, %78 : vector<16x8xf32>
    %c0_51 = arith.constant 0 : index
    %c0_52 = arith.constant 0 : index
    %80 = vector.load %arg28[%c0_51, %c0_52] : memref<8x32xbf16, #tpu.memory_space<vmem>>, vector<8x32xbf16>
    %81 = arith.truncf %79 : vector<16x8xf32> to vector<16x8xbf16>
    %cst_53 = arith.constant dense<0.000000e+00> : vector<16x32xf32>
    %82 = tpu.matmul %81, %80, %cst_53 {dimension_numbers = #tpu.dot_dimension_numbers<[1], [0], [0], [1], [0, 0, 1, 1], [], []>} : vector<16x8xbf16>, vector<8x32xbf16>, vector<16x32xf32> -> vector<16x32xf32>
    %83 = arith.addf %77, %82 : vector<16x32xf32>
    %84 = vector.broadcast %2 : f32 to vector<16x1xf32>
    %85 = arith.subf %84, %5 : vector<16x1xf32>
    %cst_54 = arith.constant 0.000000e+00 : f32
    %86 = vector.broadcast %cst_54 : f32 to vector<16x1xf32>
    %87 = arith.subf %86, %85 : vector<16x1xf32>
    %88 = vector.broadcast %87 : vector<16x1xf32> to vector<16x64xf32>
    %89 = vector.broadcast %3 : vector<1x64xf32> to vector<16x64xf32>
    %90 = arith.mulf %88, %89 : vector<16x64xf32>
    %91 = math.exp %90 : vector<16x64xf32>
    %92 = arith.mulf %4, %91 : vector<16x64xf32>
    %c0_55 = arith.constant 0 : index
    %c0_56 = arith.constant 0 : index
    %93 = vector.load %arg8[%c0_55, %c0_56] : memref<16x64xf32, #tpu.memory_space<vmem>>, vector<16x64xf32>
    %c0_57 = arith.constant 0 : index
    %c0_58 = arith.constant 0 : index
    %94 = vector.load %arg43[%c0_57, %c0_58] : memref<64x1xf32, #tpu.memory_space<vmem>>, vector<64x1xf32>
    %cst_59 = arith.constant dense<0.000000e+00> : vector<16x1xf32>
    %95 = tpu.matmul %92, %94, %cst_59 {dimension_numbers = #tpu.dot_dimension_numbers<[1], [0], [0], [1], [0, 0, 1, 1], [], []>} : vector<16x64xf32>, vector<64x1xf32>, vector<16x1xf32> -> vector<16x1xf32>
    %c0_60 = arith.constant 0 : index
    %c0_61 = arith.constant 0 : index
    %96 = vector.load %arg44[%c0_60, %c0_61] : memref<1x1xf32, #tpu.memory_space<vmem>>, vector<1x1xf32>
    %97 = vector.broadcast %96 : vector<1x1xf32> to vector<16x1xf32>
    %98 = arith.addf %95, %97 : vector<16x1xf32>
    %c0_62 = arith.constant 0 : index
    %c0_63 = arith.constant 0 : index
    %99 = vector.load %arg45[%c0_62, %c0_63] : memref<64x1xf32, #tpu.memory_space<vmem>>, vector<64x1xf32>
    %cst_64 = arith.constant dense<0.000000e+00> : vector<16x1xf32>
    %100 = tpu.matmul %93, %99, %cst_64 {dimension_numbers = #tpu.dot_dimension_numbers<[1], [0], [0], [1], [0, 0, 1, 1], [], []>} : vector<16x64xf32>, vector<64x1xf32>, vector<16x1xf32> -> vector<16x1xf32>
    %c0_65 = arith.constant 0 : index
    %c0_66 = arith.constant 0 : index
    %101 = vector.load %arg46[%c0_65, %c0_66] : memref<1x1xf32, #tpu.memory_space<vmem>>, vector<1x1xf32>
    %102 = vector.broadcast %101 : vector<1x1xf32> to vector<16x1xf32>
    %103 = arith.addf %100, %102 : vector<16x1xf32>
    %104 = arith.maximumf %98, %103 : vector<16x1xf32>
    %105 = arith.subf %98, %104 : vector<16x1xf32>
    %106 = math.exp %105 : vector<16x1xf32>
    %107 = arith.subf %103, %104 : vector<16x1xf32>
    %108 = math.exp %107 : vector<16x1xf32>
    %109 = arith.addf %106, %108 : vector<16x1xf32>
    %110 = tpu.reciprocal %109 {approx = true} : vector<16x1xf32> -> vector<16x1xf32>
    %111 = arith.mulf %106, %110 : vector<16x1xf32>
    %112 = vector.broadcast %111 : vector<16x1xf32> to vector<16x64xf32>
    %113 = arith.mulf %112, %92 : vector<16x64xf32>
    %114 = arith.mulf %108, %110 : vector<16x1xf32>
    %115 = vector.broadcast %114 : vector<16x1xf32> to vector<16x64xf32>
    %116 = arith.mulf %115, %93 : vector<16x64xf32>
    %117 = arith.addf %113, %116 : vector<16x64xf32>
    %c0_67 = arith.constant 0 : index
    %c0_68 = arith.constant 0 : index
    %118 = vector.load %arg3[%c0_67, %c0_68] : memref<4x64xf32, #tpu.memory_space<vmem>>, vector<4x64xf32>
    %c0_69 = arith.constant 0 : index
    %c0_70 = arith.constant 0 : index
    %119 = vector.load %arg5[%c0_69, %c0_70] : memref<4x64xf32, #tpu.memory_space<vmem>>, vector<4x64xf32>
    %c0_71 = arith.constant 0 : index
    %c0_72 = arith.constant 0 : index
    %120 = vector.load %arg26[%c0_71, %c0_72] : memref<64x128xbf16, #tpu.memory_space<vmem>>, vector<64x128xbf16>
    %121 = arith.truncf %118 : vector<4x64xf32> to vector<4x64xbf16>
    %cst_73 = arith.constant dense<0.000000e+00> : vector<4x128xf32>
    %122 = tpu.matmul %121, %120, %cst_73 {dimension_numbers = #tpu.dot_dimension_numbers<[1], [0], [0], [1], [0, 0, 1, 1], [], []>} : vector<4x64xbf16>, vector<64x128xbf16>, vector<4x128xf32> -> vector<4x128xf32>
    %123 = arith.truncf %117 : vector<16x64xf32> to vector<16x64xbf16>
    %cst_74 = arith.constant dense<0.000000e+00> : vector<16x128xf32>
    %124 = tpu.matmul %123, %120, %cst_74 {dimension_numbers = #tpu.dot_dimension_numbers<[1], [0], [0], [1], [0, 0, 1, 1], [], []>} : vector<16x64xbf16>, vector<64x128xbf16>, vector<16x128xf32> -> vector<16x128xf32>
    %125 = arith.truncf %119 : vector<4x64xf32> to vector<4x64xbf16>
    %cst_75 = arith.constant dense<0.000000e+00> : vector<4x128xf32>
    %126 = tpu.matmul %125, %120, %cst_75 {dimension_numbers = #tpu.dot_dimension_numbers<[1], [0], [0], [1], [0, 0, 1, 1], [], []>} : vector<4x64xbf16>, vector<64x128xbf16>, vector<4x128xf32> -> vector<4x128xf32>
    %127 = vector.extract_strided_slice %122 {offsets = [0, 0], sizes = [4, 32], strides = [1, 1]} : vector<4x128xf32> to vector<4x32xf32>
    %128 = vector.extract_strided_slice %124 {offsets = [0, 32], sizes = [16, 32], strides = [1, 1]} : vector<16x128xf32> to vector<16x32xf32>
    %129 = vector.extract_strided_slice %126 {offsets = [0, 64], sizes = [4, 32], strides = [1, 1]} : vector<4x128xf32> to vector<4x32xf32>
    %130 = vector.extract_strided_slice %122 {offsets = [0, 96], sizes = [4, 32], strides = [1, 1]} : vector<4x128xf32> to vector<4x32xf32>
    %c0_76 = arith.constant 0 : index
    %c0_77 = arith.constant 0 : index
    %131 = vector.load %arg19[%c0_76, %c0_77] : memref<32x32xf32, #tpu.memory_space<vmem>>, vector<32x32xf32>
    %c0_78 = arith.constant 0 : index
    %c0_79 = arith.constant 0 : index
    %132 = vector.load %arg23[%c0_78, %c0_79] : memref<32x32xf32, #tpu.memory_space<vmem>>, vector<32x32xf32>
    %c0_80 = arith.constant 0 : index
    %c0_81 = arith.constant 0 : index
    %133 = vector.load %arg18[%c0_80, %c0_81] : memref<32x4xf32, #tpu.memory_space<vmem>>, vector<32x4xf32>
    %cst_82 = arith.constant dense<0.000000e+00> : vector<32x32xf32>
    %134 = tpu.matmul %133, %127, %cst_82 {dimension_numbers = #tpu.dot_dimension_numbers<[1], [0], [0], [1], [0, 0, 1, 1], [], []>} : vector<32x4xf32>, vector<4x32xf32>, vector<32x32xf32> -> vector<32x32xf32>
    %135 = arith.mulf %134, %131 : vector<32x32xf32>
    %c0_83 = arith.constant 0 : index
    %c0_84 = arith.constant 0 : index
    %136 = vector.load %arg22[%c0_83, %c0_84] : memref<32x4xf32, #tpu.memory_space<vmem>>, vector<32x4xf32>
    %cst_85 = arith.constant dense<0.000000e+00> : vector<32x32xf32>
    %137 = tpu.matmul %136, %129, %cst_85 {dimension_numbers = #tpu.dot_dimension_numbers<[1], [0], [0], [1], [0, 0, 1, 1], [], []>} : vector<32x4xf32>, vector<4x32xf32>, vector<32x32xf32> -> vector<32x32xf32>
    %138 = arith.mulf %137, %132 : vector<32x32xf32>
    %c0_86 = arith.constant 0 : index
    %c0_87 = arith.constant 0 : index
    %139 = vector.load %arg16[%c0_86, %c0_87] : memref<16x8xf32, #tpu.memory_space<vmem>>, vector<16x8xf32>
    %c0_88 = arith.constant 0 : index
    %c0_89 = arith.constant 0 : index
    %140 = vector.load %arg17[%c0_88, %c0_89] : memref<8x16xf32, #tpu.memory_space<vmem>>, vector<8x16xf32>
    %cst_90 = arith.constant dense<0.000000e+00> : vector<8xf32>
    %141 = vector.multi_reduction <add>, %140, %cst_90 [1] : vector<8x16xf32> to vector<8xf32>
    %142 = vector.shape_cast %141 : vector<8xf32> to vector<8x1xf32>
    %cst_91 = arith.constant dense<0.000000e+00> : vector<8xf32>
    %143 = vector.multi_reduction <add>, %139, %cst_91 [0] : vector<16x8xf32> to vector<8xf32>
    %144 = vector.shape_cast %143 : vector<8xf32> to vector<1x8xf32>
    %cst_92 = arith.constant dense<0.000000e+00> : vector<8x32xf32>
    %145 = tpu.matmul %140, %128, %cst_92 {dimension_numbers = #tpu.dot_dimension_numbers<[1], [0], [0], [1], [0, 0, 1, 1], [], []>} : vector<8x16xf32>, vector<16x32xf32>, vector<8x32xf32> -> vector<8x32xf32>
    %146 = arith.truncf %135 : vector<32x32xf32> to vector<32x32xbf16>
    %147 = arith.truncf %145 : vector<8x32xf32> to vector<8x32xbf16>
    %cst_93 = arith.constant dense<0.000000e+00> : vector<32x8xf32>
    %148 = tpu.matmul %146, %147, %cst_93 {dimension_numbers = #tpu.dot_dimension_numbers<[1], [1], [0], [0], [0, 0, 1, 0], [], []>} : vector<32x32xbf16>, vector<8x32xbf16>, vector<32x8xf32> -> vector<32x8xf32>
    %cst_94 = arith.constant 5.000000e-01 : f32
    %149 = vector.broadcast %cst_94 : f32 to vector<32x8xf32>
    %150 = arith.mulf %148, %149 : vector<32x8xf32>
    %cst_95 = arith.constant 0.000000e+00 : f32
    %151 = vector.broadcast %cst_95 : f32 to vector<1x8xf32>
    %152 = arith.cmpf ogt, %144, %151 : vector<1x8xf32>
    %cst_96 = arith.constant -1.000000e+30 : f32
    %153 = vector.shape_cast %152 : vector<1x8xi1> to vector<1x8xi1>
    %154 = vector.broadcast %153 : vector<1x8xi1> to vector<32x8xi1>
    %155 = vector.broadcast %cst_96 : f32 to vector<32x8xf32>
    %156 = arith.select %154, %150, %155 : vector<32x8xi1>, vector<32x8xf32>
    %cst_97 = arith.constant dense<0xFF800000> : vector<32xf32>
    %157 = vector.multi_reduction <maximumf>, %156, %cst_97 [1] : vector<32x8xf32> to vector<32xf32>
    %158 = vector.shape_cast %157 : vector<32xf32> to vector<32x1xf32>
    %159 = vector.broadcast %158 : vector<32x1xf32> to vector<32x8xf32>
    %160 = arith.subf %156, %159 : vector<32x8xf32>
    %161 = math.exp %160 : vector<32x8xf32>
    %cst_98 = arith.constant dense<0.000000e+00> : vector<32xf32>
    %162 = vector.multi_reduction <add>, %161, %cst_98 [1] : vector<32x8xf32> to vector<32xf32>
    %163 = vector.shape_cast %162 : vector<32xf32> to vector<32x1xf32>
    %164 = tpu.reciprocal %163 {approx = true} : vector<32x1xf32> -> vector<32x1xf32>
    %165 = vector.broadcast %164 : vector<32x1xf32> to vector<32x8xf32>
    %166 = arith.mulf %161, %165 : vector<32x8xf32>
    %167 = arith.truncf %138 : vector<32x32xf32> to vector<32x32xbf16>
    %168 = arith.truncf %130 : vector<4x32xf32> to vector<4x32xbf16>
    %cst_99 = arith.constant dense<0.000000e+00> : vector<32x4xf32>
    %169 = tpu.matmul %167, %168, %cst_99 {dimension_numbers = #tpu.dot_dimension_numbers<[1], [1], [0], [0], [0, 0, 1, 0], [], []>} : vector<32x32xbf16>, vector<4x32xbf16>, vector<32x4xf32> -> vector<32x4xf32>
    %cst_100 = arith.constant 5.000000e-01 : f32
    %170 = vector.broadcast %cst_100 : f32 to vector<32x4xf32>
    %171 = arith.mulf %169, %170 : vector<32x4xf32>
    %cst_101 = arith.constant dense<0xFF800000> : vector<32xf32>
    %172 = vector.multi_reduction <maximumf>, %171, %cst_101 [1] : vector<32x4xf32> to vector<32xf32>
    %173 = vector.shape_cast %172 : vector<32xf32> to vector<32x1xf32>
    %174 = vector.broadcast %173 : vector<32x1xf32> to vector<32x4xf32>
    %175 = arith.subf %171, %174 : vector<32x4xf32>
    %176 = math.exp %175 : vector<32x4xf32>
    %cst_102 = arith.constant dense<0.000000e+00> : vector<32xf32>
    %177 = vector.multi_reduction <add>, %176, %cst_102 [1] : vector<32x4xf32> to vector<32xf32>
    %178 = vector.shape_cast %177 : vector<32xf32> to vector<32x1xf32>
    %179 = tpu.reciprocal %178 {approx = true} : vector<32x1xf32> -> vector<32x1xf32>
    %180 = vector.broadcast %179 : vector<32x1xf32> to vector<32x4xf32>
    %181 = arith.mulf %176, %180 : vector<32x4xf32>
    %c0_103 = arith.constant 0 : index
    %c0_104 = arith.constant 0 : index
    %182 = vector.load %arg21[%c0_103, %c0_104] : memref<4x32xf32, #tpu.memory_space<vmem>>, vector<4x32xf32>
    %c0_105 = arith.constant 0 : index
    %c0_106 = arith.constant 0 : index
    %183 = vector.load %arg25[%c0_105, %c0_106] : memref<4x32xf32, #tpu.memory_space<vmem>>, vector<4x32xf32>
    %c0_107 = arith.constant 0 : index
    %c0_108 = arith.constant 0 : index
    %184 = vector.load %arg35[%c0_107, %c0_108] : memref<32x32xbf16, #tpu.memory_space<vmem>>, vector<32x32xbf16>
    %c0_109 = arith.constant 0 : index
    %c0_110 = arith.constant 0 : index
    %185 = vector.load %arg36[%c0_109, %c0_110] : memref<1x32xf32, #tpu.memory_space<vmem>>, vector<1x32xf32>
    %c0_111 = arith.constant 0 : index
    %c0_112 = arith.constant 0 : index
    %186 = vector.load %arg37[%c0_111, %c0_112] : memref<32x32xbf16, #tpu.memory_space<vmem>>, vector<32x32xbf16>
    %c0_113 = arith.constant 0 : index
    %c0_114 = arith.constant 0 : index
    %187 = vector.load %arg38[%c0_113, %c0_114] : memref<1x32xf32, #tpu.memory_space<vmem>>, vector<1x32xf32>
    %c0_115 = arith.constant 0 : index
    %c0_116 = arith.constant 0 : index
    %188 = vector.load %arg39[%c0_115, %c0_116] : memref<32x32xbf16, #tpu.memory_space<vmem>>, vector<32x32xbf16>
    %c0_117 = arith.constant 0 : index
    %c0_118 = arith.constant 0 : index
    %189 = vector.load %arg40[%c0_117, %c0_118] : memref<1x32xf32, #tpu.memory_space<vmem>>, vector<1x32xf32>
    %c0_119 = arith.constant 0 : index
    %c0_120 = arith.constant 0 : index
    %190 = vector.load %arg41[%c0_119, %c0_120] : memref<32x32xbf16, #tpu.memory_space<vmem>>, vector<32x32xbf16>
    %c0_121 = arith.constant 0 : index
    %c0_122 = arith.constant 0 : index
    %191 = vector.load %arg42[%c0_121, %c0_122] : memref<1x32xf32, #tpu.memory_space<vmem>>, vector<1x32xf32>
    %c0_123 = arith.constant 0 : index
    %c0_124 = arith.constant 0 : index
    %192 = vector.load %arg29[%c0_123, %c0_124] : memref<32x32xbf16, #tpu.memory_space<vmem>>, vector<32x32xbf16>
    %193 = vector.extract_strided_slice %83 {offsets = [0, 0], sizes = [8, 32], strides = [1, 1]} : vector<16x32xf32> to vector<8x32xf32>
    %194 = arith.truncf %166 : vector<32x8xf32> to vector<32x8xbf16>
    %195 = arith.truncf %193 : vector<8x32xf32> to vector<8x32xbf16>
    %cst_125 = arith.constant dense<0.000000e+00> : vector<32x32xf32>
    %196 = tpu.matmul %194, %195, %cst_125 {dimension_numbers = #tpu.dot_dimension_numbers<[1], [0], [0], [1], [0, 0, 1, 1], [], []>} : vector<32x8xbf16>, vector<8x32xbf16>, vector<32x32xf32> -> vector<32x32xf32>
    %197 = arith.mulf %196, %131 : vector<32x32xf32>
    %cst_126 = arith.constant dense<0.000000e+00> : vector<4x32xf32>
    %198 = tpu.matmul %182, %197, %cst_126 {dimension_numbers = #tpu.dot_dimension_numbers<[1], [0], [0], [1], [0, 0, 1, 1], [], []>} : vector<4x32xf32>, vector<32x32xf32>, vector<4x32xf32> -> vector<4x32xf32>
    %199 = arith.truncf %198 : vector<4x32xf32> to vector<4x32xbf16>
    %cst_127 = arith.constant dense<0.000000e+00> : vector<4x32xf32>
    %200 = tpu.matmul %199, %184, %cst_127 {dimension_numbers = #tpu.dot_dimension_numbers<[1], [0], [0], [1], [0, 0, 1, 1], [], []>} : vector<4x32xbf16>, vector<32x32xbf16>, vector<4x32xf32> -> vector<4x32xf32>
    %201 = vector.broadcast %185 : vector<1x32xf32> to vector<4x32xf32>
    %202 = arith.addf %200, %201 : vector<4x32xf32>
    %cst_128 = arith.constant 0.000000e+00 : f32
    %203 = vector.broadcast %cst_128 : f32 to vector<4x32xf32>
    %204 = arith.cmpf oge, %202, %203 : vector<4x32xf32>
    %cst_129 = arith.constant 0.00999999977 : f32
    %205 = vector.broadcast %cst_129 : f32 to vector<4x32xf32>
    %206 = arith.mulf %205, %202 : vector<4x32xf32>
    %207 = arith.select %204, %202, %206 : vector<4x32xi1>, vector<4x32xf32>
    %208 = arith.truncf %207 : vector<4x32xf32> to vector<4x32xbf16>
    %cst_130 = arith.constant dense<0.000000e+00> : vector<4x32xf32>
    %209 = tpu.matmul %208, %186, %cst_130 {dimension_numbers = #tpu.dot_dimension_numbers<[1], [0], [0], [1], [0, 0, 1, 1], [], []>} : vector<4x32xbf16>, vector<32x32xbf16>, vector<4x32xf32> -> vector<4x32xf32>
    %210 = vector.broadcast %187 : vector<1x32xf32> to vector<4x32xf32>
    %211 = arith.addf %209, %210 : vector<4x32xf32>
    %cst_131 = arith.constant 0.000000e+00 : f32
    %212 = vector.broadcast %cst_131 : f32 to vector<4x32xf32>
    %213 = arith.cmpf oge, %211, %212 : vector<4x32xf32>
    %cst_132 = arith.constant 0.00999999977 : f32
    %214 = vector.broadcast %cst_132 : f32 to vector<4x32xf32>
    %215 = arith.mulf %214, %211 : vector<4x32xf32>
    %216 = arith.select %213, %211, %215 : vector<4x32xi1>, vector<4x32xf32>
    %217 = arith.truncf %198 : vector<4x32xf32> to vector<4x32xbf16>
    %cst_133 = arith.constant dense<0.000000e+00> : vector<4x32xf32>
    %218 = tpu.matmul %217, %192, %cst_133 {dimension_numbers = #tpu.dot_dimension_numbers<[1], [0], [0], [1], [0, 0, 1, 1], [], []>} : vector<4x32xbf16>, vector<32x32xbf16>, vector<4x32xf32> -> vector<4x32xf32>
    %219 = arith.truncf %181 : vector<32x4xf32> to vector<32x4xbf16>
    %220 = arith.truncf %218 : vector<4x32xf32> to vector<4x32xbf16>
    %cst_134 = arith.constant dense<0.000000e+00> : vector<32x32xf32>
    %221 = tpu.matmul %219, %220, %cst_134 {dimension_numbers = #tpu.dot_dimension_numbers<[1], [0], [0], [1], [0, 0, 1, 1], [], []>} : vector<32x4xbf16>, vector<4x32xbf16>, vector<32x32xf32> -> vector<32x32xf32>
    %222 = arith.mulf %221, %132 : vector<32x32xf32>
    %cst_135 = arith.constant dense<0.000000e+00> : vector<4x32xf32>
    %223 = tpu.matmul %183, %222, %cst_135 {dimension_numbers = #tpu.dot_dimension_numbers<[1], [0], [0], [1], [0, 0, 1, 1], [], []>} : vector<4x32xf32>, vector<32x32xf32>, vector<4x32xf32> -> vector<4x32xf32>
    %224 = arith.truncf %223 : vector<4x32xf32> to vector<4x32xbf16>
    %cst_136 = arith.constant dense<0.000000e+00> : vector<4x32xf32>
    %225 = tpu.matmul %224, %188, %cst_136 {dimension_numbers = #tpu.dot_dimension_numbers<[1], [0], [0], [1], [0, 0, 1, 1], [], []>} : vector<4x32xbf16>, vector<32x32xbf16>, vector<4x32xf32> -> vector<4x32xf32>
    %226 = vector.broadcast %189 : vector<1x32xf32> to vector<4x32xf32>
    %227 = arith.addf %225, %226 : vector<4x32xf32>
    %cst_137 = arith.constant 0.000000e+00 : f32
    %228 = vector.broadcast %cst_137 : f32 to vector<4x32xf32>
    %229 = arith.cmpf oge, %227, %228 : vector<4x32xf32>
    %cst_138 = arith.constant 0.00999999977 : f32
    %230 = vector.broadcast %cst_138 : f32 to vector<4x32xf32>
    %231 = arith.mulf %230, %227 : vector<4x32xf32>
    %232 = arith.select %229, %227, %231 : vector<4x32xi1>, vector<4x32xf32>
    %233 = arith.truncf %232 : vector<4x32xf32> to vector<4x32xbf16>
    %cst_139 = arith.constant dense<0.000000e+00> : vector<4x32xf32>
    %234 = tpu.matmul %233, %190, %cst_139 {dimension_numbers = #tpu.dot_dimension_numbers<[1], [0], [0], [1], [0, 0, 1, 1], [], []>} : vector<4x32xbf16>, vector<32x32xbf16>, vector<4x32xf32> -> vector<4x32xf32>
    %235 = vector.broadcast %191 : vector<1x32xf32> to vector<4x32xf32>
    %236 = arith.addf %234, %235 : vector<4x32xf32>
    %cst_140 = arith.constant 0.000000e+00 : f32
    %237 = vector.broadcast %cst_140 : f32 to vector<4x32xf32>
    %238 = arith.cmpf oge, %236, %237 : vector<4x32xf32>
    %cst_141 = arith.constant 0.00999999977 : f32
    %239 = vector.broadcast %cst_141 : f32 to vector<4x32xf32>
    %240 = arith.mulf %239, %236 : vector<4x32xf32>
    %241 = arith.select %238, %236, %240 : vector<4x32xi1>, vector<4x32xf32>
    %242 = vector.extract_strided_slice %83 {offsets = [8, 0], sizes = [8, 32], strides = [1, 1]} : vector<16x32xf32> to vector<8x32xf32>
    %243 = arith.truncf %166 : vector<32x8xf32> to vector<32x8xbf16>
    %244 = arith.truncf %242 : vector<8x32xf32> to vector<8x32xbf16>
    %cst_142 = arith.constant dense<0.000000e+00> : vector<32x32xf32>
    %245 = tpu.matmul %243, %244, %cst_142 {dimension_numbers = #tpu.dot_dimension_numbers<[1], [0], [0], [1], [0, 0, 1, 1], [], []>} : vector<32x8xbf16>, vector<8x32xbf16>, vector<32x32xf32> -> vector<32x32xf32>
    %246 = arith.mulf %245, %131 : vector<32x32xf32>
    %cst_143 = arith.constant dense<0.000000e+00> : vector<4x32xf32>
    %247 = tpu.matmul %182, %246, %cst_143 {dimension_numbers = #tpu.dot_dimension_numbers<[1], [0], [0], [1], [0, 0, 1, 1], [], []>} : vector<4x32xf32>, vector<32x32xf32>, vector<4x32xf32> -> vector<4x32xf32>
    %248 = arith.truncf %247 : vector<4x32xf32> to vector<4x32xbf16>
    %cst_144 = arith.constant dense<0.000000e+00> : vector<4x32xf32>
    %249 = tpu.matmul %248, %184, %cst_144 {dimension_numbers = #tpu.dot_dimension_numbers<[1], [0], [0], [1], [0, 0, 1, 1], [], []>} : vector<4x32xbf16>, vector<32x32xbf16>, vector<4x32xf32> -> vector<4x32xf32>
    %250 = vector.broadcast %185 : vector<1x32xf32> to vector<4x32xf32>
    %251 = arith.addf %249, %250 : vector<4x32xf32>
    %cst_145 = arith.constant 0.000000e+00 : f32
    %252 = vector.broadcast %cst_145 : f32 to vector<4x32xf32>
    %253 = arith.cmpf oge, %251, %252 : vector<4x32xf32>
    %cst_146 = arith.constant 0.00999999977 : f32
    %254 = vector.broadcast %cst_146 : f32 to vector<4x32xf32>
    %255 = arith.mulf %254, %251 : vector<4x32xf32>
    %256 = arith.select %253, %251, %255 : vector<4x32xi1>, vector<4x32xf32>
    %257 = arith.truncf %256 : vector<4x32xf32> to vector<4x32xbf16>
    %cst_147 = arith.constant dense<0.000000e+00> : vector<4x32xf32>
    %258 = tpu.matmul %257, %186, %cst_147 {dimension_numbers = #tpu.dot_dimension_numbers<[1], [0], [0], [1], [0, 0, 1, 1], [], []>} : vector<4x32xbf16>, vector<32x32xbf16>, vector<4x32xf32> -> vector<4x32xf32>
    %259 = vector.broadcast %187 : vector<1x32xf32> to vector<4x32xf32>
    %260 = arith.addf %258, %259 : vector<4x32xf32>
    %cst_148 = arith.constant 0.000000e+00 : f32
    %261 = vector.broadcast %cst_148 : f32 to vector<4x32xf32>
    %262 = arith.cmpf oge, %260, %261 : vector<4x32xf32>
    %cst_149 = arith.constant 0.00999999977 : f32
    %263 = vector.broadcast %cst_149 : f32 to vector<4x32xf32>
    %264 = arith.mulf %263, %260 : vector<4x32xf32>
    %265 = arith.select %262, %260, %264 : vector<4x32xi1>, vector<4x32xf32>
    %266 = arith.truncf %247 : vector<4x32xf32> to vector<4x32xbf16>
    %cst_150 = arith.constant dense<0.000000e+00> : vector<4x32xf32>
    %267 = tpu.matmul %266, %192, %cst_150 {dimension_numbers = #tpu.dot_dimension_numbers<[1], [0], [0], [1], [0, 0, 1, 1], [], []>} : vector<4x32xbf16>, vector<32x32xbf16>, vector<4x32xf32> -> vector<4x32xf32>
    %268 = arith.truncf %181 : vector<32x4xf32> to vector<32x4xbf16>
    %269 = arith.truncf %267 : vector<4x32xf32> to vector<4x32xbf16>
    %cst_151 = arith.constant dense<0.000000e+00> : vector<32x32xf32>
    %270 = tpu.matmul %268, %269, %cst_151 {dimension_numbers = #tpu.dot_dimension_numbers<[1], [0], [0], [1], [0, 0, 1, 1], [], []>} : vector<32x4xbf16>, vector<4x32xbf16>, vector<32x32xf32> -> vector<32x32xf32>
    %271 = arith.mulf %270, %132 : vector<32x32xf32>
    %cst_152 = arith.constant dense<0.000000e+00> : vector<4x32xf32>
    %272 = tpu.matmul %183, %271, %cst_152 {dimension_numbers = #tpu.dot_dimension_numbers<[1], [0], [0], [1], [0, 0, 1, 1], [], []>} : vector<4x32xf32>, vector<32x32xf32>, vector<4x32xf32> -> vector<4x32xf32>
    %273 = arith.truncf %272 : vector<4x32xf32> to vector<4x32xbf16>
    %cst_153 = arith.constant dense<0.000000e+00> : vector<4x32xf32>
    %274 = tpu.matmul %273, %188, %cst_153 {dimension_numbers = #tpu.dot_dimension_numbers<[1], [0], [0], [1], [0, 0, 1, 1], [], []>} : vector<4x32xbf16>, vector<32x32xbf16>, vector<4x32xf32> -> vector<4x32xf32>
    %275 = vector.broadcast %189 : vector<1x32xf32> to vector<4x32xf32>
    %276 = arith.addf %274, %275 : vector<4x32xf32>
    %cst_154 = arith.constant 0.000000e+00 : f32
    %277 = vector.broadcast %cst_154 : f32 to vector<4x32xf32>
    %278 = arith.cmpf oge, %276, %277 : vector<4x32xf32>
    %cst_155 = arith.constant 0.00999999977 : f32
    %279 = vector.broadcast %cst_155 : f32 to vector<4x32xf32>
    %280 = arith.mulf %279, %276 : vector<4x32xf32>
    %281 = arith.select %278, %276, %280 : vector<4x32xi1>, vector<4x32xf32>
    %282 = arith.truncf %281 : vector<4x32xf32> to vector<4x32xbf16>
    %cst_156 = arith.constant dense<0.000000e+00> : vector<4x32xf32>
    %283 = tpu.matmul %282, %190, %cst_156 {dimension_numbers = #tpu.dot_dimension_numbers<[1], [0], [0], [1], [0, 0, 1, 1], [], []>} : vector<4x32xbf16>, vector<32x32xbf16>, vector<4x32xf32> -> vector<4x32xf32>
    %284 = vector.broadcast %191 : vector<1x32xf32> to vector<4x32xf32>
    %285 = arith.addf %283, %284 : vector<4x32xf32>
    %cst_157 = arith.constant 0.000000e+00 : f32
    %286 = vector.broadcast %cst_157 : f32 to vector<4x32xf32>
    %287 = arith.cmpf oge, %285, %286 : vector<4x32xf32>
    %cst_158 = arith.constant 0.00999999977 : f32
    %288 = vector.broadcast %cst_158 : f32 to vector<4x32xf32>
    %289 = arith.mulf %288, %285 : vector<4x32xf32>
    %290 = arith.select %287, %285, %289 : vector<4x32xi1>, vector<4x32xf32>
    %291 = tpu.concatenate %216, %265 in 1 : vector<4x32xf32>, vector<4x32xf32> -> vector<4x64xf32>
    %292 = tpu.concatenate %241, %290 in 1 : vector<4x32xf32>, vector<4x32xf32> -> vector<4x64xf32>
    %293 = vector.extract_strided_slice %28 {offsets = [0, 0], sizes = [8, 1], strides = [1, 1]} : vector<16x1xf32> to vector<8x1xf32>
    %cst_159 = arith.constant dense<0.000000e+00> : vector<8x64xf32>
    %294 = tpu.matmul %140, %4, %cst_159 {dimension_numbers = #tpu.dot_dimension_numbers<[1], [0], [0], [1], [0, 0, 1, 1], [], []>} : vector<8x16xf32>, vector<16x64xf32>, vector<8x64xf32> -> vector<8x64xf32>
    %cst_160 = arith.constant dense<0.000000e+00> : vector<8x1xf32>
    %295 = tpu.matmul %140, %5, %cst_160 {dimension_numbers = #tpu.dot_dimension_numbers<[1], [0], [0], [1], [0, 0, 1, 1], [], []>} : vector<8x16xf32>, vector<16x1xf32>, vector<8x1xf32> -> vector<8x1xf32>
    %cst_161 = arith.constant 0.000000e+00 : f32
    %296 = vector.broadcast %cst_161 : f32 to vector<8x1xf32>
    %297 = arith.cmpf ogt, %142, %296 : vector<8x1xf32>
    %298 = arith.select %297, %293, %295 : vector<8x1xi1>, vector<8x1xf32>
    %299 = vector.extract_strided_slice %72 {offsets = [0, 0], sizes = [8, 32], strides = [1, 1]} : vector<16x32xf32> to vector<8x32xf32>
    %300 = vector.extract_strided_slice %72 {offsets = [8, 0], sizes = [8, 32], strides = [1, 1]} : vector<16x32xf32> to vector<8x32xf32>
    %301 = tpu.concatenate %299, %300 in 1 : vector<8x32xf32>, vector<8x32xf32> -> vector<8x64xf32>
    %302 = arith.subf %298, %295 : vector<8x1xf32>
    %cst_162 = arith.constant 0.000000e+00 : f32
    %303 = vector.broadcast %cst_162 : f32 to vector<8x1xf32>
    %304 = arith.subf %303, %302 : vector<8x1xf32>
    %305 = vector.broadcast %304 : vector<8x1xf32> to vector<8x64xf32>
    %306 = vector.broadcast %3 : vector<1x64xf32> to vector<8x64xf32>
    %307 = arith.mulf %305, %306 : vector<8x64xf32>
    %308 = math.exp %307 : vector<8x64xf32>
    %309 = arith.mulf %294, %308 : vector<8x64xf32>
    %310 = arith.addf %309, %301 : vector<8x64xf32>
    %cst_163 = arith.constant dense<0.000000e+00> : vector<16xf32>
    %311 = vector.multi_reduction <add>, %139, %cst_163 [1] : vector<16x8xf32> to vector<16xf32>
    %312 = vector.shape_cast %311 : vector<16xf32> to vector<16x1xf32>
    %cst_164 = arith.constant 1.000000e+00 : f32
    %313 = vector.broadcast %cst_164 : f32 to vector<16x1xf32>
    %314 = arith.subf %313, %312 : vector<16x1xf32>
    %315 = vector.broadcast %314 : vector<16x1xf32> to vector<16x64xf32>
    %316 = arith.mulf %4, %315 : vector<16x64xf32>
    %cst_165 = arith.constant dense<0.000000e+00> : vector<16x64xf32>
    %317 = tpu.matmul %139, %310, %cst_165 {dimension_numbers = #tpu.dot_dimension_numbers<[1], [0], [0], [1], [0, 0, 1, 1], [], []>} : vector<16x8xf32>, vector<8x64xf32>, vector<16x64xf32> -> vector<16x64xf32>
    %318 = arith.addf %316, %317 : vector<16x64xf32>
    %cst_166 = arith.constant 1.000000e+00 : f32
    %319 = vector.broadcast %cst_166 : f32 to vector<16x1xf32>
    %320 = arith.subf %319, %312 : vector<16x1xf32>
    %321 = arith.mulf %5, %320 : vector<16x1xf32>
    %cst_167 = arith.constant dense<0.000000e+00> : vector<16x1xf32>
    %322 = tpu.matmul %139, %298, %cst_167 {dimension_numbers = #tpu.dot_dimension_numbers<[1], [0], [0], [1], [0, 0, 1, 1], [], []>} : vector<16x8xf32>, vector<8x1xf32>, vector<16x1xf32> -> vector<16x1xf32>
    %323 = arith.addf %321, %322 : vector<16x1xf32>
    %c0_168 = arith.constant 0 : index
    %c0_169 = arith.constant 0 : index
    %324 = vector.load %arg4[%c0_168, %c0_169] : memref<4x1xf32, #tpu.memory_space<vmem>>, vector<4x1xf32>
    %325 = vector.broadcast %1 : f32 to vector<4x1xf32>
    %326 = arith.subf %325, %324 : vector<4x1xf32>
    %cst_170 = arith.constant 0.000000e+00 : f32
    %327 = vector.broadcast %cst_170 : f32 to vector<4x1xf32>
    %328 = arith.subf %327, %326 : vector<4x1xf32>
    %329 = vector.broadcast %328 : vector<4x1xf32> to vector<4x64xf32>
    %330 = vector.broadcast %3 : vector<1x64xf32> to vector<4x64xf32>
    %331 = arith.mulf %329, %330 : vector<4x64xf32>
    %332 = math.exp %331 : vector<4x64xf32>
    %333 = arith.mulf %118, %332 : vector<4x64xf32>
    %334 = arith.addf %333, %291 : vector<4x64xf32>
    %c0_171 = arith.constant 0 : index
    %c0_172 = arith.constant 0 : index
    %335 = vector.load %arg6[%c0_171, %c0_172] : memref<4x1xf32, #tpu.memory_space<vmem>>, vector<4x1xf32>
    %336 = vector.broadcast %1 : f32 to vector<4x1xf32>
    %337 = arith.subf %336, %335 : vector<4x1xf32>
    %cst_173 = arith.constant 0.000000e+00 : f32
    %338 = vector.broadcast %cst_173 : f32 to vector<4x1xf32>
    %339 = arith.subf %338, %337 : vector<4x1xf32>
    %340 = vector.broadcast %339 : vector<4x1xf32> to vector<4x64xf32>
    %341 = vector.broadcast %3 : vector<1x64xf32> to vector<4x64xf32>
    %342 = arith.mulf %340, %341 : vector<4x64xf32>
    %343 = math.exp %342 : vector<4x64xf32>
    %344 = arith.mulf %119, %343 : vector<4x64xf32>
    %345 = arith.addf %344, %292 : vector<4x64xf32>
    %346 = vector.broadcast %1 : f32 to vector<16x1xf32>
    %347 = arith.subf %346, %323 : vector<16x1xf32>
    %cst_174 = arith.constant 0.000000e+00 : f32
    %348 = vector.broadcast %cst_174 : f32 to vector<16x1xf32>
    %349 = arith.subf %348, %347 : vector<16x1xf32>
    %350 = vector.broadcast %349 : vector<16x1xf32> to vector<16x64xf32>
    %351 = vector.broadcast %3 : vector<1x64xf32> to vector<16x64xf32>
    %352 = arith.mulf %350, %351 : vector<16x64xf32>
    %353 = math.exp %352 : vector<16x64xf32>
    %354 = arith.mulf %318, %353 : vector<16x64xf32>
    %355 = arith.truncf %128 : vector<16x32xf32> to vector<16x32xbf16>
    %356 = arith.truncf %135 : vector<32x32xf32> to vector<32x32xbf16>
    %cst_175 = arith.constant dense<0.000000e+00> : vector<16x32xf32>
    %357 = tpu.matmul %355, %356, %cst_175 {dimension_numbers = #tpu.dot_dimension_numbers<[1], [1], [0], [0], [0, 0, 1, 0], [], []>} : vector<16x32xbf16>, vector<32x32xbf16>, vector<16x32xf32> -> vector<16x32xf32>
    %cst_176 = arith.constant 5.000000e-01 : f32
    %358 = vector.broadcast %cst_176 : f32 to vector<16x32xf32>
    %359 = arith.mulf %357, %358 : vector<16x32xf32>
    %cst_177 = arith.constant dense<0xFF800000> : vector<16xf32>
    %360 = vector.multi_reduction <maximumf>, %359, %cst_177 [1] : vector<16x32xf32> to vector<16xf32>
    %361 = vector.shape_cast %360 : vector<16xf32> to vector<16x1xf32>
    %362 = vector.broadcast %361 : vector<16x1xf32> to vector<16x32xf32>
    %363 = arith.subf %359, %362 : vector<16x32xf32>
    %364 = math.exp %363 : vector<16x32xf32>
    %c0_178 = arith.constant 0 : index
    %c0_179 = arith.constant 0 : index
    %365 = vector.load %arg20[%c0_178, %c0_179] : memref<32x32xf32, #tpu.memory_space<vmem>>, vector<32x32xf32>
    %cst_180 = arith.constant dense<0.000000e+00> : vector<16x32xf32>
    %366 = tpu.matmul %364, %365, %cst_180 {dimension_numbers = #tpu.dot_dimension_numbers<[1], [0], [0], [1], [0, 0, 1, 1], [], []>} : vector<16x32xf32>, vector<32x32xf32>, vector<16x32xf32> -> vector<16x32xf32>
    %cst_181 = arith.constant 1.000000e-30 : f32
    %367 = vector.broadcast %cst_181 : f32 to vector<16x32xf32>
    %368 = arith.maximumf %366, %367 : vector<16x32xf32>
    %cst_182 = arith.constant 1.000000e+00 : f32
    %369 = vector.broadcast %cst_182 : f32 to vector<16x32xf32>
    %370 = arith.divf %369, %368 : vector<16x32xf32>
    %371 = arith.mulf %364, %370 : vector<16x32xf32>
    %cst_183 = arith.constant dense<0.000000e+00> : vector<16x4xf32>
    %372 = tpu.matmul %371, %182, %cst_183 {dimension_numbers = #tpu.dot_dimension_numbers<[1], [1], [0], [0], [0, 0, 1, 0], [], []>} : vector<16x32xf32>, vector<4x32xf32>, vector<16x4xf32> -> vector<16x4xf32>
    %cst_184 = arith.constant 1.250000e-01 : f32
    %373 = vector.broadcast %cst_184 : f32 to vector<16x4xf32>
    %374 = arith.mulf %372, %373 : vector<16x4xf32>
    %375 = arith.truncf %130 : vector<4x32xf32> to vector<4x32xbf16>
    %376 = arith.truncf %138 : vector<32x32xf32> to vector<32x32xbf16>
    %cst_185 = arith.constant dense<0.000000e+00> : vector<4x32xf32>
    %377 = tpu.matmul %375, %376, %cst_185 {dimension_numbers = #tpu.dot_dimension_numbers<[1], [1], [0], [0], [0, 0, 1, 0], [], []>} : vector<4x32xbf16>, vector<32x32xbf16>, vector<4x32xf32> -> vector<4x32xf32>
    %cst_186 = arith.constant 5.000000e-01 : f32
    %378 = vector.broadcast %cst_186 : f32 to vector<4x32xf32>
    %379 = arith.mulf %377, %378 : vector<4x32xf32>
    %cst_187 = arith.constant dense<0xFF800000> : vector<4xf32>
    %380 = vector.multi_reduction <maximumf>, %379, %cst_187 [1] : vector<4x32xf32> to vector<4xf32>
    %381 = vector.shape_cast %380 : vector<4xf32> to vector<4x1xf32>
    %382 = vector.broadcast %381 : vector<4x1xf32> to vector<4x32xf32>
    %383 = arith.subf %379, %382 : vector<4x32xf32>
    %384 = math.exp %383 : vector<4x32xf32>
    %c0_188 = arith.constant 0 : index
    %c0_189 = arith.constant 0 : index
    %385 = vector.load %arg24[%c0_188, %c0_189] : memref<32x32xf32, #tpu.memory_space<vmem>>, vector<32x32xf32>
    %cst_190 = arith.constant dense<0.000000e+00> : vector<4x32xf32>
    %386 = tpu.matmul %384, %385, %cst_190 {dimension_numbers = #tpu.dot_dimension_numbers<[1], [0], [0], [1], [0, 0, 1, 1], [], []>} : vector<4x32xf32>, vector<32x32xf32>, vector<4x32xf32> -> vector<4x32xf32>
    %cst_191 = arith.constant 1.000000e-30 : f32
    %387 = vector.broadcast %cst_191 : f32 to vector<4x32xf32>
    %388 = arith.maximumf %386, %387 : vector<4x32xf32>
    %cst_192 = arith.constant 1.000000e+00 : f32
    %389 = vector.broadcast %cst_192 : f32 to vector<4x32xf32>
    %390 = arith.divf %389, %388 : vector<4x32xf32>
    %391 = arith.mulf %384, %390 : vector<4x32xf32>
    %cst_193 = arith.constant dense<0.000000e+00> : vector<4x4xf32>
    %392 = tpu.matmul %391, %183, %cst_193 {dimension_numbers = #tpu.dot_dimension_numbers<[1], [1], [0], [0], [0, 0, 1, 0], [], []>} : vector<4x32xf32>, vector<4x32xf32>, vector<4x4xf32> -> vector<4x4xf32>
    %cst_194 = arith.constant 1.250000e-01 : f32
    %393 = vector.broadcast %cst_194 : f32 to vector<4x4xf32>
    %394 = arith.mulf %392, %393 : vector<4x4xf32>
    %cst_195 = arith.constant dense<0.000000e+00> : vector<16x64xf32>
    %395 = tpu.matmul %374, %334, %cst_195 {dimension_numbers = #tpu.dot_dimension_numbers<[1], [0], [0], [1], [0, 0, 1, 1], [], []>} : vector<16x4xf32>, vector<4x64xf32>, vector<16x64xf32> -> vector<16x64xf32>
    %cst_196 = arith.constant dense<0.000000e+00> : vector<4x64xf32>
    %396 = tpu.matmul %394, %345, %cst_196 {dimension_numbers = #tpu.dot_dimension_numbers<[1], [0], [0], [1], [0, 0, 1, 1], [], []>} : vector<4x4xf32>, vector<4x64xf32>, vector<4x64xf32> -> vector<4x64xf32>
    %cst_197 = arith.constant dense<0.000000e+00> : vector<16x64xf32>
    %397 = tpu.matmul %374, %396, %cst_197 {dimension_numbers = #tpu.dot_dimension_numbers<[1], [0], [0], [1], [0, 0, 1, 1], [], []>} : vector<16x4xf32>, vector<4x64xf32>, vector<16x64xf32> -> vector<16x64xf32>
    %c0_198 = arith.constant 0 : index
    %c0_199 = arith.constant 0 : index
    %398 = vector.load %arg47[%c0_198, %c0_199] : memref<64x32xbf16, #tpu.memory_space<vmem>>, vector<64x32xbf16>
    %c0_200 = arith.constant 0 : index
    %c0_201 = arith.constant 0 : index
    %399 = vector.load %arg48[%c0_200, %c0_201] : memref<1x32xf32, #tpu.memory_space<vmem>>, vector<1x32xf32>
    %400 = arith.truncf %354 : vector<16x64xf32> to vector<16x64xbf16>
    %cst_202 = arith.constant dense<0.000000e+00> : vector<16x32xf32>
    %401 = tpu.matmul %400, %398, %cst_202 {dimension_numbers = #tpu.dot_dimension_numbers<[1], [0], [0], [1], [0, 0, 1, 1], [], []>} : vector<16x64xbf16>, vector<64x32xbf16>, vector<16x32xf32> -> vector<16x32xf32>
    %402 = vector.broadcast %399 : vector<1x32xf32> to vector<16x32xf32>
    %403 = arith.addf %401, %402 : vector<16x32xf32>
    %cst_203 = arith.constant 0.000000e+00 : f32
    %404 = vector.broadcast %cst_203 : f32 to vector<16x32xf32>
    %405 = arith.cmpf oge, %403, %404 : vector<16x32xf32>
    %cst_204 = arith.constant 0.00999999977 : f32
    %406 = vector.broadcast %cst_204 : f32 to vector<16x32xf32>
    %407 = arith.mulf %406, %403 : vector<16x32xf32>
    %408 = arith.select %405, %403, %407 : vector<16x32xi1>, vector<16x32xf32>
    %409 = arith.truncf %395 : vector<16x64xf32> to vector<16x64xbf16>
    %cst_205 = arith.constant dense<0.000000e+00> : vector<16x32xf32>
    %410 = tpu.matmul %409, %398, %cst_205 {dimension_numbers = #tpu.dot_dimension_numbers<[1], [0], [0], [1], [0, 0, 1, 1], [], []>} : vector<16x64xbf16>, vector<64x32xbf16>, vector<16x32xf32> -> vector<16x32xf32>
    %411 = vector.broadcast %399 : vector<1x32xf32> to vector<16x32xf32>
    %412 = arith.addf %410, %411 : vector<16x32xf32>
    %cst_206 = arith.constant 0.000000e+00 : f32
    %413 = vector.broadcast %cst_206 : f32 to vector<16x32xf32>
    %414 = arith.cmpf oge, %412, %413 : vector<16x32xf32>
    %cst_207 = arith.constant 0.00999999977 : f32
    %415 = vector.broadcast %cst_207 : f32 to vector<16x32xf32>
    %416 = arith.mulf %415, %412 : vector<16x32xf32>
    %417 = arith.select %414, %412, %416 : vector<16x32xi1>, vector<16x32xf32>
    %418 = arith.truncf %397 : vector<16x64xf32> to vector<16x64xbf16>
    %cst_208 = arith.constant dense<0.000000e+00> : vector<16x32xf32>
    %419 = tpu.matmul %418, %398, %cst_208 {dimension_numbers = #tpu.dot_dimension_numbers<[1], [0], [0], [1], [0, 0, 1, 1], [], []>} : vector<16x64xbf16>, vector<64x32xbf16>, vector<16x32xf32> -> vector<16x32xf32>
    %420 = vector.broadcast %399 : vector<1x32xf32> to vector<16x32xf32>
    %421 = arith.addf %419, %420 : vector<16x32xf32>
    %cst_209 = arith.constant 0.000000e+00 : f32
    %422 = vector.broadcast %cst_209 : f32 to vector<16x32xf32>
    %423 = arith.cmpf oge, %421, %422 : vector<16x32xf32>
    %cst_210 = arith.constant 0.00999999977 : f32
    %424 = vector.broadcast %cst_210 : f32 to vector<16x32xf32>
    %425 = arith.mulf %424, %421 : vector<16x32xf32>
    %426 = arith.select %423, %421, %425 : vector<16x32xi1>, vector<16x32xf32>
    %c0_211 = arith.constant 0 : index
    %c0_212 = arith.constant 0 : index
    %427 = vector.load %arg49[%c0_211, %c0_212] : memref<32x32xbf16, #tpu.memory_space<vmem>>, vector<32x32xbf16>
    %428 = arith.truncf %408 : vector<16x32xf32> to vector<16x32xbf16>
    %cst_213 = arith.constant dense<0.000000e+00> : vector<16x32xf32>
    %429 = tpu.matmul %428, %427, %cst_213 {dimension_numbers = #tpu.dot_dimension_numbers<[1], [0], [0], [1], [0, 0, 1, 1], [], []>} : vector<16x32xbf16>, vector<32x32xbf16>, vector<16x32xf32> -> vector<16x32xf32>
    %c0_214 = arith.constant 0 : index
    %c0_215 = arith.constant 0 : index
    %430 = vector.load %arg50[%c0_214, %c0_215] : memref<32x32xbf16, #tpu.memory_space<vmem>>, vector<32x32xbf16>
    %431 = arith.truncf %417 : vector<16x32xf32> to vector<16x32xbf16>
    %cst_216 = arith.constant dense<0.000000e+00> : vector<16x32xf32>
    %432 = tpu.matmul %431, %430, %cst_216 {dimension_numbers = #tpu.dot_dimension_numbers<[1], [0], [0], [1], [0, 0, 1, 1], [], []>} : vector<16x32xbf16>, vector<32x32xbf16>, vector<16x32xf32> -> vector<16x32xf32>
    %433 = arith.addf %429, %432 : vector<16x32xf32>
    %c0_217 = arith.constant 0 : index
    %c0_218 = arith.constant 0 : index
    %434 = vector.load %arg51[%c0_217, %c0_218] : memref<32x32xbf16, #tpu.memory_space<vmem>>, vector<32x32xbf16>
    %435 = arith.truncf %426 : vector<16x32xf32> to vector<16x32xbf16>
    %cst_219 = arith.constant dense<0.000000e+00> : vector<16x32xf32>
    %436 = tpu.matmul %435, %434, %cst_219 {dimension_numbers = #tpu.dot_dimension_numbers<[1], [0], [0], [1], [0, 0, 1, 1], [], []>} : vector<16x32xbf16>, vector<32x32xbf16>, vector<16x32xf32> -> vector<16x32xf32>
    %437 = arith.addf %433, %436 : vector<16x32xf32>
    %c0_220 = arith.constant 0 : index
    %c0_221 = arith.constant 0 : index
    %438 = vector.load %arg52[%c0_220, %c0_221] : memref<1x32xf32, #tpu.memory_space<vmem>>, vector<1x32xf32>
    %439 = vector.broadcast %438 : vector<1x32xf32> to vector<16x32xf32>
    %440 = arith.addf %437, %439 : vector<16x32xf32>
    %cst_222 = arith.constant 0.000000e+00 : f32
    %441 = vector.broadcast %cst_222 : f32 to vector<16x32xf32>
    %442 = arith.cmpf oge, %440, %441 : vector<16x32xf32>
    %cst_223 = arith.constant 0.00999999977 : f32
    %443 = vector.broadcast %cst_223 : f32 to vector<16x32xf32>
    %444 = arith.mulf %443, %440 : vector<16x32xf32>
    %445 = arith.select %442, %440, %444 : vector<16x32xi1>, vector<16x32xf32>
    %c0_224 = arith.constant 0 : index
    %c0_225 = arith.constant 0 : index
    %446 = vector.load %arg9[%c0_224, %c0_225] : memref<16x32xf32, #tpu.memory_space<vmem>>, vector<16x32xf32>
    %447 = vector.broadcast %0 : f32 to vector<16x32xf32>
    %448 = arith.mulf %447, %446 : vector<16x32xf32>
    %cst_226 = arith.constant 1.000000e+00 : f32
    %449 = arith.subf %cst_226, %0 : f32
    %450 = vector.broadcast %449 : f32 to vector<16x32xf32>
    %451 = arith.mulf %450, %445 : vector<16x32xf32>
    %452 = arith.addf %448, %451 : vector<16x32xf32>
    %c0_227 = arith.constant 0 : index
    %c0_228 = arith.constant 0 : index
    %453 = vector.load %arg53[%c0_227, %c0_228] : memref<16x32xf32, #tpu.memory_space<vmem>>, vector<16x32xf32>
    tpu.vector_store %arg53[%c0_227, %c0_228], %452 {strides = array<i32>} : memref<16x32xf32, #tpu.memory_space<vmem>>, vector<16x32xf32>,
    return
  }
}

</mosaic_0001>

<llo_original>
// kernel: tpu_custom_call.1
$region0: #{tpu_custom_call.1}
  #allocation0 [shape = 'u32[]', space=smem, size = 0x4, offset = 0x4, fixed_abs, tag = 'smem constant byte address 0x4 - core index']
  #allocation1 [shape = 'u32[72,128]{1,0:T(1,128)}', space=vmem, size = 0x9000, scoped, tag = 'internal scratch']
  #allocation2 [shape = 'f32[1,1]{1,0:T(1,128)S(1)}', space=vmem, size = 0x200, scoped, tag = 'scoped memory for tpu_custom_call.1']
  #allocation3 [shape = 'f32[1,1]{1,0:T(1,128)S(1)}', space=vmem, size = 0x200, scoped, tag = 'scoped memory for tpu_custom_call.1']
  %s0 = inlined_call_operand.smem [shape: u32[54], index: -1, kind: input, shape index: {}]
  %s1 = sld [smem:[%s0]]
  %s2 = scalar_lea.smem %s0, 1
  %s3 = sld [smem:[%s2]]
  %s4 = scalar_lea.smem %s0, 2
  %s5 = sld [smem:[%s4]]
  %s6 = scalar_lea.smem %s0, 3
  %s7 = sld [smem:[%s6]]
  %s8 = scalar_lea.smem %s0, 4
  %s9 = sld [smem:[%s8]]
  %s10 = scalar_lea.smem %s0, 5
  %s11 = sld [smem:[%s10]]
  %s12 = scalar_lea.smem %s0, 6
  %s13 = sld [smem:[%s12]]
  %s14 = scalar_lea.smem %s0, 7
  %s15 = sld [smem:[%s14]]
  %s16 = scalar_lea.smem %s0, 8
  %s17 = sld [smem:[%s16]]
  %s18 = scalar_lea.smem %s0, 9
  %s19 = sld [smem:[%s18]]
  %s20 = scalar_lea.smem %s0, 10
  %s21 = sld [smem:[%s20]]
  %s22 = scalar_lea.smem %s0, 11
  %s23 = sld [smem:[%s22]]
  %s24 = scalar_lea.smem %s0, 12
  %s25 = sld [smem:[%s24]]
  %s26 = scalar_lea.smem %s0, 13
  %s27 = sld [smem:[%s26]]
  %s28 = scalar_lea.smem %s0, 14
  %s29 = sld [smem:[%s28]]
  %s30 = scalar_lea.smem %s0, 15
  %s31 = sld [smem:[%s30]]
  %s32 = scalar_lea.smem %s0, 16
  %s33 = sld [smem:[%s32]]
  %s34 = scalar_lea.smem %s0, 17
  %s35 = sld [smem:[%s34]]
  %s36 = scalar_lea.smem %s0, 18
  %s37 = sld [smem:[%s36]]
  %s38 = scalar_lea.smem %s0, 19
  %s39 = sld [smem:[%s38]]
  %s40 = scalar_lea.smem %s0, 20
  %s41 = sld [smem:[%s40]]
  %s42 = scalar_lea.smem %s0, 21
  %s43 = sld [smem:[%s42]]
  %s44 = scalar_lea.smem %s0, 22
  %s45 = sld [smem:[%s44]]
  %s46 = scalar_lea.smem %s0, 23
  %s47 = sld [smem:[%s46]]
  %s48 = scalar_lea.smem %s0, 24
  %s49 = sld [smem:[%s48]]
  %s50 = scalar_lea.smem %s0, 25
  %s51 = sld [smem:[%s50]]
  %s52 = scalar_lea.smem %s0, 26
  %s53 = sld [smem:[%s52]]
  %s54 = scalar_lea.smem %s0, 27
  %s55 = sld [smem:[%s54]]
  %s56 = scalar_lea.smem %s0, 28
  %s57 = sld [smem:[%s56]]
  %s58 = scalar_lea.smem %s0, 29
  %s59 = sld [smem:[%s58]]
  %s60 = scalar_lea.smem %s0, 30
  %s61 = sld [smem:[%s60]]
  %s62 = scalar_lea.smem %s0, 31
  %s63 = sld [smem:[%s62]]
  %s64 = scalar_lea.smem %s0, 32
  %s65 = sld [smem:[%s64]]
  %s66 = scalar_lea.smem %s0, 33
  %s67 = sld [smem:[%s66]]
  %s68 = scalar_lea.smem %s0, 34
  %s69 = sld [smem:[%s68]]
  %s70 = scalar_lea.smem %s0, 35
  %s71 = sld [smem:[%s70]]
  %s72 = scalar_lea.smem %s0, 36
  %s73 = sld [smem:[%s72]]
  %s74 = scalar_lea.smem %s0, 37
  %s75 = sld [smem:[%s74]]
  %s76 = scalar_lea.smem %s0, 38
  %s77 = sld [smem:[%s76]]
  %s78 = scalar_lea.smem %s0, 39
  %s79 = sld [smem:[%s78]]
  %s80 = scalar_lea.smem %s0, 40
  %s81 = sld [smem:[%s80]]
  %s82 = scalar_lea.smem %s0, 41
  %s83 = sld [smem:[%s82]]
  %s84 = scalar_lea.smem %s0, 42
  %s85 = sld [smem:[%s84]]
  %s86 = scalar_lea.smem %s0, 43
  %s87 = sld [smem:[%s86]]
  %s88 = scalar_lea.smem %s0, 44
  %s89 = sld [smem:[%s88]]
  %s90 = scalar_lea.smem %s0, 45
  %s91 = sld [smem:[%s90]]
  %s92 = scalar_lea.smem %s0, 46
  %s93 = sld [smem:[%s92]]
  %s94 = scalar_lea.smem %s0, 47
  %s95 = sld [smem:[%s94]]
  %s96 = scalar_lea.smem %s0, 48
  %s97 = sld [smem:[%s96]]
  %s98 = scalar_lea.smem %s0, 49
  %s99 = sld [smem:[%s98]]
  %s100 = scalar_lea.smem %s0, 50
  %s101 = sld [smem:[%s100]]
  %s102 = scalar_lea.smem %s0, 51
  %s103 = sld [smem:[%s102]]
  %s104 = scalar_lea.smem %s0, 52
  %s105 = sld [smem:[%s104]]
  %s106 = scalar_lea.smem %s0, 53
  %s107 = sld [smem:[%s106]]
  %s108 = sld [smem:[#allocation0]]
  $region258: #{tpu_custom_call.1} parent=0
    _
  %s110 = ssub.s32 1, %s108
  %s111 = scalar_select 0, %s110, %s108
  %v112 = vstv %s89
  %113 = vst [vmem:[#allocation2] sm:$0x1] %v112
  %v114 = vstv %s93
  %115 = vst [vmem:[#allocation3] sm:$0x1] %v114
  $region1: #{tpu_custom_call.1} parent=0
    #allocation4 [shape = 'u8[512]{0}', space=smem, size = 0x200, scoped, tag = 'input window, operand 0, single buffered']
    #allocation5 [shape = 's32[1]{0}', space=sflag, size = 0x4, scoped, tag = 'scoped memory for tpu_custom_call.1']
    #allocation6 [shape = 's32[1]{0}', space=sflag, size = 0x4, scoped, tag = 'scoped memory for tpu_custom_call.1']
    #allocation7 [shape = 's32[1]{0}', space=sflag, size = 0x4, scoped, tag = 'scoped memory for tpu_custom_call.1']
    #allocation8 [shape = 'u8[512]{0}', space=vmem, size = 0x400, scoped, tag = 'input window, operand 32, single buffered']
    #allocation9 [shape = 'u8[512]{0}', space=vmem, size = 0x400, scoped, tag = 'input window, operand 34, single buffered']
    #allocation10 [shape = 's32[1]{0}', space=sflag, size = 0x4, scoped, tag = 'scoped memory for tpu_custom_call.1']
    #allocation11 [shape = 'u8[512]{0}', space=vmem, size = 0x400, scoped, tag = 'input window, operand 36, single buffered']
    #allocation12 [shape = 'u8[512]{0}', space=vmem, size = 0x400, scoped, tag = 'input window, operand 38, single buffered']
    #allocation13 [shape = 's32[1]{0}', space=sflag, size = 0x4, scoped, tag = 'scoped memory for tpu_custom_call.1']
    #allocation14 [shape = 'u8[512]{0}', space=vmem, size = 0x400, scoped, tag = 'input window, operand 40, single buffered']
    #allocation15 [shape = 'u8[512]{0}', space=vmem, size = 0x400, scoped, tag = 'input window, operand 42, single buffered']
    #allocation16 [shape = 's32[1]{0}', space=sflag, size = 0x4, scoped, tag = 'scoped memory for tpu_custom_call.1']
    #allocation17 [shape = 'u8[512]{0}', space=vmem, size = 0x400, scoped, tag = 'input window, operand 48, single buffered']
    #allocation18 [shape = 'u8[512]{0}', space=vmem, size = 0x400, scoped, tag = 'input window, operand 52, single buffered']
    #allocation19 [shape = 's32[1]{0}', space=sflag, size = 0x4, scoped, tag = 'scoped memory for tpu_custom_call.1']
    #allocation20 [shape = 'u8[8192]{0}', space=vmem, size = 0x2000, scoped, tag = 'output window, operand 0, single buffered']
    %116 = vsyncpa [#allocation7], 0
    %117 = vsyncpa [#allocation5], 0
    %118 = vsyncpa [#allocation10], 0
    %119 = vsyncpa [#allocation13], 0
    %120 = vsyncpa [#allocation16], 0
    %121 = vsyncpa [#allocation19], 0
    %122 = vsyncpa [#allocation6], 0
    // Predicated region
    $region2: #{tpu_custom_call.1} parent=1 // pred_check
      _
    $region3: #{tpu_custom_call.1} parent=1 // pred_check_branch
      %124 = sbr.rel (0) target = $region5
    $region4: #{tpu_custom_call.1} parent=1 // pred_region
      %126 = vsyncadd [#allocation7], 0
      %s128 = sshll.u32 %s1, 4
      %s129 = int_to_ptr.vmem [resolvable:$true] %s128
      %131 = dma.vmem_to_smem %s129, 16, [#allocation4], [#allocation7]
    $region5: #{tpu_custom_call.1} parent=1 // pred_fallthru
      _
    // Predicated region
    $region6: #{tpu_custom_call.1} parent=1 // pred_check
      _
    $region7: #{tpu_custom_call.1} parent=1 // pred_check_branch
      %133 = sbr.rel (0) target = $region9
    $region8: #{tpu_custom_call.1} parent=1 // pred_region
      _
    $region9: #{tpu_custom_call.1} parent=1 // pred_fallthru
      _
    // Predicated region
    $region10: #{tpu_custom_call.1} parent=1 // pred_check
      _
    $region11: #{tpu_custom_call.1} parent=1 // pred_check_branch
      %135 = sbr.rel (0) target = $region13
    $region12: #{tpu_custom_call.1} parent=1 // pred_region
      _
    $region13: #{tpu_custom_call.1} parent=1 // pred_fallthru
      _
    // Predicated region
    $region14: #{tpu_custom_call.1} parent=1 // pred_check
      _
    $region15: #{tpu_custom_call.1} parent=1 // pred_check_branch
      %137 = sbr.rel (0) target = $region17
    $region16: #{tpu_custom_call.1} parent=1 // pred_region
      _
    $region17: #{tpu_custom_call.1} parent=1 // pred_fallthru
      _
    // Predicated region
    $region18: #{tpu_custom_call.1} parent=1 // pred_check
      _
    $region19: #{tpu_custom_call.1} parent=1 // pred_check_branch
      %139 = sbr.rel (0) target = $region21
    $region20: #{tpu_custom_call.1} parent=1 // pred_region
      _
    $region21: #{tpu_custom_call.1} parent=1 // pred_fallthru
      _
    // Predicated region
    $region22: #{tpu_custom_call.1} parent=1 // pred_check
      _
    $region23: #{tpu_custom_call.1} parent=1 // pred_check_branch
      %141 = sbr.rel (0) target = $region25
    $region24: #{tpu_custom_call.1} parent=1 // pred_region
      _
    $region25: #{tpu_custom_call.1} parent=1 // pred_fallthru
      _
    // Predicated region
    $region26: #{tpu_custom_call.1} parent=1 // pred_check
      _
    $region27: #{tpu_custom_call.1} parent=1 // pred_check_branch
      %143 = sbr.rel (0) target = $region29
    $region28: #{tpu_custom_call.1} parent=1 // pred_region
      _
    $region29: #{tpu_custom_call.1} parent=1 // pred_fallthru
      _
    // Predicated region
    $region30: #{tpu_custom_call.1} parent=1 // pred_check
      _
    $region31: #{tpu_custom_call.1} parent=1 // pred_check_branch
      %145 = sbr.rel (0) target = $region33
    $region32: #{tpu_custom_call.1} parent=1 // pred_region
      _
    $region33: #{tpu_custom_call.1} parent=1 // pred_fallthru
      _
    // Predicated region
    $region34: #{tpu_custom_call.1} parent=1 // pred_check
      _
    $region35: #{tpu_custom_call.1} parent=1 // pred_check_branch
      %147 = sbr.rel (0) target = $region37
    $region36: #{tpu_custom_call.1} parent=1 // pred_region
      _
    $region37: #{tpu_custom_call.1} parent=1 // pred_fallthru
      _
    // Predicated region
    $region38: #{tpu_custom_call.1} parent=1 // pred_check
      _
    $region39: #{tpu_custom_call.1} parent=1 // pred_check_branch
      %149 = sbr.rel (0) target = $region41
    $region40: #{tpu_custom_call.1} parent=1 // pred_region
      _
    $region41: #{tpu_custom_call.1} parent=1 // pred_fallthru
      _
    // Predicated region
    $region42: #{tpu_custom_call.1} parent=1 // pred_check
      _
    $region43: #{tpu_custom_call.1} parent=1 // pred_check_branch
      %151 = sbr.rel (0) target = $region45
    $region44: #{tpu_custom_call.1} parent=1 // pred_region
      _
    $region45: #{tpu_custom_call.1} parent=1 // pred_fallthru
      _
    // Predicated region
    $region46: #{tpu_custom_call.1} parent=1 // pred_check
      _
    $region47: #{tpu_custom_call.1} parent=1 // pred_check_branch
      %153 = sbr.rel (0) target = $region49
    $region48: #{tpu_custom_call.1} parent=1 // pred_region
      _
    $region49: #{tpu_custom_call.1} parent=1 // pred_fallthru
      _
    // Predicated region
    $region50: #{tpu_custom_call.1} parent=1 // pred_check
      _
    $region51: #{tpu_custom_call.1} parent=1 // pred_check_branch
      %155 = sbr.rel (0) target = $region53
    $region52: #{tpu_custom_call.1} parent=1 // pred_region
      _
    $region53: #{tpu_custom_call.1} parent=1 // pred_fallthru
      _
    // Predicated region
    $region54: #{tpu_custom_call.1} parent=1 // pred_check
      _
    $region55: #{tpu_custom_call.1} parent=1 // pred_check_branch
      %157 = sbr.rel (0) target = $region57
    $region56: #{tpu_custom_call.1} parent=1 // pred_region
      _
    $region57: #{tpu_custom_call.1} parent=1 // pred_fallthru
      _
    // Predicated region
    $region58: #{tpu_custom_call.1} parent=1 // pred_check
      _
    $region59: #{tpu_custom_call.1} parent=1 // pred_check_branch
      %159 = sbr.rel (0) target = $region61
    $region60: #{tpu_custom_call.1} parent=1 // pred_region
      _
    $region61: #{tpu_custom_call.1} parent=1 // pred_fallthru
      _
    // Predicated region
    $region62: #{tpu_custom_call.1} parent=1 // pred_check
      _
    $region63: #{tpu_custom_call.1} parent=1 // pred_check_branch
      %161 = sbr.rel (0) target = $region65
    $region64: #{tpu_custom_call.1} parent=1 // pred_region
      _
    $region65: #{tpu_custom_call.1} parent=1 // pred_fallthru
      _
    // Predicated region
    $region66: #{tpu_custom_call.1} parent=1 // pred_check
      _
    $region67: #{tpu_custom_call.1} parent=1 // pred_check_branch
      %163 = sbr.rel (0) target = $region69
    $region68: #{tpu_custom_call.1} parent=1 // pred_region
      _
    $region69: #{tpu_custom_call.1} parent=1 // pred_fallthru
      _
    // Predicated region
    $region70: #{tpu_custom_call.1} parent=1 // pred_check
      _
    $region71: #{tpu_custom_call.1} parent=1 // pred_check_branch
      %165 = sbr.rel (0) target = $region73
    $region72: #{tpu_custom_call.1} parent=1 // pred_region
      _
    $region73: #{tpu_custom_call.1} parent=1 // pred_fallthru
      _
    // Predicated region
    $region74: #{tpu_custom_call.1} parent=1 // pred_check
      _
    $region75: #{tpu_custom_call.1} parent=1 // pred_check_branch
      %167 = sbr.rel (0) target = $region77
    $region76: #{tpu_custom_call.1} parent=1 // pred_region
      _
    $region77: #{tpu_custom_call.1} parent=1 // pred_fallthru
      _
    // Predicated region
    $region78: #{tpu_custom_call.1} parent=1 // pred_check
      _
    $region79: #{tpu_custom_call.1} parent=1 // pred_check_branch
      %169 = sbr.rel (0) target = $region81
    $region80: #{tpu_custom_call.1} parent=1 // pred_region
      _
    $region81: #{tpu_custom_call.1} parent=1 // pred_fallthru
      _
    // Predicated region
    $region82: #{tpu_custom_call.1} parent=1 // pred_check
      _
    $region83: #{tpu_custom_call.1} parent=1 // pred_check_branch
      %171 = sbr.rel (0) target = $region85
    $region84: #{tpu_custom_call.1} parent=1 // pred_region
      _
    $region85: #{tpu_custom_call.1} parent=1 // pred_fallthru
      _
    // Predicated region
    $region86: #{tpu_custom_call.1} parent=1 // pred_check
      _
    $region87: #{tpu_custom_call.1} parent=1 // pred_check_branch
      %173 = sbr.rel (0) target = $region89
    $region88: #{tpu_custom_call.1} parent=1 // pred_region
      _
    $region89: #{tpu_custom_call.1} parent=1 // pred_fallthru
      _
    // Predicated region
    $region90: #{tpu_custom_call.1} parent=1 // pred_check
      _
    $region91: #{tpu_custom_call.1} parent=1 // pred_check_branch
      %175 = sbr.rel (0) target = $region93
    $region92: #{tpu_custom_call.1} parent=1 // pred_region
      _
    $region93: #{tpu_custom_call.1} parent=1 // pred_fallthru
      _
    // Predicated region
    $region94: #{tpu_custom_call.1} parent=1 // pred_check
      _
    $region95: #{tpu_custom_call.1} parent=1 // pred_check_branch
      %177 = sbr.rel (0) target = $region97
    $region96: #{tpu_custom_call.1} parent=1 // pred_region
      _
    $region97: #{tpu_custom_call.1} parent=1 // pred_fallthru
      _
    // Predicated region
    $region98: #{tpu_custom_call.1} parent=1 // pred_check
      _
    $region99: #{tpu_custom_call.1} parent=1 // pred_check_branch
      %179 = sbr.rel (0) target = $region101
    $region100: #{tpu_custom_call.1} parent=1 // pred_region
      _
    $region101: #{tpu_custom_call.1} parent=1 // pred_fallthru
      _
    // Predicated region
    $region102: #{tpu_custom_call.1} parent=1 // pred_check
      _
    $region103: #{tpu_custom_call.1} parent=1 // pred_check_branch
      %181 = sbr.rel (0) target = $region105
    $region104: #{tpu_custom_call.1} parent=1 // pred_region
      _
    $region105: #{tpu_custom_call.1} parent=1 // pred_fallthru
      _
    // Predicated region
    $region106: #{tpu_custom_call.1} parent=1 // pred_check
      _
    $region107: #{tpu_custom_call.1} parent=1 // pred_check_branch
      %183 = sbr.rel (0) target = $region109
    $region108: #{tpu_custom_call.1} parent=1 // pred_region
      _
    $region109: #{tpu_custom_call.1} parent=1 // pred_fallthru
      _
    // Predicated region
    $region110: #{tpu_custom_call.1} parent=1 // pred_check
      _
    $region111: #{tpu_custom_call.1} parent=1 // pred_check_branch
      %185 = sbr.rel (0) target = $region113
    $region112: #{tpu_custom_call.1} parent=1 // pred_region
      _
    $region113: #{tpu_custom_call.1} parent=1 // pred_fallthru
      _
    // Predicated region
    $region114: #{tpu_custom_call.1} parent=1 // pred_check
      _
    $region115: #{tpu_custom_call.1} parent=1 // pred_check_branch
      %187 = sbr.rel (0) target = $region117
    $region116: #{tpu_custom_call.1} parent=1 // pred_region
      _
    $region117: #{tpu_custom_call.1} parent=1 // pred_fallthru
      _
    // Predicated region
    $region118: #{tpu_custom_call.1} parent=1 // pred_check
      _
    $region119: #{tpu_custom_call.1} parent=1 // pred_check_branch
      %189 = sbr.rel (0) target = $region121
    $region120: #{tpu_custom_call.1} parent=1 // pred_region
      _
    $region121: #{tpu_custom_call.1} parent=1 // pred_fallthru
      _
    // Predicated region
    $region122: #{tpu_custom_call.1} parent=1 // pred_check
      _
    $region123: #{tpu_custom_call.1} parent=1 // pred_check_branch
      %191 = sbr.rel (0) target = $region125
    $region124: #{tpu_custom_call.1} parent=1 // pred_region
      _
    $region125: #{tpu_custom_call.1} parent=1 // pred_fallthru
      _
    // Predicated region
    $region126: #{tpu_custom_call.1} parent=1 // pred_check
      _
    $region127: #{tpu_custom_call.1} parent=1 // pred_check_branch
      %193 = sbr.rel (0) target = $region129
    $region128: #{tpu_custom_call.1} parent=1 // pred_region
      _
    $region129: #{tpu_custom_call.1} parent=1 // pred_fallthru
      _
    // Predicated region
    $region130: #{tpu_custom_call.1} parent=1 // pred_check
      _
    $region131: #{tpu_custom_call.1} parent=1 // pred_check_branch
      %195 = sbr.rel (0) target = $region133
    $region132: #{tpu_custom_call.1} parent=1 // pred_region
      %197 = vsyncadd [#allocation5], 0
      %s199 = sshll.u32 %s65, 4
      %s200 = int_to_ptr.hbm [resolvable:$true] %s199
      %s201 = sshll.u32 [#allocation8], 4
      %s202 = int_to_ptr.vmem [resolvable:$true] %s201
      %204 = dma.hbm_to_vmem [thread:$0]  %s200, 16, %s202, [#allocation5]
    $region133: #{tpu_custom_call.1} parent=1 // pred_fallthru
      _
    // Predicated region
    $region134: #{tpu_custom_call.1} parent=1 // pred_check
      _
    $region135: #{tpu_custom_call.1} parent=1 // pred_check_branch
      %206 = sbr.rel (0) target = $region137
    $region136: #{tpu_custom_call.1} parent=1 // pred_region
      _
    $region137: #{tpu_custom_call.1} parent=1 // pred_fallthru
      _
    // Predicated region
    $region138: #{tpu_custom_call.1} parent=1 // pred_check
      _
    $region139: #{tpu_custom_call.1} parent=1 // pred_check_branch
      %208 = sbr.rel (0) target = $region141
    $region140: #{tpu_custom_call.1} parent=1 // pred_region
      %210 = vsyncadd [#allocation10], 0
      %s212 = sshll.u32 %s69, 4
      %s213 = int_to_ptr.hbm [resolvable:$true] %s212
      %s214 = sshll.u32 [#allocation9], 4
      %s215 = int_to_ptr.vmem [resolvable:$true] %s214
      %217 = dma.hbm_to_vmem [thread:$0]  %s213, 16, %s215, [#allocation10]
    $region141: #{tpu_custom_call.1} parent=1 // pred_fallthru
      _
    // Predicated region
    $region142: #{tpu_custom_call.1} parent=1 // pred_check
      _
    $region143: #{tpu_custom_call.1} parent=1 // pred_check_branch
      %219 = sbr.rel (0) target = $region145
    $region144: #{tpu_custom_call.1} parent=1 // pred_region
      _
    $region145: #{tpu_custom_call.1} parent=1 // pred_fallthru
      _
    // Predicated region
    $region146: #{tpu_custom_call.1} parent=1 // pred_check
      _
    $region147: #{tpu_custom_call.1} parent=1 // pred_check_branch
      %221 = sbr.rel (0) target = $region149
    $region148: #{tpu_custom_call.1} parent=1 // pred_region
      %223 = vsyncadd [#allocation10], 0
      %s225 = sshll.u32 %s73, 4
      %s226 = int_to_ptr.hbm [resolvable:$true] %s225
      %s227 = sshll.u32 [#allocation11], 4
      %s228 = int_to_ptr.vmem [resolvable:$true] %s227
      %230 = dma.hbm_to_vmem [thread:$0]  %s226, 16, %s228, [#allocation10]
    $region149: #{tpu_custom_call.1} parent=1 // pred_fallthru
      _
    // Predicated region
    $region150: #{tpu_custom_call.1} parent=1 // pred_check
      _
    $region151: #{tpu_custom_call.1} parent=1 // pred_check_branch
      %232 = sbr.rel (0) target = $region153
    $region152: #{tpu_custom_call.1} parent=1 // pred_region
      _
    $region153: #{tpu_custom_call.1} parent=1 // pred_fallthru
      _
    // Predicated region
    $region154: #{tpu_custom_call.1} parent=1 // pred_check
      _
    $region155: #{tpu_custom_call.1} parent=1 // pred_check_branch
      %234 = sbr.rel (0) target = $region157
    $region156: #{tpu_custom_call.1} parent=1 // pred_region
      %236 = vsyncadd [#allocation13], 0
      %s238 = sshll.u32 %s77, 4
      %s239 = int_to_ptr.hbm [resolvable:$true] %s238
      %s240 = sshll.u32 [#allocation12], 4
      %s241 = int_to_ptr.vmem [resolvable:$true] %s240
      %243 = dma.hbm_to_vmem [thread:$0]  %s239, 16, %s241, [#allocation13]
    $region157: #{tpu_custom_call.1} parent=1 // pred_fallthru
      _
    // Predicated region
    $region158: #{tpu_custom_call.1} parent=1 // pred_check
      _
    $region159: #{tpu_custom_call.1} parent=1 // pred_check_branch
      %245 = sbr.rel (0) target = $region161
    $region160: #{tpu_custom_call.1} parent=1 // pred_region
      _
    $region161: #{tpu_custom_call.1} parent=1 // pred_fallthru
      _
    // Predicated region
    $region162: #{tpu_custom_call.1} parent=1 // pred_check
      _
    $region163: #{tpu_custom_call.1} parent=1 // pred_check_branch
      %247 = sbr.rel (0) target = $region165
    $region164: #{tpu_custom_call.1} parent=1 // pred_region
      %249 = vsyncadd [#allocation13], 0
      %s251 = sshll.u32 %s81, 4
      %s252 = int_to_ptr.hbm [resolvable:$true] %s251
      %s253 = sshll.u32 [#allocation14], 4
      %s254 = int_to_ptr.vmem [resolvable:$true] %s253
      %256 = dma.hbm_to_vmem [thread:$0]  %s252, 16, %s254, [#allocation13]
    $region165: #{tpu_custom_call.1} parent=1 // pred_fallthru
      _
    // Predicated region
    $region166: #{tpu_custom_call.1} parent=1 // pred_check
      _
    $region167: #{tpu_custom_call.1} parent=1 // pred_check_branch
      %258 = sbr.rel (0) target = $region169
    $region168: #{tpu_custom_call.1} parent=1 // pred_region
      _
    $region169: #{tpu_custom_call.1} parent=1 // pred_fallthru
      _
    // Predicated region
    $region170: #{tpu_custom_call.1} parent=1 // pred_check
      _
    $region171: #{tpu_custom_call.1} parent=1 // pred_check_branch
      %260 = sbr.rel (0) target = $region173
    $region172: #{tpu_custom_call.1} parent=1 // pred_region
      %262 = vsyncadd [#allocation16], 0
      %s264 = sshll.u32 %s85, 4
      %s265 = int_to_ptr.hbm [resolvable:$true] %s264
      %s266 = sshll.u32 [#allocation15], 4
      %s267 = int_to_ptr.vmem [resolvable:$true] %s266
      %269 = dma.hbm_to_vmem [thread:$0]  %s265, 16, %s267, [#allocation16]
    $region173: #{tpu_custom_call.1} parent=1 // pred_fallthru
      _
    // Predicated region
    $region174: #{tpu_custom_call.1} parent=1 // pred_check
      _
    $region175: #{tpu_custom_call.1} parent=1 // pred_check_branch
      %271 = sbr.rel (0) target = $region177
    $region176: #{tpu_custom_call.1} parent=1 // pred_region
      _
    $region177: #{tpu_custom_call.1} parent=1 // pred_fallthru
      _
    // Predicated region
    $region178: #{tpu_custom_call.1} parent=1 // pred_check
      _
    $region179: #{tpu_custom_call.1} parent=1 // pred_check_branch
      %273 = sbr.rel (0) target = $region181
    $region180: #{tpu_custom_call.1} parent=1 // pred_region
      _
    $region181: #{tpu_custom_call.1} parent=1 // pred_fallthru
      _
    // Predicated region
    $region182: #{tpu_custom_call.1} parent=1 // pred_check
      _
    $region183: #{tpu_custom_call.1} parent=1 // pred_check_branch
      %275 = sbr.rel (0) target = $region185
    $region184: #{tpu_custom_call.1} parent=1 // pred_region
      _
    $region185: #{tpu_custom_call.1} parent=1 // pred_fallthru
      _
    // Predicated region
    $region186: #{tpu_custom_call.1} parent=1 // pred_check
      _
    $region187: #{tpu_custom_call.1} parent=1 // pred_check_branch
      %277 = sbr.rel (0) target = $region189
    $region188: #{tpu_custom_call.1} parent=1 // pred_region
      _
    $region189: #{tpu_custom_call.1} parent=1 // pred_fallthru
      _
    // Predicated region
    $region190: #{tpu_custom_call.1} parent=1 // pred_check
      _
    $region191: #{tpu_custom_call.1} parent=1 // pred_check_branch
      %279 = sbr.rel (0) target = $region193
    $region192: #{tpu_custom_call.1} parent=1 // pred_region
      _
    $region193: #{tpu_custom_call.1} parent=1 // pred_fallthru
      _
    // Predicated region
    $region194: #{tpu_custom_call.1} parent=1 // pred_check
      _
    $region195: #{tpu_custom_call.1} parent=1 // pred_check_branch
      %281 = sbr.rel (0) target = $region197
    $region196: #{tpu_custom_call.1} parent=1 // pred_region
      %283 = vsyncadd [#allocation16], 0
      %s285 = sshll.u32 %s97, 4
      %s286 = int_to_ptr.hbm [resolvable:$true] %s285
      %s287 = sshll.u32 [#allocation17], 4
      %s288 = int_to_ptr.vmem [resolvable:$true] %s287
      %290 = dma.hbm_to_vmem [thread:$0]  %s286, 16, %s288, [#allocation16]
    $region197: #{tpu_custom_call.1} parent=1 // pred_fallthru
      _
    // Predicated region
    $region198: #{tpu_custom_call.1} parent=1 // pred_check
      _
    $region199: #{tpu_custom_call.1} parent=1 // pred_check_branch
      %292 = sbr.rel (0) target = $region201
    $region200: #{tpu_custom_call.1} parent=1 // pred_region
      _
    $region201: #{tpu_custom_call.1} parent=1 // pred_fallthru
      _
    // Predicated region
    $region202: #{tpu_custom_call.1} parent=1 // pred_check
      _
    $region203: #{tpu_custom_call.1} parent=1 // pred_check_branch
      %294 = sbr.rel (0) target = $region205
    $region204: #{tpu_custom_call.1} parent=1 // pred_region
      _
    $region205: #{tpu_custom_call.1} parent=1 // pred_fallthru
      _
    // Predicated region
    $region206: #{tpu_custom_call.1} parent=1 // pred_check
      _
    $region207: #{tpu_custom_call.1} parent=1 // pred_check_branch
      %296 = sbr.rel (0) target = $region209
    $region208: #{tpu_custom_call.1} parent=1 // pred_region
      _
    $region209: #{tpu_custom_call.1} parent=1 // pred_fallthru
      _
    // Predicated region
    $region210: #{tpu_custom_call.1} parent=1 // pred_check
      _
    $region211: #{tpu_custom_call.1} parent=1 // pred_check_branch
      %298 = sbr.rel (0) target = $region213
    $region212: #{tpu_custom_call.1} parent=1 // pred_region
      %300 = vsyncadd [#allocation19], 0
      %s302 = sshll.u32 %s105, 4
      %s303 = int_to_ptr.hbm [resolvable:$true] %s302
      %s304 = sshll.u32 [#allocation18], 4
      %s305 = int_to_ptr.vmem [resolvable:$true] %s304
      %307 = dma.hbm_to_vmem [thread:$0]  %s303, 16, %s305, [#allocation19]
    $region213: #{tpu_custom_call.1} parent=1 // pred_fallthru
      _
    // Predicated region
    $region214: #{tpu_custom_call.1} parent=1 // pred_check
      _
    $region215: #{tpu_custom_call.1} parent=1 // pred_check_branch
      %309 = sbr.rel (0) target = $region217
    $region216: #{tpu_custom_call.1} parent=1 // pred_region
      %311 = dma.done [#allocation7], 16
    $region217: #{tpu_custom_call.1} parent=1 // pred_fallthru
      _
    // Predicated region
    $region218: #{tpu_custom_call.1} parent=1 // pred_check
      _
    $region219: #{tpu_custom_call.1} parent=1 // pred_check_branch
      %313 = sbr.rel (0) target = $region221
    $region220: #{tpu_custom_call.1} parent=1 // pred_region
      %315 = dma.done [#allocation5], 16
    $region221: #{tpu_custom_call.1} parent=1 // pred_fallthru
      _
    // Predicated region
    $region222: #{tpu_custom_call.1} parent=1 // pred_check
      _
    $region223: #{tpu_custom_call.1} parent=1 // pred_check_branch
      %317 = sbr.rel (0) target = $region225
    $region224: #{tpu_custom_call.1} parent=1 // pred_region
      %319 = dma.done [#allocation10], 16
    $region225: #{tpu_custom_call.1} parent=1 // pred_fallthru
      _
    // Predicated region
    $region226: #{tpu_custom_call.1} parent=1 // pred_check
      _
    $region227: #{tpu_custom_call.1} parent=1 // pred_check_branch
      %321 = sbr.rel (0) target = $region229
    $region228: #{tpu_custom_call.1} parent=1 // pred_region
      %323 = dma.done [#allocation10], 16
    $region229: #{tpu_custom_call.1} parent=1 // pred_fallthru
      _
    // Predicated region
    $region230: #{tpu_custom_call.1} parent=1 // pred_check
      _
    $region231: #{tpu_custom_call.1} parent=1 // pred_check_branch
      %325 = sbr.rel (0) target = $region233
    $region232: #{tpu_custom_call.1} parent=1 // pred_region
      %327 = dma.done [#allocation13], 16
    $region233: #{tpu_custom_call.1} parent=1 // pred_fallthru
      _
    // Predicated region
    $region234: #{tpu_custom_call.1} parent=1 // pred_check
      _
    $region235: #{tpu_custom_call.1} parent=1 // pred_check_branch
      %329 = sbr.rel (0) target = $region237
    $region236: #{tpu_custom_call.1} parent=1 // pred_region
      %331 = dma.done [#allocation13], 16
    $region237: #{tpu_custom_call.1} parent=1 // pred_fallthru
      _
    // Predicated region
    $region238: #{tpu_custom_call.1} parent=1 // pred_check
      _
    $region239: #{tpu_custom_call.1} parent=1 // pred_check_branch
      %333 = sbr.rel (0) target = $region241
    $region240: #{tpu_custom_call.1} parent=1 // pred_region
      %335 = dma.done [#allocation16], 16
    $region241: #{tpu_custom_call.1} parent=1 // pred_fallthru
      _
    // Predicated region
    $region242: #{tpu_custom_call.1} parent=1 // pred_check
      _
    $region243: #{tpu_custom_call.1} parent=1 // pred_check_branch
      %337 = sbr.rel (0) target = $region245
    $region244: #{tpu_custom_call.1} parent=1 // pred_region
      %339 = dma.done [#allocation16], 16
    $region245: #{tpu_custom_call.1} parent=1 // pred_fallthru
      _
    // Predicated region
    $region246: #{tpu_custom_call.1} parent=1 // pred_check
      _
    $region247: #{tpu_custom_call.1} parent=1 // pred_check_branch
      %341 = sbr.rel (0) target = $region249
    $region248: #{tpu_custom_call.1} parent=1 // pred_region
      %343 = dma.done [#allocation19], 16
    $region249: #{tpu_custom_call.1} parent=1 // pred_fallthru
      _
    %344 = sfence
    %s346 = sld [smem:[#allocation4]]
    %s347 = sld [smem:[#allocation4 + $0x1]]
    %s348 = sld [smem:[#allocation4 + $0x2]]
    %v349 = vld [vmem:[%s21] sm:$0x1]
    %v350 = vld [vmem:[%s3] sm:$0xff]
    %v351 = vld [vmem:[%s3 + $0x8] sm:$0xff]
    %v352 = vld [vmem:[%s5] sm:$0xff]
    %v353 = vld [vmem:[%s5 + $0x8] sm:$0xff]
    %v354 = vld [vmem:[%s23] sm:$0xff]
    %vm355 = vcmask 130048
    %v357 = vsel %vm355, %v354, 0
    %359 = vmatpush.msra.mxu0 0.0
    %360 = vmatpush.msra.mxu0 0.0
    %361 = vmatpush.msra.mxu0 0.0
    %362 = vmatpush.msra.mxu0 0.0
    %363 = vmatpush.msra.mxu0 0.0
    %364 = vmatpush.msra.mxu0 0.0
    %365 = vmatpush.msra.mxu0 0.0
    %366 = vmatpush.msra.mxu0 0.0
    %367 = vmatpush.msra.mxu0 0.0
    %368 = vmatpush.msra.mxu0 0.0
    %369 = vmatpush.msra.mxu0 0.0
    %370 = vmatpush.msra.mxu0 0.0
    %371 = vmatpush.msra.mxu0 0.0
    %372 = vmatpush.msra.mxu0 0.0
    %373 = vmatpush.msra.mxu0 %v351
    %374 = vmatpush.msra.mxu0 %v350
    %375 = vmatmul.f32.gmra.mxu0 %v357
    %v376 = vpop.f32.mrf.mxu0
    %v377 = vadd.f32 0.0, %v376
    %378 = vdwg.mxu0
    %v379 = vld [vmem:[%s29] sm:$0xff]
    %v380 = vsub.f32 0.0, %v379
    %382 = vset.pattern.permute.xlu0 0
    %383 = vperm.xlu0 %382, %v380
    %v384 = vpop.permute.xlu0 %383
    %v387 = vperm.slane %v349, 0
    %v389 = vmul.f32 %v384, %v387
    %v390 = vmul.f32 %v389, 1.442695
    %v391 = vpow.pop %v390
    %v392 = vmul.f32 %v377, %v391
    %v393 = vld [vmem:[%s15] sm:$0xff]
    %v394 = vld [vmem:[%s15 + $0x8] sm:$0xff]
    %395 = vmatpush.msra.mxu0 0.0
    %396 = vmatpush.msra.mxu0 0.0
    %397 = vmatpush.msra.mxu0 0.0
    %398 = vmatpush.msra.mxu0 0.0
    %399 = vmatpush.msra.mxu0 0.0
    %400 = vmatpush.msra.mxu0 0.0
    %401 = vmatpush.msra.mxu0 0.0
    %402 = vmatpush.msra.mxu0 0.0
    %403 = vmatpush.msra.mxu0 0.0
    %404 = vmatpush.msra.mxu0 0.0
    %405 = vmatpush.msra.mxu0 0.0
    %406 = vmatpush.msra.mxu0 0.0
    %407 = vmatpush.msra.mxu0 0.0
    %408 = vmatpush.msra.mxu0 0.0
    %409 = vmatpush.msra.mxu0 %v394
    %410 = vmatpush.msra.mxu0 %v393
    %411 = vmatmul.f32.gmra.mxu0 %v357
    %v412 = vpop.f32.mrf.mxu0
    %v413 = vadd.f32 0.0, %v412
    %414 = vdwg.mxu0
    %v415 = vld [vmem:[%s25] sm:$0xff]
    %v416 = vld [vmem:[%s25 + $0x8] sm:$0xff]
    %v417 = vld [vmem:[%s27] sm:$0x1]
    %v418 = vld [vmem:[%s31] sm:$0xff]
    %v419 = vld [vmem:[%s31 + $0x8] sm:$0xff]
    %vm420 = vcmp.gt.f32.partialorder %v415, 0.0
    %vm421 = vcmp.gt.f32.partialorder %v416, 0.0
    %v423 = vperm.slane %v417, 0
    %v425 = vsel %vm420, %v423, -1e+30
    %v426 = vsel %vm421, %v423, -1e+30
    %vm427 = vcmask 64512
    %v428 = vsel %vm427, %v425, -inf
    %429 = vmax.xlane.f32.xlu0 %v428
    %v430 = vpop.xlane.xlu0 %429
    %v431 = vsel %vm427, %v426, -inf
    %432 = vmax.xlane.f32.xlu0 %v431
    %v433 = vpop.xlane.xlu0 %432
    %v434 = vsub.f32 0.0, %v418
    %v435 = vsub.f32 0.0, %v419
    %v436 = vsub.f32 %v430, %v423
    %v437 = vsub.f32 %v433, %v423
    %439 = vset.pattern.permute.xlu0 0
    %440 = vperm.xlu0 %439, %v434
    %v441 = vpop.permute.xlu0 %440
    %444 = vset.pattern.permute.xlu0 0
    %445 = vperm.xlu0 %444, %v435
    %v446 = vpop.permute.xlu0 %445
    %v448 = vmul.f32 %v441, %v436
    %v449 = vmul.f32 %v446, %v437
    %v450 = vmin.f32 %v448, 0.0
    %v451 = vmin.f32 %v449, 0.0
    %v452 = vmul.f32 %v450, 1.442695
    %v453 = vpow.pop %v452
    %v454 = vmul.f32 %v451, 1.442695
    %v455 = vpow.pop %v454
    %v456 = vsel %vm420, %v453, 0.0
    %v457 = vsel %vm421, %v455, 0.0
    %v458 = vsel %vm427, %v456, 0.0
    %459 = vadd.xlane.f32.xlu0 %v458
    %v460 = vpop.xlane.xlu0 %459
    %v461 = vsel %vm427, %v457, 0.0
    %462 = vadd.xlane.f32.xlu0 %v461
    %v463 = vpop.xlane.xlu0 %462
    %vm464 = vcmp.gt.f32.partialorder %v460, 0.0
    %vm465 = vcmp.gt.f32.partialorder %v463, 0.0
    %v466 = vmax.f32 %v460, 1e-30
    %v467 = vmax.f32 %v463, 1e-30
    %v468 = vrcp.pop %v466
    %v469 = vmul.f32 %v466, %v468
    %v470 = vsub.f32 1.0, %v469
    %v471 = vmul.f32 %v468, %v470
    %v472 = vadd.f32 %v468, %v471
    %vm473 = vweird.f32 %v466
    %vm474 = vweird.f32 %v468
    %vm475 = vmor %vm473, %vm474
    %v476 = vsel %vm475, %v468, %v472
    %v477 = vand.u32 2147483647, %v466
    %vm478 = vcmp.eq.f32.partialorder %v477, 8.507059e+37
    %v479 = vand.u32 %v466, 2147483648
    %v480 = vor.u32 1.1754944e-38, %v479
    %v481 = vsel %vm478, %v480, %v476
    %v482 = vmul.f32 1.0, %v481
    %v483 = vrcp.pop %v467
    %v484 = vmul.f32 %v467, %v483
    %v485 = vsub.f32 1.0, %v484
    %v486 = vmul.f32 %v483, %v485
    %v487 = vadd.f32 %v483, %v486
    %vm488 = vweird.f32 %v467
    %vm489 = vweird.f32 %v483
    %vm490 = vmor %vm488, %vm489
    %v491 = vsel %vm490, %v483, %v487
    %v492 = vand.u32 2147483647, %v467
    %vm493 = vcmp.eq.f32.partialorder %v492, 8.507059e+37
    %v494 = vand.u32 %v467, 2147483648
    %v495 = vor.u32 1.1754944e-38, %v494
    %v496 = vsel %vm493, %v495, %v491
    %v497 = vmul.f32 1.0, %v496
    %v498 = vsel %vm464, %v482, 0.0
    %v499 = vsel %vm465, %v497, 0.0
    %v501 = vsel %vm427, %v456, 0
    %v504 = vsel %vm427, %v457, 0
    %506 = vmatpush.msra.mxu0 0.0
    %507 = vmatpush.msra.mxu0 0.0
    %508 = vmatpush.msra.mxu0 0.0
    %509 = vmatpush.msra.mxu0 0.0
    %510 = vmatpush.msra.mxu0 0.0
    %511 = vmatpush.msra.mxu0 0.0
    %512 = vmatpush.msra.mxu0 0.0
    %513 = vmatpush.msra.mxu0 0.0
    %514 = vmatpush.msra.mxu0 0.0
    %515 = vmatpush.msra.mxu0 0.0
    %516 = vmatpush.msra.mxu0 0.0
    %517 = vmatpush.msra.mxu0 0.0
    %518 = vmatpush.msra.mxu0 0.0
    %519 = vmatpush.msra.mxu0 0.0
    %520 = vmatpush.msra.mxu0 0.0
    %521 = vmatpush.msra.mxu0 %v392
    %522 = vmatmul.f32.gmra.mxu0 %v501
    %v523 = vpop.f32.mrf.mxu0
    %v524 = vadd.f32 0.0, %v523
    %525 = vmatmul.f32.gmra.mxu0 %v504
    %v526 = vpop.f32.mrf.mxu0
    %v527 = vadd.f32 0.0, %v526
    %528 = vdwg.mxu0
    %529 = vmatpush.msra.mxu0 0.0
    %530 = vmatpush.msra.mxu0 0.0
    %531 = vmatpush.msra.mxu0 0.0
    %532 = vmatpush.msra.mxu0 0.0
    %533 = vmatpush.msra.mxu0 0.0
    %534 = vmatpush.msra.mxu0 0.0
    %535 = vmatpush.msra.mxu0 0.0
    %536 = vmatpush.msra.mxu0 0.0
    %537 = vmatpush.msra.mxu0 0.0
    %538 = vmatpush.msra.mxu0 0.0
    %539 = vmatpush.msra.mxu0 0.0
    %540 = vmatpush.msra.mxu0 0.0
    %541 = vmatpush.msra.mxu0 0.0
    %542 = vmatpush.msra.mxu0 0.0
    %543 = vmatpush.msra.mxu0 0.0
    %544 = vmatpush.msra.mxu0 %v413
    %545 = vmatmul.f32.gmra.mxu0 %v501
    %v546 = vpop.f32.mrf.mxu0
    %v547 = vadd.f32 0.0, %v546
    %548 = vmatmul.f32.gmra.mxu0 %v504
    %v549 = vpop.f32.mrf.mxu0
    %v550 = vadd.f32 0.0, %v549
    %551 = vdwg.mxu0
    %v552 = vld [vmem:[%s61] sm:$0xf]
    %v553 = vld [vmem:[%s61 + $0x4] sm:$0xf]
    %v554 = vld [vmem:[%s61 + $0x8] sm:$0xf]
    %v555 = vld [vmem:[%s61 + $0xc] sm:$0xf]
    %v556 = vld [vmem:[%s61 + $0x10] sm:$0xf]
    %v557 = vld [vmem:[%s61 + $0x14] sm:$0xf]
    %v558 = vld [vmem:[%s61 + $0x18] sm:$0xf]
    %v559 = vld [vmem:[%s61 + $0x1c] sm:$0xf]
    %v560 = vpack.c.bf16 %v527, %v524
    %v561 = vld [vmem:[%s63] sm:$0xf]
    %v562 = vpack.c.bf16 %v550, %v547
    %v564 = vsel %vm427, %v562, 0
    %vm566 = vcmask 1043456
    %v568 = vsel %vm566, %v561, 0
    %570 = vmatpush.bf16.msra.mxu0 0
    %571 = vmatpush.bf16.msra.mxu0 0
    %572 = vmatpush.bf16.msra.mxu0 0
    %573 = vmatpush.bf16.msra.mxu0 0
    %574 = vmatpush.bf16.msra.mxu0 0
    %575 = vmatpush.bf16.msra.mxu0 0
    %576 = vmatpush.bf16.msra.mxu0 0
    %577 = vmatpush.bf16.msra.mxu0 %v568
    %578 = vmatmul.bf16.gmra.mxu0 %v564
    %v579 = vpop.f32.mrf.mxu0
    %v580 = vadd.f32 0.0, %v579
    %v581 = vpop.f32.mrf.mxu0
    %v582 = vadd.f32 0.0, %v581
    %583 = vdwg.mxu0
    %v592 = vunpack.c.l.b16 %v552
    %v593 = vunpack.c.l.b16 %v553
    %v594 = vunpack.c.l.b16 %v554
    %v595 = vunpack.c.l.b16 %v555
    %v596 = vunpack.c.l.b16 %v556
    %v597 = vunpack.c.l.b16 %v557
    %v598 = vunpack.c.l.b16 %v558
    %v599 = vunpack.c.l.b16 %v559
    %v600 = vpack.c.b16 %v593, %v592
    %v601 = vpack.c.b16 %v595, %v594
    %v602 = vpack.c.b16 %v597, %v596
    %v603 = vpack.c.b16 %v599, %v598
    %vm608 = vcmask 523264
    %v610 = vsel %vm608, %v560, 0
    %612 = vmatpush.bf16.msra.mxu0 0
    %613 = vmatpush.bf16.msra.mxu0 0
    %614 = vmatpush.bf16.msra.mxu0 0
    %615 = vmatpush.bf16.msra.mxu0 0
    %616 = vmatpush.bf16.msra.mxu0 %v603
    %617 = vmatpush.bf16.msra.mxu0 %v602
    %618 = vmatpush.bf16.msra.mxu0 %v601
    %619 = vmatpush.bf16.msra.mxu0 %v600
    %620 = vmatmul.bf16.gmra.mxu0 %v610
    %v621 = vpop.f32.mrf.mxu0
    %v622 = vadd.f32 %v580, %v621
    %v623 = vpop.f32.mrf.mxu0
    %v624 = vadd.f32 %v582, %v623
    %625 = vdwg.mxu0
    %v626 = vld [vmem:[#allocation8] sm:$0x1]
    %v628 = vperm.slane %v626, 0
    %v630 = vadd.f32 %v622, %v628
    %v631 = vadd.f32 %v624, %v628
    %v632 = vmax.f32 %v630, 0.0
    %v633 = vmax.f32 %v631, 0.0
    %v634 = vld [vmem:[%s67] sm:$0xf]
    %v635 = vld [vmem:[%s67 + $0x4] sm:$0xf]
    %v636 = vld [vmem:[%s67 + $0x8] sm:$0xf]
    %v637 = vld [vmem:[%s67 + $0xc] sm:$0xf]
    %v638 = vld [vmem:[%s67 + $0x10] sm:$0x3]
    %v639 = vpack.c.bf16 %v633, %v632
    %v640 = vld [vmem:[#allocation9] sm:$0x1]
    %v642 = vperm.slane %v640, 0
    %v649 = vunpack.c.l.b16 %v634
    %v650 = vunpack.c.l.b16 %v635
    %v651 = vunpack.c.l.b16 %v636
    %v652 = vunpack.c.l.b16 %v637
    %v653 = vunpack.c.l.b16 %v638
    %v654 = vpack.c.b16 %v650, %v649
    %v655 = vpack.c.b16 %v652, %v651
    %v656 = vpack.c.b16 %v653, %v653
    %vm659 = vcmask 293888
    %v661 = vsel %vm659, %v639, 0
    %vm663 = vcmask 1041408
    %v665 = vsel %vm663, %v656, 0
    %667 = vmatpush.bf16.msra.mxu0 0
    %668 = vmatpush.bf16.msra.mxu0 0
    %669 = vmatpush.bf16.msra.mxu0 0
    %670 = vmatpush.bf16.msra.mxu0 0
    %671 = vmatpush.bf16.msra.mxu0 0
    %672 = vmatpush.bf16.msra.mxu0 %v665
    %673 = vmatpush.bf16.msra.mxu0 %v655
    %674 = vmatpush.bf16.msra.mxu0 %v654
    %675 = vmatmul.bf16.gmra.mxu0 %v661
    %v676 = vpop.f32.mrf.mxu0
    %v677 = vadd.f32 %v642, %v676
    %v678 = vpop.f32.mrf.mxu0
    %v679 = vadd.f32 %v642, %v678
    %680 = vdwg.mxu0
    %v681 = vmul.f32 %v524, %v498
    %v682 = vmul.f32 %v527, %v499
    %v683 = vld [vmem:[%s55] sm:$0xf]
    %v684 = vld [vmem:[%s55 + $0x4] sm:$0xf]
    %v685 = vld [vmem:[%s55 + $0x8] sm:$0xf]
    %v686 = vld [vmem:[%s55 + $0xc] sm:$0xf]
    %v687 = vld [vmem:[%s55 + $0x10] sm:$0xf]
    %v688 = vld [vmem:[%s55 + $0x14] sm:$0xf]
    %v689 = vld [vmem:[%s55 + $0x18] sm:$0xf]
    %v690 = vld [vmem:[%s55 + $0x1c] sm:$0xf]
    %v691 = vpack.c.bf16 %v682, %v681
    %v692 = vmul.f32 %v547, %v498
    %v693 = vmul.f32 %v550, %v499
    %v694 = vld [vmem:[%s57] sm:$0xf]
    %v695 = vpack.c.bf16 %v693, %v692
    %v697 = vsel %vm427, %v695, 0
    %v700 = vsel %vm566, %v694, 0
    %702 = vmatpush.bf16.msra.mxu0 0
    %703 = vmatpush.bf16.msra.mxu0 0
    %704 = vmatpush.bf16.msra.mxu0 0
    %705 = vmatpush.bf16.msra.mxu0 0
    %706 = vmatpush.bf16.msra.mxu0 0
    %707 = vmatpush.bf16.msra.mxu0 0
    %708 = vmatpush.bf16.msra.mxu0 0
    %709 = vmatpush.bf16.msra.mxu0 %v700
    %710 = vmatmul.bf16.gmra.mxu0 %v697
    %v711 = vpop.f32.mrf.mxu0
    %v712 = vadd.f32 0.0, %v711
    %v713 = vpop.f32.mrf.mxu0
    %v714 = vadd.f32 0.0, %v713
    %715 = vdwg.mxu0
    %v724 = vunpack.c.l.b16 %v683
    %v725 = vunpack.c.l.b16 %v684
    %v726 = vunpack.c.l.b16 %v685
    %v727 = vunpack.c.l.b16 %v686
    %v728 = vunpack.c.l.b16 %v687
    %v729 = vunpack.c.l.b16 %v688
    %v730 = vunpack.c.l.b16 %v689
    %v731 = vunpack.c.l.b16 %v690
    %v732 = vpack.c.b16 %v725, %v724
    %v733 = vpack.c.b16 %v727, %v726
    %v734 = vpack.c.b16 %v729, %v728
    %v735 = vpack.c.b16 %v731, %v730
    %v741 = vsel %vm608, %v691, 0
    %743 = vmatpush.bf16.msra.mxu0 0
    %744 = vmatpush.bf16.msra.mxu0 0
    %745 = vmatpush.bf16.msra.mxu0 0
    %746 = vmatpush.bf16.msra.mxu0 0
    %747 = vmatpush.bf16.msra.mxu0 %v735
    %748 = vmatpush.bf16.msra.mxu0 %v734
    %749 = vmatpush.bf16.msra.mxu0 %v733
    %750 = vmatpush.bf16.msra.mxu0 %v732
    %751 = vmatmul.bf16.gmra.mxu0 %v741
    %v752 = vpop.f32.mrf.mxu0
    %v753 = vadd.f32 %v712, %v752
    %v754 = vpop.f32.mrf.mxu0
    %v755 = vadd.f32 %v714, %v754
    %756 = vdwg.mxu0
    %v757 = vstv %s348
    %v758 = vsub.f32 %v757, %v352
    %v759 = vsub.f32 %v757, %v353
    %v760 = vsub.f32 0.0, %v758
    %v761 = vsub.f32 0.0, %v759
    %763 = vset.pattern.permute.xlu0 0
    %764 = vperm.xlu0 %763, %v760
    %v765 = vpop.permute.xlu0 %764
    %768 = vset.pattern.permute.xlu0 0
    %769 = vperm.xlu0 %768, %v761
    %v770 = vpop.permute.xlu0 %769
    %v772 = vmul.f32 %v765, %v387
    %v773 = vmul.f32 %v770, %v387
    %v774 = vmul.f32 %v772, 1.442695
    %v775 = vpow.pop %v774
    %v776 = vmul.f32 %v773, 1.442695
    %v777 = vpow.pop %v776
    %v778 = vmul.f32 %v350, %v775
    %v779 = vmul.f32 %v351, %v777
    %v780 = vld [vmem:[%s17] sm:$0xff]
    %v781 = vld [vmem:[%s17 + $0x8] sm:$0xff]
    %v782 = vld [vmem:[%s87] sm:$0xff]
    %v783 = vld [vmem:[%s87 + $0x8] sm:$0xff]
    %v784 = vld [vmem:[%s87 + $0x10] sm:$0xff]
    %v785 = vld [vmem:[%s87 + $0x18] sm:$0xff]
    %v786 = vld [vmem:[%s87 + $0x20] sm:$0xff]
    %v787 = vld [vmem:[%s87 + $0x28] sm:$0xff]
    %v788 = vld [vmem:[%s87 + $0x30] sm:$0xff]
    %v789 = vld [vmem:[%s87 + $0x38] sm:$0xff]
    %v790 = vld [vmem:[#allocation2] sm:$0x1]
    %v792 = vperm.slane %v790, 0
    %v795 = vsel %vm608, %v778, 0
    %v798 = vsel %vm608, %v779, 0
    %800 = vmatpush.msra.mxu0 0.0
    %801 = vmatpush.msra.mxu0 0.0
    %802 = vmatpush.msra.mxu0 0.0
    %803 = vmatpush.msra.mxu0 0.0
    %804 = vmatpush.msra.mxu0 0.0
    %805 = vmatpush.msra.mxu0 0.0
    %806 = vmatpush.msra.mxu0 0.0
    %807 = vmatpush.msra.mxu0 0.0
    %808 = vmatpush.msra.mxu0 %v789
    %809 = vmatpush.msra.mxu0 %v788
    %810 = vmatpush.msra.mxu0 %v787
    %811 = vmatpush.msra.mxu0 %v786
    %812 = vmatpush.msra.mxu0 %v785
    %813 = vmatpush.msra.mxu0 %v784
    %814 = vmatpush.msra.mxu0 %v783
    %815 = vmatpush.msra.mxu0 %v782
    %816 = vmatmul.f32.gmra.mxu0 %v795
    %v817 = vpop.f32.mrf.mxu0
    %v818 = vadd.f32 %v792, %v817
    %819 = vmatmul.f32.gmra.mxu0 %v798
    %v820 = vpop.f32.mrf.mxu0
    %v821 = vadd.f32 %v792, %v820
    %822 = vdwg.mxu0
    %v823 = vld [vmem:[%s91] sm:$0xff]
    %v824 = vld [vmem:[%s91 + $0x8] sm:$0xff]
    %v825 = vld [vmem:[%s91 + $0x10] sm:$0xff]
    %v826 = vld [vmem:[%s91 + $0x18] sm:$0xff]
    %v827 = vld [vmem:[%s91 + $0x20] sm:$0xff]
    %v828 = vld [vmem:[%s91 + $0x28] sm:$0xff]
    %v829 = vld [vmem:[%s91 + $0x30] sm:$0xff]
    %v830 = vld [vmem:[%s91 + $0x38] sm:$0xff]
    %v831 = vld [vmem:[#allocation3] sm:$0x1]
    %v833 = vperm.slane %v831, 0
    %v836 = vsel %vm608, %v780, 0
    %v839 = vsel %vm608, %v781, 0
    %841 = vmatpush.msra.mxu0 0.0
    %842 = vmatpush.msra.mxu0 0.0
    %843 = vmatpush.msra.mxu0 0.0
    %844 = vmatpush.msra.mxu0 0.0
    %845 = vmatpush.msra.mxu0 0.0
    %846 = vmatpush.msra.mxu0 0.0
    %847 = vmatpush.msra.mxu0 0.0
    %848 = vmatpush.msra.mxu0 0.0
    %849 = vmatpush.msra.mxu0 %v830
    %850 = vmatpush.msra.mxu0 %v829
    %851 = vmatpush.msra.mxu0 %v828
    %852 = vmatpush.msra.mxu0 %v827
    %853 = vmatpush.msra.mxu0 %v826
    %854 = vmatpush.msra.mxu0 %v825
    %855 = vmatpush.msra.mxu0 %v824
    %856 = vmatpush.msra.mxu0 %v823
    %857 = vmatmul.f32.gmra.mxu0 %v836
    %v858 = vpop.f32.mrf.mxu0
    %v859 = vadd.f32 %v833, %v858
    %860 = vmatmul.f32.gmra.mxu0 %v839
    %v861 = vpop.f32.mrf.mxu0
    %v862 = vadd.f32 %v833, %v861
    %863 = vdwg.mxu0
    %v864 = vmax.f32 %v818, %v859
    %v865 = vmax.f32 %v821, %v862
    %v866 = vsub.f32 %v818, %v864
    %v867 = vsub.f32 %v821, %v865
    %v868 = vmul.f32 %v866, 1.442695
    %v869 = vpow.pop %v868
    %v870 = vmul.f32 %v867, 1.442695
    %v871 = vpow.pop %v870
    %v872 = vsub.f32 %v859, %v864
    %v873 = vsub.f32 %v862, %v865
    %v874 = vmul.f32 %v872, 1.442695
    %v875 = vpow.pop %v874
    %v876 = vmul.f32 %v873, 1.442695
    %v877 = vpow.pop %v876
    %v878 = vadd.f32 %v869, %v875
    %v879 = vadd.f32 %v871, %v877
    %v880 = vrcp.pop %v878
    %v881 = vrcp.pop %v879
    %v882 = vmul.f32 %v869, %v880
    %v883 = vmul.f32 %v871, %v881
    %885 = vset.pattern.permute.xlu0 0
    %886 = vperm.xlu0 %885, %v882
    %v887 = vpop.permute.xlu0 %886
    %890 = vset.pattern.permute.xlu0 0
    %891 = vperm.xlu0 %890, %v883
    %v892 = vpop.permute.xlu0 %891
    %v894 = vmul.f32 %v887, %v778
    %v895 = vmul.f32 %v892, %v779
    %v896 = vmul.f32 %v875, %v880
    %v897 = vmul.f32 %v877, %v881
    %899 = vset.pattern.permute.xlu0 0
    %900 = vperm.xlu0 %899, %v896
    %v901 = vpop.permute.xlu0 %900
    %904 = vset.pattern.permute.xlu0 0
    %905 = vperm.xlu0 %904, %v897
    %v906 = vpop.permute.xlu0 %905
    %v908 = vmul.f32 %v901, %v780
    %v909 = vmul.f32 %v906, %v781
    %v910 = vadd.f32 %v894, %v908
    %v911 = vadd.f32 %v895, %v909
    %v912 = vld [vmem:[%s7] sm:$0xf]
    %v913 = vld [vmem:[%s11] sm:$0xf]
    %v914 = vld [vmem:[%s53] sm:$0xf]
    %v915 = vld [vmem:[%s53 + $0x4] sm:$0xf]
    %v916 = vld [vmem:[%s53 + $0x8] sm:$0xf]
    %v917 = vld [vmem:[%s53 + $0xc] sm:$0xf]
    %v918 = vld [vmem:[%s53 + $0x10] sm:$0xf]
    %v919 = vld [vmem:[%s53 + $0x14] sm:$0xf]
    %v920 = vld [vmem:[%s53 + $0x18] sm:$0xf]
    %v921 = vld [vmem:[%s53 + $0x1c] sm:$0xf]
    %v922 = vpack.c.bf16 %v912, %v912
    %v931 = vunpack.c.l.b16 %v914
    %v932 = vunpack.c.l.b16 %v915
    %v933 = vunpack.c.l.b16 %v916
    %v934 = vunpack.c.l.b16 %v917
    %v935 = vunpack.c.l.b16 %v918
    %v936 = vunpack.c.l.b16 %v919
    %v937 = vunpack.c.l.b16 %v920
    %v938 = vunpack.c.l.b16 %v921
    %v939 = vpack.c.b16 %v932, %v931
    %v940 = vpack.c.b16 %v934, %v933
    %v941 = vpack.c.b16 %v936, %v935
    %v942 = vpack.c.b16 %v938, %v937
    %v948 = vsel %vm608, %v922, 0
    %950 = vmatpush.bf16.msra.mxu0 0
    %951 = vmatpush.bf16.msra.mxu0 0
    %952 = vmatpush.bf16.msra.mxu0 0
    %953 = vmatpush.bf16.msra.mxu0 0
    %954 = vmatpush.bf16.msra.mxu0 %v942
    %955 = vmatpush.bf16.msra.mxu0 %v941
    %956 = vmatpush.bf16.msra.mxu0 %v940
    %957 = vmatpush.bf16.msra.mxu0 %v939
    %958 = vmatmul.bf16.gmra.mxu0 %v948
    %v959 = vpop.f32.mrf.mxu0
    %v960 = vadd.f32 0.0, %v959
    %v961 = vpop.f32.mrf.mxu0
    %962 = vdwg.mxu0
    %v963 = vpack.c.bf16 %v911, %v910
    %v965 = vsel %vm608, %v963, 0
    %967 = vmatpush.bf16.msra.mxu0 0
    %968 = vmatpush.bf16.msra.mxu0 0
    %969 = vmatpush.bf16.msra.mxu0 0
    %970 = vmatpush.bf16.msra.mxu0 0
    %971 = vmatpush.bf16.msra.mxu0 %v942
    %972 = vmatpush.bf16.msra.mxu0 %v941
    %973 = vmatpush.bf16.msra.mxu0 %v940
    %974 = vmatpush.bf16.msra.mxu0 %v939
    %975 = vmatmul.bf16.gmra.mxu0 %v965
    %v976 = vpop.f32.mrf.mxu0
    %v977 = vadd.f32 0.0, %v976
    %v978 = vpop.f32.mrf.mxu0
    %v979 = vadd.f32 0.0, %v978
    %980 = vdwg.mxu0
    %v981 = vpack.c.bf16 %v913, %v913
    %v983 = vsel %vm608, %v981, 0
    %985 = vmatpush.bf16.msra.mxu0 0
    %986 = vmatpush.bf16.msra.mxu0 0
    %987 = vmatpush.bf16.msra.mxu0 0
    %988 = vmatpush.bf16.msra.mxu0 0
    %989 = vmatpush.bf16.msra.mxu0 %v942
    %990 = vmatpush.bf16.msra.mxu0 %v941
    %991 = vmatpush.bf16.msra.mxu0 %v940
    %992 = vmatpush.bf16.msra.mxu0 %v939
    %993 = vmatmul.bf16.gmra.mxu0 %v983
    %v994 = vpop.f32.mrf.mxu0
    %v995 = vadd.f32 0.0, %v994
    %v996 = vpop.f32.mrf.mxu0
    %997 = vdwg.mxu0
    %v998 = vld [vmem:[%s39] sm:$0xff]
    %v999 = vld [vmem:[%s39 + $0x8] sm:$0xff]
    %v1000 = vld [vmem:[%s39 + $0x10] sm:$0xff]
    %v1001 = vld [vmem:[%s39 + $0x18] sm:$0xff]
    %v1002 = vld [vmem:[%s47] sm:$0xff]
    %v1003 = vld [vmem:[%s47 + $0x8] sm:$0xff]
    %v1004 = vld [vmem:[%s47 + $0x10] sm:$0xff]
    %v1005 = vld [vmem:[%s47 + $0x18] sm:$0xff]
    %v1006 = vld [vmem:[%s37] sm:$0xff]
    %v1007 = vld [vmem:[%s37 + $0x8] sm:$0xff]
    %v1008 = vld [vmem:[%s37 + $0x10] sm:$0xff]
    %v1009 = vld [vmem:[%s37 + $0x18] sm:$0xff]
    %vm1010 = vcmask 31744
    %v1012 = vsel %vm1010, %v1006, 0
    %v1015 = vsel %vm1010, %v1007, 0
    %v1018 = vsel %vm1010, %v1008, 0
    %v1021 = vsel %vm1010, %v1009, 0
    %v1024 = vsel %vm566, %v960, 0
    %1026 = vmatpush.msra.mxu0 0.0
    %1027 = vmatpush.msra.mxu0 0.0
    %1028 = vmatpush.msra.mxu0 0.0
    %1029 = vmatpush.msra.mxu0 0.0
    %1030 = vmatpush.msra.mxu0 0.0
    %1031 = vmatpush.msra.mxu0 0.0
    %1032 = vmatpush.msra.mxu0 0.0
    %1033 = vmatpush.msra.mxu0 0.0
    %1034 = vmatpush.msra.mxu0 0.0
    %1035 = vmatpush.msra.mxu0 0.0
    %1036 = vmatpush.msra.mxu0 0.0
    %1037 = vmatpush.msra.mxu0 0.0
    %1038 = vmatpush.msra.mxu0 0.0
    %1039 = vmatpush.msra.mxu0 0.0
    %1040 = vmatpush.msra.mxu0 0.0
    %1041 = vmatpush.msra.mxu0 %v1024
    %1042 = vmatmul.f32.gmra.mxu0 %v1012
    %v1043 = vpop.f32.mrf.mxu0
    %v1044 = vadd.f32 0.0, %v1043
    %1045 = vmatmul.f32.gmra.mxu0 %v1015
    %v1046 = vpop.f32.mrf.mxu0
    %v1047 = vadd.f32 0.0, %v1046
    %1048 = vmatmul.f32.gmra.mxu0 %v1018
    %v1049 = vpop.f32.mrf.mxu0
    %v1050 = vadd.f32 0.0, %v1049
    %1051 = vmatmul.f32.gmra.mxu0 %v1021
    %v1052 = vpop.f32.mrf.mxu0
    %v1053 = vadd.f32 0.0, %v1052
    %1054 = vdwg.mxu0
    %v1055 = vmul.f32 %v1044, %v998
    %v1056 = vmul.f32 %v1047, %v999
    %v1057 = vmul.f32 %v1050, %v1000
    %v1058 = vmul.f32 %v1053, %v1001
    %v1059 = vld [vmem:[%s45] sm:$0xff]
    %v1060 = vld [vmem:[%s45 + $0x8] sm:$0xff]
    %v1061 = vld [vmem:[%s45 + $0x10] sm:$0xff]
    %v1062 = vld [vmem:[%s45 + $0x18] sm:$0xff]
    %1064 = vrot.lane.b32.xlu0 %v995, 64
    %v1065 = vpop.permute.xlu0 %1064
    %v1067 = vsel %vm1010, %v1059, 0
    %v1070 = vsel %vm1010, %v1060, 0
    %v1073 = vsel %vm1010, %v1061, 0
    %v1076 = vsel %vm1010, %v1062, 0
    %v1078 = vsel %vm566, %v1065, 0
    %1080 = vmatpush.msra.mxu0 0.0
    %1081 = vmatpush.msra.mxu0 0.0
    %1082 = vmatpush.msra.mxu0 0.0
    %1083 = vmatpush.msra.mxu0 0.0
    %1084 = vmatpush.msra.mxu0 0.0
    %1085 = vmatpush.msra.mxu0 0.0
    %1086 = vmatpush.msra.mxu0 0.0
    %1087 = vmatpush.msra.mxu0 0.0
    %1088 = vmatpush.msra.mxu0 0.0
    %1089 = vmatpush.msra.mxu0 0.0
    %1090 = vmatpush.msra.mxu0 0.0
    %1091 = vmatpush.msra.mxu0 0.0
    %1092 = vmatpush.msra.mxu0 0.0
    %1093 = vmatpush.msra.mxu0 0.0
    %1094 = vmatpush.msra.mxu0 0.0
    %1095 = vmatpush.msra.mxu0 %v1078
    %1096 = vmatmul.f32.gmra.mxu0 %v1067
    %v1097 = vpop.f32.mrf.mxu0
    %v1098 = vadd.f32 0.0, %v1097
    %1099 = vmatmul.f32.gmra.mxu0 %v1070
    %v1100 = vpop.f32.mrf.mxu0
    %v1101 = vadd.f32 0.0, %v1100
    %1102 = vmatmul.f32.gmra.mxu0 %v1073
    %v1103 = vpop.f32.mrf.mxu0
    %v1104 = vadd.f32 0.0, %v1103
    %1105 = vmatmul.f32.gmra.mxu0 %v1076
    %v1106 = vpop.f32.mrf.mxu0
    %v1107 = vadd.f32 0.0, %v1106
    %1108 = vdwg.mxu0
    %v1109 = vmul.f32 %v1098, %v1002
    %v1110 = vmul.f32 %v1101, %v1003
    %v1111 = vmul.f32 %v1104, %v1004
    %v1112 = vmul.f32 %v1107, %v1005
    %v1113 = vld [vmem:[%s33] sm:$0xff]
    %v1114 = vld [vmem:[%s33 + $0x8] sm:$0xff]
    %v1115 = vld [vmem:[%s35] sm:$0xff]
    %v1116 = vsel %vm355, %v1115, 0.0
    %1117 = vadd.xlane.f32.xlu0 %v1116
    %v1118 = vpop.xlane.xlu0 %1117
    %v1119 = vsel %vm427, %v1113, 0.0
    %v1120 = vsel %vm427, %v1114, 0.0
    %v1121 = vadd.f32 %v1119, %v1120
    %v1122 = vrot.slane %v1121, 4
    %v1123 = vadd.f32 %v1121, %v1122
    %v1124 = vrot.slane %v1123, 2
    %v1125 = vadd.f32 %v1123, %v1124
    %v1126 = vrot.slane %v1125, 1
    %v1127 = vadd.f32 %v1125, %v1126
    %1130 = vrot.lane.b32.xlu0 %v977, 96
    %v1131 = vpop.permute.xlu0 %1130
    %1132 = vrot.lane.b32.xlu0 %v979, 96
    %v1133 = vpop.permute.xlu0 %1132
    %v1137 = vsel %vm355, %v1115, 0
    %1139 = vmatpush.msra.mxu0 0.0
    %1140 = vmatpush.msra.mxu0 0.0
    %1141 = vmatpush.msra.mxu0 0.0
    %1142 = vmatpush.msra.mxu0 0.0
    %1143 = vmatpush.msra.mxu0 0.0
    %1144 = vmatpush.msra.mxu0 0.0
    %1145 = vmatpush.msra.mxu0 0.0
    %1146 = vmatpush.msra.mxu0 0.0
    %1147 = vmatpush.msra.mxu0 0.0
    %1148 = vmatpush.msra.mxu0 0.0
    %1149 = vmatpush.msra.mxu0 0.0
    %1150 = vmatpush.msra.mxu0 0.0
    %1151 = vmatpush.msra.mxu0 0.0
    %1152 = vmatpush.msra.mxu0 0.0
    %1153 = vmatpush.msra.mxu0 %v1133
    %1154 = vmatpush.msra.mxu0 %v1131
    %1155 = vmatmul.f32.gmra.mxu0 %v1137
    %v1156 = vpop.f32.mrf.mxu0
    %v1157 = vadd.f32 0.0, %v1156
    %1158 = vdwg.mxu0
    %v1159 = vpack.c.bf16 %v1056, %v1055
    %v1160 = vpack.c.bf16 %v1058, %v1057
    %v1161 = vpack.c.bf16 %v1157, %v1157
    %vm1162 = vcmask 261120
    %v1164 = vsel %vm1162, %v1159, 0
    %v1167 = vsel %vm1162, %v1160, 0
    %v1170 = vsel %vm1162, %v1161, 0
    %1172 = vmatpush.bf16.xpose.msra.mxu0 0
    %1173 = vmatpush.bf16.xpose.msra.mxu0 0
    %1174 = vmatpush.bf16.xpose.msra.mxu0 0
    %1175 = vmatpush.bf16.xpose.msra.mxu0 0
    %1176 = vmatpush.bf16.xpose.msra.mxu0 0
    %1177 = vmatpush.bf16.xpose.msra.mxu0 0
    %1178 = vmatpush.bf16.xpose.msra.mxu0 0
    %1179 = vmatpush.bf16.xpose.msra.mxu0 %v1170
    %1180 = vmatmul.bf16.gmra.mxu0 %v1164
    %v1181 = vpop.f32.mrf.mxu0
    %v1182 = vadd.f32 0.0, %v1181
    %v1183 = vpop.f32.mrf.mxu0
    %v1184 = vadd.f32 0.0, %v1183
    %1185 = vmatmul.bf16.gmra.mxu0 %v1167
    %v1186 = vpop.f32.mrf.mxu0
    %v1187 = vadd.f32 0.0, %v1186
    %v1188 = vpop.f32.mrf.mxu0
    %v1189 = vadd.f32 0.0, %v1188
    %1190 = vdwg.mxu0
    %v1191 = vmul.f32 %v1182, 0.5
    %v1192 = vmul.f32 %v1184, 0.5
    %v1193 = vmul.f32 %v1187, 0.5
    %v1194 = vmul.f32 %v1189, 0.5
    %vm1195 = vcmp.gt.f32.partialorder %v1127, 0.0
    %v1196 = vsel %vm1195, 1, 0
    %vm1197 = vcmp.eq.s32.totalorder %v1196, 1
    %v1198 = vsel %vm1197, %v1191, -1e+30
    %v1199 = vsel %vm1197, %v1192, -1e+30
    %v1200 = vsel %vm1197, %v1193, -1e+30
    %v1201 = vsel %vm1197, %v1194, -1e+30
    %v1202 = vsel %vm427, %v1198, -inf
    %1203 = vmax.xlane.f32.xlu0 %v1202
    %v1204 = vpop.xlane.xlu0 %1203
    %v1205 = vsel %vm427, %v1199, -inf
    %1206 = vmax.xlane.f32.xlu0 %v1205
    %v1207 = vpop.xlane.xlu0 %1206
    %v1208 = vsel %vm427, %v1200, -inf
    %1209 = vmax.xlane.f32.xlu0 %v1208
    %v1210 = vpop.xlane.xlu0 %1209
    %v1211 = vsel %vm427, %v1201, -inf
    %1212 = vmax.xlane.f32.xlu0 %v1211
    %v1213 = vpop.xlane.xlu0 %1212
    %v1214 = vsub.f32 %v1198, %v1204
    %v1215 = vsub.f32 %v1199, %v1207
    %v1216 = vsub.f32 %v1200, %v1210
    %v1217 = vsub.f32 %v1201, %v1213
    %v1218 = vmul.f32 %v1214, 1.442695
    %v1219 = vpow.pop %v1218
    %v1220 = vmul.f32 %v1215, 1.442695
    %v1221 = vpow.pop %v1220
    %v1222 = vmul.f32 %v1216, 1.442695
    %v1223 = vpow.pop %v1222
    %v1224 = vmul.f32 %v1217, 1.442695
    %v1225 = vpow.pop %v1224
    %v1226 = vsel %vm427, %v1219, 0.0
    %1227 = vadd.xlane.f32.xlu0 %v1226
    %v1228 = vpop.xlane.xlu0 %1227
    %v1229 = vsel %vm427, %v1221, 0.0
    %1230 = vadd.xlane.f32.xlu0 %v1229
    %v1231 = vpop.xlane.xlu0 %1230
    %v1232 = vsel %vm427, %v1223, 0.0
    %1233 = vadd.xlane.f32.xlu0 %v1232
    %v1234 = vpop.xlane.xlu0 %1233
    %v1235 = vsel %vm427, %v1225, 0.0
    %1236 = vadd.xlane.f32.xlu0 %v1235
    %v1237 = vpop.xlane.xlu0 %1236
    %v1238 = vrcp.pop %v1228
    %v1239 = vrcp.pop %v1231
    %v1240 = vrcp.pop %v1234
    %v1241 = vrcp.pop %v1237
    %v1242 = vmul.f32 %v1219, %v1238
    %v1243 = vmul.f32 %v1221, %v1239
    %v1244 = vmul.f32 %v1223, %v1240
    %v1245 = vmul.f32 %v1225, %v1241
    %v1246 = vpack.c.bf16 %v1110, %v1109
    %v1247 = vpack.c.bf16 %v1112, %v1111
    %v1248 = vpack.c.bf16 %v960, %v960
    %1250 = vrot.lane.b32.xlu0 %v1248, 32
    %v1251 = vpop.permute.xlu0 %1250
    %v1253 = vsel %vm1162, %v1246, 0
    %v1256 = vsel %vm1162, %v1247, 0
    %v1259 = vsel %vm1162, %v1251, 0
    %1261 = vmatpush.bf16.xpose.msra.mxu0 0
    %1262 = vmatpush.bf16.xpose.msra.mxu0 0
    %1263 = vmatpush.bf16.xpose.msra.mxu0 0
    %1264 = vmatpush.bf16.xpose.msra.mxu0 0
    %1265 = vmatpush.bf16.xpose.msra.mxu0 0
    %1266 = vmatpush.bf16.xpose.msra.mxu0 0
    %1267 = vmatpush.bf16.xpose.msra.mxu0 0
    %1268 = vmatpush.bf16.xpose.msra.mxu0 %v1259
    %1269 = vmatmul.bf16.gmra.mxu0 %v1253
    %v1270 = vpop.f32.mrf.mxu0
    %v1271 = vadd.f32 0.0, %v1270
    %v1272 = vpop.f32.mrf.mxu0
    %v1273 = vadd.f32 0.0, %v1272
    %1274 = vmatmul.bf16.gmra.mxu0 %v1256
    %v1275 = vpop.f32.mrf.mxu0
    %v1276 = vadd.f32 0.0, %v1275
    %v1277 = vpop.f32.mrf.mxu0
    %v1278 = vadd.f32 0.0, %v1277
    %1279 = vdwg.mxu0
    %v1280 = vmul.f32 %v1271, 0.5
    %v1281 = vmul.f32 %v1273, 0.5
    %v1282 = vmul.f32 %v1276, 0.5
    %v1283 = vmul.f32 %v1278, 0.5
    %v1284 = vsel %vm1010, %v1280, -inf
    %1285 = vmax.xlane.f32.xlu0 %v1284
    %v1286 = vpop.xlane.xlu0 %1285
    %v1287 = vsel %vm1010, %v1281, -inf
    %1288 = vmax.xlane.f32.xlu0 %v1287
    %v1289 = vpop.xlane.xlu0 %1288
    %v1290 = vsel %vm1010, %v1282, -inf
    %1291 = vmax.xlane.f32.xlu0 %v1290
    %v1292 = vpop.xlane.xlu0 %1291
    %v1293 = vsel %vm1010, %v1283, -inf
    %1294 = vmax.xlane.f32.xlu0 %v1293
    %v1295 = vpop.xlane.xlu0 %1294
    %v1296 = vsub.f32 %v1280, %v1286
    %v1297 = vsub.f32 %v1281, %v1289
    %v1298 = vsub.f32 %v1282, %v1292
    %v1299 = vsub.f32 %v1283, %v1295
    %v1300 = vmul.f32 %v1296, 1.442695
    %v1301 = vpow.pop %v1300
    %v1302 = vmul.f32 %v1297, 1.442695
    %v1303 = vpow.pop %v1302
    %v1304 = vmul.f32 %v1298, 1.442695
    %v1305 = vpow.pop %v1304
    %v1306 = vmul.f32 %v1299, 1.442695
    %v1307 = vpow.pop %v1306
    %v1308 = vsel %vm1010, %v1301, 0.0
    %1309 = vadd.xlane.f32.xlu0 %v1308
    %v1310 = vpop.xlane.xlu0 %1309
    %v1311 = vsel %vm1010, %v1303, 0.0
    %1312 = vadd.xlane.f32.xlu0 %v1311
    %v1313 = vpop.xlane.xlu0 %1312
    %v1314 = vsel %vm1010, %v1305, 0.0
    %1315 = vadd.xlane.f32.xlu0 %v1314
    %v1316 = vpop.xlane.xlu0 %1315
    %v1317 = vsel %vm1010, %v1307, 0.0
    %1318 = vadd.xlane.f32.xlu0 %v1317
    %v1319 = vpop.xlane.xlu0 %1318
    %v1320 = vrcp.pop %v1310
    %v1321 = vrcp.pop %v1313
    %v1322 = vrcp.pop %v1316
    %v1323 = vrcp.pop %v1319
    %v1324 = vmul.f32 %v1301, %v1320
    %v1325 = vmul.f32 %v1303, %v1321
    %v1326 = vmul.f32 %v1305, %v1322
    %v1327 = vmul.f32 %v1307, %v1323
    %v1328 = vld [vmem:[%s43] sm:$0xf]
    %v1329 = vld [vmem:[%s51] sm:$0xf]
    %v1330 = vld [vmem:[%s71] sm:$0xf]
    %v1331 = vld [vmem:[%s71 + $0x4] sm:$0xf]
    %v1332 = vld [vmem:[%s71 + $0x8] sm:$0xf]
    %v1333 = vld [vmem:[%s71 + $0xc] sm:$0xf]
    %v1334 = vld [vmem:[#allocation11] sm:$0x1]
    %v1335 = vld [vmem:[%s75] sm:$0xf]
    %v1336 = vld [vmem:[%s75 + $0x4] sm:$0xf]
    %v1337 = vld [vmem:[%s75 + $0x8] sm:$0xf]
    %v1338 = vld [vmem:[%s75 + $0xc] sm:$0xf]
    %v1339 = vld [vmem:[#allocation12] sm:$0x1]
    %v1340 = vld [vmem:[%s79] sm:$0xf]
    %v1341 = vld [vmem:[%s79 + $0x4] sm:$0xf]
    %v1342 = vld [vmem:[%s79 + $0x8] sm:$0xf]
    %v1343 = vld [vmem:[%s79 + $0xc] sm:$0xf]
    %v1344 = vld [vmem:[#allocation14] sm:$0x1]
    %v1345 = vld [vmem:[%s83] sm:$0xf]
    %v1346 = vld [vmem:[%s83 + $0x4] sm:$0xf]
    %v1347 = vld [vmem:[%s83 + $0x8] sm:$0xf]
    %v1348 = vld [vmem:[%s83 + $0xc] sm:$0xf]
    %v1349 = vld [vmem:[#allocation15] sm:$0x1]
    %v1350 = vld [vmem:[%s59] sm:$0xf]
    %v1351 = vld [vmem:[%s59 + $0x4] sm:$0xf]
    %v1352 = vld [vmem:[%s59 + $0x8] sm:$0xf]
    %v1353 = vld [vmem:[%s59 + $0xc] sm:$0xf]
    %v1354 = vpack.c.bf16 %v1243, %v1242
    %v1355 = vpack.c.bf16 %v1245, %v1244
    %v1356 = vpack.c.bf16 %v753, %v753
    %v1358 = vsel %vm427, %v1354, 0
    %v1361 = vsel %vm427, %v1355, 0
    %v1364 = vsel %vm566, %v1356, 0
    %1366 = vmatpush.bf16.msra.mxu0 0
    %1367 = vmatpush.bf16.msra.mxu0 0
    %1368 = vmatpush.bf16.msra.mxu0 0
    %1369 = vmatpush.bf16.msra.mxu0 0
    %1370 = vmatpush.bf16.msra.mxu0 0
    %1371 = vmatpush.bf16.msra.mxu0 0
    %1372 = vmatpush.bf16.msra.mxu0 0
    %1373 = vmatpush.bf16.msra.mxu0 %v1364
    %1374 = vmatmul.bf16.gmra.mxu0 %v1358
    %v1375 = vpop.f32.mrf.mxu0
    %v1376 = vadd.f32 0.0, %v1375
    %v1377 = vpop.f32.mrf.mxu0
    %v1378 = vadd.f32 0.0, %v1377
    %1379 = vmatmul.bf16.gmra.mxu0 %v1361
    %v1380 = vpop.f32.mrf.mxu0
    %v1381 = vadd.f32 0.0, %v1380
    %v1382 = vpop.f32.mrf.mxu0
    %v1383 = vadd.f32 0.0, %v1382
    %1384 = vdwg.mxu0
    %v1385 = vmul.f32 %v1376, %v998
    %v1386 = vmul.f32 %v1378, %v999
    %v1387 = vmul.f32 %v1381, %v1000
    %v1388 = vmul.f32 %v1383, %v1001
    %v1390 = vsel %vm1162, %v1328, 0
    %1392 = vmatpush.msra.mxu0 0.0
    %1393 = vmatpush.msra.mxu0 0.0
    %1394 = vmatpush.msra.mxu0 0.0
    %1395 = vmatpush.msra.mxu0 0.0
    %1396 = vmatpush.msra.mxu0 0.0
    %1397 = vmatpush.msra.mxu0 0.0
    %1398 = vmatpush.msra.mxu0 0.0
    %1399 = vmatpush.msra.mxu0 0.0
    %1400 = vmatpush.msra.mxu0 0.0
    %1401 = vmatpush.msra.mxu0 0.0
    %1402 = vmatpush.msra.mxu0 0.0
    %1403 = vmatpush.msra.mxu0 0.0
    %1404 = vmatpush.msra.mxu0 %v1388
    %1405 = vmatpush.msra.mxu0 %v1387
    %1406 = vmatpush.msra.mxu0 %v1386
    %1407 = vmatpush.msra.mxu0 %v1385
    %1408 = vmatmul.f32.gmra.mxu0 %v1390
    %v1409 = vpop.f32.mrf.mxu0
    %v1410 = vadd.f32 0.0, %v1409
    %1411 = vdwg.mxu0
    %v1412 = vpack.c.bf16 %v1410, %v1410
    %v1414 = vperm.slane %v1334, 0
    %v1420 = vunpack.c.l.b16 %v1330
    %v1421 = vunpack.c.l.b16 %v1331
    %v1422 = vunpack.c.l.b16 %v1332
    %v1423 = vunpack.c.l.b16 %v1333
    %v1424 = vpack.c.b16 %v1421, %v1420
    %v1425 = vpack.c.b16 %v1423, %v1422
    %v1429 = vsel %vm1162, %v1412, 0
    %1431 = vmatpush.bf16.msra.mxu0 0
    %1432 = vmatpush.bf16.msra.mxu0 0
    %1433 = vmatpush.bf16.msra.mxu0 0
    %1434 = vmatpush.bf16.msra.mxu0 0
    %1435 = vmatpush.bf16.msra.mxu0 0
    %1436 = vmatpush.bf16.msra.mxu0 0
    %1437 = vmatpush.bf16.msra.mxu0 %v1425
    %1438 = vmatpush.bf16.msra.mxu0 %v1424
    %1439 = vmatmul.bf16.gmra.mxu0 %v1429
    %v1440 = vpop.f32.mrf.mxu0
    %v1441 = vadd.f32 %v1414, %v1440
    %v1442 = vpop.f32.mrf.mxu0
    %1443 = vdwg.mxu0
    %vm1444 = vcmp.ge.f32.partialorder %v1441, 0.0
    %v1445 = vmul.f32 %v1441, 0.01
    %v1446 = vsel %vm1444, %v1441, %v1445
    %v1447 = vpack.c.bf16 %v1446, %v1446
    %v1449 = vperm.slane %v1339, 0
    %v1455 = vunpack.c.l.b16 %v1335
    %v1456 = vunpack.c.l.b16 %v1336
    %v1457 = vunpack.c.l.b16 %v1337
    %v1458 = vunpack.c.l.b16 %v1338
    %v1459 = vpack.c.b16 %v1456, %v1455
    %v1460 = vpack.c.b16 %v1458, %v1457
    %v1464 = vsel %vm1162, %v1447, 0
    %1466 = vmatpush.bf16.msra.mxu0 0
    %1467 = vmatpush.bf16.msra.mxu0 0
    %1468 = vmatpush.bf16.msra.mxu0 0
    %1469 = vmatpush.bf16.msra.mxu0 0
    %1470 = vmatpush.bf16.msra.mxu0 0
    %1471 = vmatpush.bf16.msra.mxu0 0
    %1472 = vmatpush.bf16.msra.mxu0 %v1460
    %1473 = vmatpush.bf16.msra.mxu0 %v1459
    %1474 = vmatmul.bf16.gmra.mxu0 %v1464
    %v1475 = vpop.f32.mrf.mxu0
    %v1476 = vadd.f32 %v1449, %v1475
    %v1477 = vpop.f32.mrf.mxu0
    %1478 = vdwg.mxu0
    %vm1479 = vcmp.ge.f32.partialorder %v1476, 0.0
    %v1480 = vmul.f32 %v1476, 0.01
    %v1481 = vsel %vm1479, %v1476, %v1480
    %v1486 = vunpack.c.l.b16 %v1350
    %v1487 = vunpack.c.l.b16 %v1351
    %v1488 = vunpack.c.l.b16 %v1352
    %v1489 = vunpack.c.l.b16 %v1353
    %v1490 = vpack.c.b16 %v1487, %v1486
    %v1491 = vpack.c.b16 %v1489, %v1488
    %1494 = vmatpush.bf16.msra.mxu0 0
    %1495 = vmatpush.bf16.msra.mxu0 0
    %1496 = vmatpush.bf16.msra.mxu0 0
    %1497 = vmatpush.bf16.msra.mxu0 0
    %1498 = vmatpush.bf16.msra.mxu0 0
    %1499 = vmatpush.bf16.msra.mxu0 0
    %1500 = vmatpush.bf16.msra.mxu0 %v1491
    %1501 = vmatpush.bf16.msra.mxu0 %v1490
    %1502 = vmatmul.bf16.gmra.mxu0 %v1429
    %v1503 = vpop.f32.mrf.mxu0
    %v1504 = vadd.f32 0.0, %v1503
    %v1505 = vpop.f32.mrf.mxu0
    %1506 = vdwg.mxu0
    %v1507 = vpack.c.bf16 %v1325, %v1324
    %v1508 = vpack.c.bf16 %v1327, %v1326
    %v1509 = vpack.c.bf16 %v1504, %v1504
    %v1511 = vsel %vm1010, %v1507, 0
    %v1514 = vsel %vm1010, %v1508, 0
    %v1517 = vsel %vm663, %v1509, 0
    %1519 = vmatpush.bf16.msra.mxu0 0
    %1520 = vmatpush.bf16.msra.mxu0 0
    %1521 = vmatpush.bf16.msra.mxu0 0
    %1522 = vmatpush.bf16.msra.mxu0 0
    %1523 = vmatpush.bf16.msra.mxu0 0
    %1524 = vmatpush.bf16.msra.mxu0 0
    %1525 = vmatpush.bf16.msra.mxu0 0
    %1526 = vmatpush.bf16.msra.mxu0 %v1517
    %1527 = vmatmul.bf16.gmra.mxu0 %v1511
    %v1528 = vpop.f32.mrf.mxu0
    %v1529 = vadd.f32 0.0, %v1528
    %v1530 = vpop.f32.mrf.mxu0
    %v1531 = vadd.f32 0.0, %v1530
    %1532 = vmatmul.bf16.gmra.mxu0 %v1514
    %v1533 = vpop.f32.mrf.mxu0
    %v1534 = vadd.f32 0.0, %v1533
    %v1535 = vpop.f32.mrf.mxu0
    %v1536 = vadd.f32 0.0, %v1535
    %1537 = vdwg.mxu0
    %v1538 = vmul.f32 %v1529, %v1002
    %v1539 = vmul.f32 %v1531, %v1003
    %v1540 = vmul.f32 %v1534, %v1004
    %v1541 = vmul.f32 %v1536, %v1005
    %v1543 = vsel %vm1162, %v1329, 0
    %1545 = vmatpush.msra.mxu0 0.0
    %1546 = vmatpush.msra.mxu0 0.0
    %1547 = vmatpush.msra.mxu0 0.0
    %1548 = vmatpush.msra.mxu0 0.0
    %1549 = vmatpush.msra.mxu0 0.0
    %1550 = vmatpush.msra.mxu0 0.0
    %1551 = vmatpush.msra.mxu0 0.0
    %1552 = vmatpush.msra.mxu0 0.0
    %1553 = vmatpush.msra.mxu0 0.0
    %1554 = vmatpush.msra.mxu0 0.0
    %1555 = vmatpush.msra.mxu0 0.0
    %1556 = vmatpush.msra.mxu0 0.0
    %1557 = vmatpush.msra.mxu0 %v1541
    %1558 = vmatpush.msra.mxu0 %v1540
    %1559 = vmatpush.msra.mxu0 %v1539
    %1560 = vmatpush.msra.mxu0 %v1538
    %1561 = vmatmul.f32.gmra.mxu0 %v1543
    %v1562 = vpop.f32.mrf.mxu0
    %v1563 = vadd.f32 0.0, %v1562
    %1564 = vdwg.mxu0
    %v1565 = vpack.c.bf16 %v1563, %v1563
    %v1567 = vperm.slane %v1344, 0
    %v1573 = vunpack.c.l.b16 %v1340
    %v1574 = vunpack.c.l.b16 %v1341
    %v1575 = vunpack.c.l.b16 %v1342
    %v1576 = vunpack.c.l.b16 %v1343
    %v1577 = vpack.c.b16 %v1574, %v1573
    %v1578 = vpack.c.b16 %v1576, %v1575
    %v1582 = vsel %vm1162, %v1565, 0
    %1584 = vmatpush.bf16.msra.mxu0 0
    %1585 = vmatpush.bf16.msra.mxu0 0
    %1586 = vmatpush.bf16.msra.mxu0 0
    %1587 = vmatpush.bf16.msra.mxu0 0
    %1588 = vmatpush.bf16.msra.mxu0 0
    %1589 = vmatpush.bf16.msra.mxu0 0
    %1590 = vmatpush.bf16.msra.mxu0 %v1578
    %1591 = vmatpush.bf16.msra.mxu0 %v1577
    %1592 = vmatmul.bf16.gmra.mxu0 %v1582
    %v1593 = vpop.f32.mrf.mxu0
    %v1594 = vadd.f32 %v1567, %v1593
    %v1595 = vpop.f32.mrf.mxu0
    %1596 = vdwg.mxu0
    %vm1597 = vcmp.ge.f32.partialorder %v1594, 0.0
    %v1598 = vmul.f32 %v1594, 0.01
    %v1599 = vsel %vm1597, %v1594, %v1598
    %v1600 = vpack.c.bf16 %v1599, %v1599
    %v1602 = vperm.slane %v1349, 0
    %v1608 = vunpack.c.l.b16 %v1345
    %v1609 = vunpack.c.l.b16 %v1346
    %v1610 = vunpack.c.l.b16 %v1347
    %v1611 = vunpack.c.l.b16 %v1348
    %v1612 = vpack.c.b16 %v1609, %v1608
    %v1613 = vpack.c.b16 %v1611, %v1610
    %v1617 = vsel %vm1162, %v1600, 0
    %1619 = vmatpush.bf16.msra.mxu0 0
    %1620 = vmatpush.bf16.msra.mxu0 0
    %1621 = vmatpush.bf16.msra.mxu0 0
    %1622 = vmatpush.bf16.msra.mxu0 0
    %1623 = vmatpush.bf16.msra.mxu0 0
    %1624 = vmatpush.bf16.msra.mxu0 0
    %1625 = vmatpush.bf16.msra.mxu0 %v1613
    %1626 = vmatpush.bf16.msra.mxu0 %v1612
    %1627 = vmatmul.bf16.gmra.mxu0 %v1617
    %v1628 = vpop.f32.mrf.mxu0
    %v1629 = vadd.f32 %v1602, %v1628
    %v1630 = vpop.f32.mrf.mxu0
    %1631 = vdwg.mxu0
    %vm1632 = vcmp.ge.f32.partialorder %v1629, 0.0
    %v1633 = vmul.f32 %v1629, 0.01
    %v1634 = vsel %vm1632, %v1629, %v1633
    %v1635 = vpack.c.bf16 %v755, %v755
    %v1637 = vsel %vm566, %v1635, 0
    %1639 = vmatpush.bf16.msra.mxu0 0
    %1640 = vmatpush.bf16.msra.mxu0 0
    %1641 = vmatpush.bf16.msra.mxu0 0
    %1642 = vmatpush.bf16.msra.mxu0 0
    %1643 = vmatpush.bf16.msra.mxu0 0
    %1644 = vmatpush.bf16.msra.mxu0 0
    %1645 = vmatpush.bf16.msra.mxu0 0
    %1646 = vmatpush.bf16.msra.mxu0 %v1637
    %1647 = vmatmul.bf16.gmra.mxu0 %v1358
    %v1648 = vpop.f32.mrf.mxu0
    %v1649 = vadd.f32 0.0, %v1648
    %v1650 = vpop.f32.mrf.mxu0
    %v1651 = vadd.f32 0.0, %v1650
    %1652 = vmatmul.bf16.gmra.mxu0 %v1361
    %v1653 = vpop.f32.mrf.mxu0
    %v1654 = vadd.f32 0.0, %v1653
    %v1655 = vpop.f32.mrf.mxu0
    %v1656 = vadd.f32 0.0, %v1655
    %1657 = vdwg.mxu0
    %v1658 = vmul.f32 %v1649, %v998
    %v1659 = vmul.f32 %v1651, %v999
    %v1660 = vmul.f32 %v1654, %v1000
    %v1661 = vmul.f32 %v1656, %v1001
    %1662 = vmatpush.msra.mxu0 0.0
    %1663 = vmatpush.msra.mxu0 0.0
    %1664 = vmatpush.msra.mxu0 0.0
    %1665 = vmatpush.msra.mxu0 0.0
    %1666 = vmatpush.msra.mxu0 0.0
    %1667 = vmatpush.msra.mxu0 0.0
    %1668 = vmatpush.msra.mxu0 0.0
    %1669 = vmatpush.msra.mxu0 0.0
    %1670 = vmatpush.msra.mxu0 0.0
    %1671 = vmatpush.msra.mxu0 0.0
    %1672 = vmatpush.msra.mxu0 0.0
    %1673 = vmatpush.msra.mxu0 0.0
    %1674 = vmatpush.msra.mxu0 %v1661
    %1675 = vmatpush.msra.mxu0 %v1660
    %1676 = vmatpush.msra.mxu0 %v1659
    %1677 = vmatpush.msra.mxu0 %v1658
    %1678 = vmatmul.f32.gmra.mxu0 %v1390
    %v1679 = vpop.f32.mrf.mxu0
    %v1680 = vadd.f32 0.0, %v1679
    %1681 = vdwg.mxu0
    %v1682 = vpack.c.bf16 %v1680, %v1680
    %v1684 = vsel %vm1162, %v1682, 0
    %1686 = vmatpush.bf16.msra.mxu0 0
    %1687 = vmatpush.bf16.msra.mxu0 0
    %1688 = vmatpush.bf16.msra.mxu0 0
    %1689 = vmatpush.bf16.msra.mxu0 0
    %1690 = vmatpush.bf16.msra.mxu0 0
    %1691 = vmatpush.bf16.msra.mxu0 0
    %1692 = vmatpush.bf16.msra.mxu0 %v1425
    %1693 = vmatpush.bf16.msra.mxu0 %v1424
    %1694 = vmatmul.bf16.gmra.mxu0 %v1684
    %v1695 = vpop.f32.mrf.mxu0
    %v1696 = vadd.f32 %v1414, %v1695
    %v1697 = vpop.f32.mrf.mxu0
    %1698 = vdwg.mxu0
    %vm1699 = vcmp.ge.f32.partialorder %v1696, 0.0
    %v1700 = vmul.f32 %v1696, 0.01
    %v1701 = vsel %vm1699, %v1696, %v1700
    %v1702 = vpack.c.bf16 %v1701, %v1701
    %v1704 = vsel %vm1162, %v1702, 0
    %1706 = vmatpush.bf16.msra.mxu0 0
    %1707 = vmatpush.bf16.msra.mxu0 0
    %1708 = vmatpush.bf16.msra.mxu0 0
    %1709 = vmatpush.bf16.msra.mxu0 0
    %1710 = vmatpush.bf16.msra.mxu0 0
    %1711 = vmatpush.bf16.msra.mxu0 0
    %1712 = vmatpush.bf16.msra.mxu0 %v1460
    %1713 = vmatpush.bf16.msra.mxu0 %v1459
    %1714 = vmatmul.bf16.gmra.mxu0 %v1704
    %v1715 = vpop.f32.mrf.mxu0
    %v1716 = vadd.f32 %v1449, %v1715
    %v1717 = vpop.f32.mrf.mxu0
    %1718 = vdwg.mxu0
    %vm1719 = vcmp.ge.f32.partialorder %v1716, 0.0
    %v1720 = vmul.f32 %v1716, 0.01
    %v1721 = vsel %vm1719, %v1716, %v1720
    %1722 = vmatpush.bf16.msra.mxu0 0
    %1723 = vmatpush.bf16.msra.mxu0 0
    %1724 = vmatpush.bf16.msra.mxu0 0
    %1725 = vmatpush.bf16.msra.mxu0 0
    %1726 = vmatpush.bf16.msra.mxu0 0
    %1727 = vmatpush.bf16.msra.mxu0 0
    %1728 = vmatpush.bf16.msra.mxu0 %v1491
    %1729 = vmatpush.bf16.msra.mxu0 %v1490
    %1730 = vmatmul.bf16.gmra.mxu0 %v1684
    %v1731 = vpop.f32.mrf.mxu0
    %v1732 = vadd.f32 0.0, %v1731
    %v1733 = vpop.f32.mrf.mxu0
    %1734 = vdwg.mxu0
    %v1735 = vpack.c.bf16 %v1732, %v1732
    %v1737 = vsel %vm663, %v1735, 0
    %1739 = vmatpush.bf16.msra.mxu0 0
    %1740 = vmatpush.bf16.msra.mxu0 0
    %1741 = vmatpush.bf16.msra.mxu0 0
    %1742 = vmatpush.bf16.msra.mxu0 0
    %1743 = vmatpush.bf16.msra.mxu0 0
    %1744 = vmatpush.bf16.msra.mxu0 0
    %1745 = vmatpush.bf16.msra.mxu0 0
    %1746 = vmatpush.bf16.msra.mxu0 %v1737
    %1747 = vmatmul.bf16.gmra.mxu0 %v1511
    %v1748 = vpop.f32.mrf.mxu0
    %v1749 = vadd.f32 0.0, %v1748
    %v1750 = vpop.f32.mrf.mxu0
    %v1751 = vadd.f32 0.0, %v1750
    %1752 = vmatmul.bf16.gmra.mxu0 %v1514
    %v1753 = vpop.f32.mrf.mxu0
    %v1754 = vadd.f32 0.0, %v1753
    %v1755 = vpop.f32.mrf.mxu0
    %v1756 = vadd.f32 0.0, %v1755
    %1757 = vdwg.mxu0
    %v1758 = vmul.f32 %v1749, %v1002
    %v1759 = vmul.f32 %v1751, %v1003
    %v1760 = vmul.f32 %v1754, %v1004
    %v1761 = vmul.f32 %v1756, %v1005
    %1762 = vmatpush.msra.mxu0 0.0
    %1763 = vmatpush.msra.mxu0 0.0
    %1764 = vmatpush.msra.mxu0 0.0
    %1765 = vmatpush.msra.mxu0 0.0
    %1766 = vmatpush.msra.mxu0 0.0
    %1767 = vmatpush.msra.mxu0 0.0
    %1768 = vmatpush.msra.mxu0 0.0
    %1769 = vmatpush.msra.mxu0 0.0
    %1770 = vmatpush.msra.mxu0 0.0
    %1771 = vmatpush.msra.mxu0 0.0
    %1772 = vmatpush.msra.mxu0 0.0
    %1773 = vmatpush.msra.mxu0 0.0
    %1774 = vmatpush.msra.mxu0 %v1761
    %1775 = vmatpush.msra.mxu0 %v1760
    %1776 = vmatpush.msra.mxu0 %v1759
    %1777 = vmatpush.msra.mxu0 %v1758
    %1778 = vmatmul.f32.gmra.mxu0 %v1543
    %v1779 = vpop.f32.mrf.mxu0
    %v1780 = vadd.f32 0.0, %v1779
    %1781 = vdwg.mxu0
    %v1782 = vpack.c.bf16 %v1780, %v1780
    %v1784 = vsel %vm1162, %v1782, 0
    %1786 = vmatpush.bf16.msra.mxu0 0
    %1787 = vmatpush.bf16.msra.mxu0 0
    %1788 = vmatpush.bf16.msra.mxu0 0
    %1789 = vmatpush.bf16.msra.mxu0 0
    %1790 = vmatpush.bf16.msra.mxu0 0
    %1791 = vmatpush.bf16.msra.mxu0 0
    %1792 = vmatpush.bf16.msra.mxu0 %v1578
    %1793 = vmatpush.bf16.msra.mxu0 %v1577
    %1794 = vmatmul.bf16.gmra.mxu0 %v1784
    %v1795 = vpop.f32.mrf.mxu0
    %v1796 = vadd.f32 %v1567, %v1795
    %v1797 = vpop.f32.mrf.mxu0
    %1798 = vdwg.mxu0
    %vm1799 = vcmp.ge.f32.partialorder %v1796, 0.0
    %v1800 = vmul.f32 %v1796, 0.01
    %v1801 = vsel %vm1799, %v1796, %v1800
    %v1802 = vpack.c.bf16 %v1801, %v1801
    %v1804 = vsel %vm1162, %v1802, 0
    %1806 = vmatpush.bf16.msra.mxu0 0
    %1807 = vmatpush.bf16.msra.mxu0 0
    %1808 = vmatpush.bf16.msra.mxu0 0
    %1809 = vmatpush.bf16.msra.mxu0 0
    %1810 = vmatpush.bf16.msra.mxu0 0
    %1811 = vmatpush.bf16.msra.mxu0 0
    %1812 = vmatpush.bf16.msra.mxu0 %v1613
    %1813 = vmatpush.bf16.msra.mxu0 %v1612
    %1814 = vmatmul.bf16.gmra.mxu0 %v1804
    %v1815 = vpop.f32.mrf.mxu0
    %v1816 = vadd.f32 %v1602, %v1815
    %v1817 = vpop.f32.mrf.mxu0
    %1818 = vdwg.mxu0
    %vm1819 = vcmp.ge.f32.partialorder %v1816, 0.0
    %v1820 = vmul.f32 %v1816, 0.01
    %v1821 = vsel %vm1819, %v1816, %v1820
    %1823 = vrot.lane.b32.xlu0 %v1721, 32
    %v1824 = vpop.permute.xlu0 %1823
    %v1826 = vsel %vm1162, %v1481, %v1824
    %1828 = vrot.lane.b32.xlu0 %v1821, 32
    %v1829 = vpop.permute.xlu0 %1828
    %v1831 = vsel %vm1162, %v1634, %v1829
    %1832 = vmatpush.msra.mxu0 0.0
    %1833 = vmatpush.msra.mxu0 0.0
    %1834 = vmatpush.msra.mxu0 0.0
    %1835 = vmatpush.msra.mxu0 0.0
    %1836 = vmatpush.msra.mxu0 0.0
    %1837 = vmatpush.msra.mxu0 0.0
    %1838 = vmatpush.msra.mxu0 0.0
    %1839 = vmatpush.msra.mxu0 0.0
    %1840 = vmatpush.msra.mxu0 0.0
    %1841 = vmatpush.msra.mxu0 0.0
    %1842 = vmatpush.msra.mxu0 0.0
    %1843 = vmatpush.msra.mxu0 0.0
    %1844 = vmatpush.msra.mxu0 0.0
    %1845 = vmatpush.msra.mxu0 0.0
    %1846 = vmatpush.msra.mxu0 %v351
    %1847 = vmatpush.msra.mxu0 %v350
    %1848 = vmatmul.f32.gmra.mxu0 %v1137
    %v1849 = vpop.f32.mrf.mxu0
    %v1850 = vadd.f32 0.0, %v1849
    %1851 = vdwg.mxu0
    %1852 = vmatpush.msra.mxu0 0.0
    %1853 = vmatpush.msra.mxu0 0.0
    %1854 = vmatpush.msra.mxu0 0.0
    %1855 = vmatpush.msra.mxu0 0.0
    %1856 = vmatpush.msra.mxu0 0.0
    %1857 = vmatpush.msra.mxu0 0.0
    %1858 = vmatpush.msra.mxu0 0.0
    %1859 = vmatpush.msra.mxu0 0.0
    %1860 = vmatpush.msra.mxu0 0.0
    %1861 = vmatpush.msra.mxu0 0.0
    %1862 = vmatpush.msra.mxu0 0.0
    %1863 = vmatpush.msra.mxu0 0.0
    %1864 = vmatpush.msra.mxu0 0.0
    %1865 = vmatpush.msra.mxu0 0.0
    %1866 = vmatpush.msra.mxu0 %v353
    %1867 = vmatpush.msra.mxu0 %v352
    %1868 = vmatmul.f32.gmra.mxu0 %v1137
    %v1869 = vpop.f32.mrf.mxu0
    %v1870 = vadd.f32 0.0, %v1869
    %1871 = vdwg.mxu0
    %vm1872 = vcmp.gt.f32.partialorder %v1118, 0.0
    %v1873 = vsel %vm1872, %v430, %v1870
    %1875 = vrot.lane.b32.xlu0 %v679, 32
    %v1876 = vpop.permute.xlu0 %1875
    %v1878 = vsel %vm1162, %v677, %v1876
    %v1879 = vsub.f32 %v1873, %v1870
    %v1880 = vsub.f32 0.0, %v1879
    %1882 = vset.pattern.permute.xlu0 0
    %1883 = vperm.xlu0 %1882, %v1880
    %v1884 = vpop.permute.xlu0 %1883
    %v1886 = vmul.f32 %v1884, %v387
    %v1887 = vmul.f32 %v1886, 1.442695
    %v1888 = vpow.pop %v1887
    %v1889 = vmul.f32 %v1850, %v1888
    %v1890 = vadd.f32 %v1889, %v1878
    %1891 = vadd.xlane.f32.xlu0 %v1119
    %v1892 = vpop.xlane.xlu0 %1891
    %1893 = vadd.xlane.f32.xlu0 %v1120
    %v1894 = vpop.xlane.xlu0 %1893
    %v1895 = vsub.f32 1.0, %v1892
    %v1896 = vsub.f32 1.0, %v1894
    %v1897 = vmul.f32 %v350, %v1895
    %v1898 = vmul.f32 %v351, %v1896
    %v1900 = vsel %vm427, %v1113, 0
    %v1903 = vsel %vm427, %v1114, 0
    %1905 = vmatpush.msra.mxu0 0.0
    %1906 = vmatpush.msra.mxu0 0.0
    %1907 = vmatpush.msra.mxu0 0.0
    %1908 = vmatpush.msra.mxu0 0.0
    %1909 = vmatpush.msra.mxu0 0.0
    %1910 = vmatpush.msra.mxu0 0.0
    %1911 = vmatpush.msra.mxu0 0.0
    %1912 = vmatpush.msra.mxu0 0.0
    %1913 = vmatpush.msra.mxu0 0.0
    %1914 = vmatpush.msra.mxu0 0.0
    %1915 = vmatpush.msra.mxu0 0.0
    %1916 = vmatpush.msra.mxu0 0.0
    %1917 = vmatpush.msra.mxu0 0.0
    %1918 = vmatpush.msra.mxu0 0.0
    %1919 = vmatpush.msra.mxu0 0.0
    %1920 = vmatpush.msra.mxu0 %v1890
    %1921 = vmatmul.f32.gmra.mxu0 %v1900
    %v1922 = vpop.f32.mrf.mxu0
    %v1923 = vadd.f32 0.0, %v1922
    %1924 = vmatmul.f32.gmra.mxu0 %v1903
    %v1925 = vpop.f32.mrf.mxu0
    %v1926 = vadd.f32 0.0, %v1925
    %1927 = vdwg.mxu0
    %v1928 = vadd.f32 %v1897, %v1923
    %v1929 = vadd.f32 %v1898, %v1926
    %v1930 = vmul.f32 %v352, %v1895
    %v1931 = vmul.f32 %v353, %v1896
    %1932 = vmatpush.msra.mxu0 0.0
    %1933 = vmatpush.msra.mxu0 0.0
    %1934 = vmatpush.msra.mxu0 0.0
    %1935 = vmatpush.msra.mxu0 0.0
    %1936 = vmatpush.msra.mxu0 0.0
    %1937 = vmatpush.msra.mxu0 0.0
    %1938 = vmatpush.msra.mxu0 0.0
    %1939 = vmatpush.msra.mxu0 0.0
    %1940 = vmatpush.msra.mxu0 0.0
    %1941 = vmatpush.msra.mxu0 0.0
    %1942 = vmatpush.msra.mxu0 0.0
    %1943 = vmatpush.msra.mxu0 0.0
    %1944 = vmatpush.msra.mxu0 0.0
    %1945 = vmatpush.msra.mxu0 0.0
    %1946 = vmatpush.msra.mxu0 0.0
    %1947 = vmatpush.msra.mxu0 %v1873
    %1948 = vmatmul.f32.gmra.mxu0 %v1900
    %v1949 = vpop.f32.mrf.mxu0
    %v1950 = vadd.f32 0.0, %v1949
    %1951 = vmatmul.f32.gmra.mxu0 %v1903
    %v1952 = vpop.f32.mrf.mxu0
    %v1953 = vadd.f32 0.0, %v1952
    %1954 = vdwg.mxu0
    %v1955 = vadd.f32 %v1930, %v1950
    %v1956 = vadd.f32 %v1931, %v1953
    %v1957 = vld [vmem:[%s9] sm:$0xf]
    %v1958 = vstv %s347
    %v1959 = vsub.f32 %v1958, %v1957
    %v1960 = vsub.f32 0.0, %v1959
    %1962 = vset.pattern.permute.xlu0 0
    %1963 = vperm.xlu0 %1962, %v1960
    %v1964 = vpop.permute.xlu0 %1963
    %v1966 = vmul.f32 %v1964, %v387
    %v1967 = vmul.f32 %v1966, 1.442695
    %v1968 = vpow.pop %v1967
    %v1969 = vmul.f32 %v912, %v1968
    %v1970 = vadd.f32 %v1969, %v1826
    %v1971 = vld [vmem:[%s13] sm:$0xf]
    %v1972 = vsub.f32 %v1958, %v1971
    %v1973 = vsub.f32 0.0, %v1972
    %1975 = vset.pattern.permute.xlu0 0
    %1976 = vperm.xlu0 %1975, %v1973
    %v1977 = vpop.permute.xlu0 %1976
    %v1979 = vmul.f32 %v1977, %v387
    %v1980 = vmul.f32 %v1979, 1.442695
    %v1981 = vpow.pop %v1980
    %v1982 = vmul.f32 %v913, %v1981
    %v1983 = vadd.f32 %v1982, %v1831
    %v1984 = vsub.f32 %v1958, %v1955
    %v1985 = vsub.f32 %v1958, %v1956
    %v1986 = vsub.f32 0.0, %v1984
    %v1987 = vsub.f32 0.0, %v1985
    %1989 = vset.pattern.permute.xlu0 0
    %1990 = vperm.xlu0 %1989, %v1986
    %v1991 = vpop.permute.xlu0 %1990
    %1994 = vset.pattern.permute.xlu0 0
    %1995 = vperm.xlu0 %1994, %v1987
    %v1996 = vpop.permute.xlu0 %1995
    %v1998 = vmul.f32 %v1991, %v387
    %v1999 = vmul.f32 %v1996, %v387
    %v2000 = vmul.f32 %v1998, 1.442695
    %v2001 = vpow.pop %v2000
    %v2002 = vmul.f32 %v1999, 1.442695
    %v2003 = vpow.pop %v2002
    %v2004 = vmul.f32 %v1928, %v2001
    %v2005 = vmul.f32 %v1929, %v2003
    %v2006 = vpack.c.bf16 %v979, %v977
    %2008 = vrot.lane.b32.xlu0 %v2006, 96
    %v2009 = vpop.permute.xlu0 %2008
    %v2011 = vsel %vm1162, %v2009, 0
    %2013 = vmatpush.bf16.xpose.msra.mxu0 0
    %2014 = vmatpush.bf16.xpose.msra.mxu0 0
    %2015 = vmatpush.bf16.xpose.msra.mxu0 0
    %2016 = vmatpush.bf16.xpose.msra.mxu0 0
    %2017 = vmatpush.bf16.xpose.msra.mxu0 0
    %2018 = vmatpush.bf16.xpose.msra.mxu0 0
    %2019 = vmatpush.bf16.xpose.msra.mxu0 %v1167
    %2020 = vmatpush.bf16.xpose.msra.mxu0 %v1164
    %2021 = vmatmul.bf16.gmra.mxu0 %v2011
    %v2022 = vpop.f32.mrf.mxu0
    %v2023 = vadd.f32 0.0, %v2022
    %v2024 = vpop.f32.mrf.mxu0
    %v2025 = vadd.f32 0.0, %v2024
    %2026 = vdwg.mxu0
    %v2027 = vmul.f32 %v2023, 0.5
    %v2028 = vmul.f32 %v2025, 0.5
    %v2029 = vsel %vm1162, %v2027, -inf
    %2030 = vmax.xlane.f32.xlu0 %v2029
    %v2031 = vpop.xlane.xlu0 %2030
    %v2032 = vsel %vm1162, %v2028, -inf
    %2033 = vmax.xlane.f32.xlu0 %v2032
    %v2034 = vpop.xlane.xlu0 %2033
    %v2035 = vsub.f32 %v2027, %v2031
    %v2036 = vsub.f32 %v2028, %v2034
    %v2037 = vmul.f32 %v2035, 1.442695
    %v2038 = vpow.pop %v2037
    %v2039 = vmul.f32 %v2036, 1.442695
    %v2040 = vpow.pop %v2039
    %v2041 = vld [vmem:[%s41] sm:$0xff]
    %v2042 = vld [vmem:[%s41 + $0x8] sm:$0xff]
    %v2043 = vld [vmem:[%s41 + $0x10] sm:$0xff]
    %v2044 = vld [vmem:[%s41 + $0x18] sm:$0xff]
    %v2046 = vsel %vm1162, %v2038, 0
    %v2049 = vsel %vm1162, %v2040, 0
    %2051 = vmatpush.msra.mxu0 0.0
    %2052 = vmatpush.msra.mxu0 0.0
    %2053 = vmatpush.msra.mxu0 0.0
    %2054 = vmatpush.msra.mxu0 0.0
    %2055 = vmatpush.msra.mxu0 0.0
    %2056 = vmatpush.msra.mxu0 0.0
    %2057 = vmatpush.msra.mxu0 0.0
    %2058 = vmatpush.msra.mxu0 0.0
    %2059 = vmatpush.msra.mxu0 0.0
    %2060 = vmatpush.msra.mxu0 0.0
    %2061 = vmatpush.msra.mxu0 0.0
    %2062 = vmatpush.msra.mxu0 0.0
    %2063 = vmatpush.msra.mxu0 %v2044
    %2064 = vmatpush.msra.mxu0 %v2043
    %2065 = vmatpush.msra.mxu0 %v2042
    %2066 = vmatpush.msra.mxu0 %v2041
    %2067 = vmatmul.f32.gmra.mxu0 %v2046
    %v2068 = vpop.f32.mrf.mxu0
    %v2069 = vadd.f32 0.0, %v2068
    %2070 = vmatmul.f32.gmra.mxu0 %v2049
    %v2071 = vpop.f32.mrf.mxu0
    %v2072 = vadd.f32 0.0, %v2071
    %2073 = vdwg.mxu0
    %v2074 = vmax.f32 %v2069, 1e-30
    %v2075 = vmax.f32 %v2072, 1e-30
    %v2076 = vrcp.pop %v2074
    %v2077 = vmul.f32 %v2074, %v2076
    %v2078 = vsub.f32 1.0, %v2077
    %v2079 = vmul.f32 %v2076, %v2078
    %v2080 = vadd.f32 %v2076, %v2079
    %vm2081 = vweird.f32 %v2074
    %vm2082 = vweird.f32 %v2076
    %vm2083 = vmor %vm2081, %vm2082
    %v2084 = vsel %vm2083, %v2076, %v2080
    %v2085 = vand.u32 2147483647, %v2074
    %vm2086 = vcmp.eq.f32.partialorder %v2085, 8.507059e+37
    %v2087 = vand.u32 %v2074, 2147483648
    %v2088 = vor.u32 1.1754944e-38, %v2087
    %v2089 = vsel %vm2086, %v2088, %v2084
    %v2090 = vmul.f32 1.0, %v2089
    %v2091 = vrcp.pop %v2075
    %v2092 = vmul.f32 %v2075, %v2091
    %v2093 = vsub.f32 1.0, %v2092
    %v2094 = vmul.f32 %v2091, %v2093
    %v2095 = vadd.f32 %v2091, %v2094
    %vm2096 = vweird.f32 %v2075
    %vm2097 = vweird.f32 %v2091
    %vm2098 = vmor %vm2096, %vm2097
    %v2099 = vsel %vm2098, %v2091, %v2095
    %v2100 = vand.u32 2147483647, %v2075
    %vm2101 = vcmp.eq.f32.partialorder %v2100, 8.507059e+37
    %v2102 = vand.u32 %v2075, 2147483648
    %v2103 = vor.u32 1.1754944e-38, %v2102
    %v2104 = vsel %vm2101, %v2103, %v2099
    %v2105 = vmul.f32 1.0, %v2104
    %v2106 = vmul.f32 %v2038, %v2090
    %v2107 = vmul.f32 %v2040, %v2105
    %v2109 = vsel %vm1162, %v2106, 0
    %v2112 = vsel %vm1162, %v2107, 0
    %2114 = vmatpush.xpose.msra.mxu0 0.0
    %2115 = vmatpush.xpose.msra.mxu0 0.0
    %2116 = vmatpush.xpose.msra.mxu0 0.0
    %2117 = vmatpush.xpose.msra.mxu0 0.0
    %2118 = vmatpush.xpose.msra.mxu0 0.0
    %2119 = vmatpush.xpose.msra.mxu0 0.0
    %2120 = vmatpush.xpose.msra.mxu0 0.0
    %2121 = vmatpush.xpose.msra.mxu0 0.0
    %2122 = vmatpush.xpose.msra.mxu0 0.0
    %2123 = vmatpush.xpose.msra.mxu0 0.0
    %2124 = vmatpush.xpose.msra.mxu0 0.0
    %2125 = vmatpush.xpose.msra.mxu0 0.0
    %2126 = vmatpush.xpose.msra.mxu0 0.0
    %2127 = vmatpush.xpose.msra.mxu0 0.0
    %2128 = vmatpush.xpose.msra.mxu0 0.0
    %2129 = vmatpush.xpose.msra.mxu0 %v1390
    %2130 = vmatmul.f32.gmra.mxu0 %v2109
    %v2131 = vpop.f32.mrf.mxu0
    %v2132 = vadd.f32 0.0, %v2131
    %2133 = vmatmul.f32.gmra.mxu0 %v2112
    %v2134 = vpop.f32.mrf.mxu0
    %v2135 = vadd.f32 0.0, %v2134
    %2136 = vdwg.mxu0
    %v2137 = vmul.f32 %v2132, 0.125
    %v2138 = vmul.f32 %v2135, 0.125
    %2139 = vmatpush.bf16.xpose.msra.mxu0 0
    %2140 = vmatpush.bf16.xpose.msra.mxu0 0
    %2141 = vmatpush.bf16.xpose.msra.mxu0 0
    %2142 = vmatpush.bf16.xpose.msra.mxu0 0
    %2143 = vmatpush.bf16.xpose.msra.mxu0 0
    %2144 = vmatpush.bf16.xpose.msra.mxu0 0
    %2145 = vmatpush.bf16.xpose.msra.mxu0 %v1256
    %2146 = vmatpush.bf16.xpose.msra.mxu0 %v1253
    %2147 = vmatmul.bf16.gmra.mxu0 %v1259
    %v2148 = vpop.f32.mrf.mxu0
    %v2149 = vadd.f32 0.0, %v2148
    %v2150 = vpop.f32.mrf.mxu0
    %2151 = vdwg.mxu0
    %v2152 = vmul.f32 %v2149, 0.5
    %vm2153 = vcmask 257024
    %v2154 = vsel %vm2153, %v2152, -inf
    %2155 = vmax.xlane.f32.xlu0 %v2154
    %v2156 = vpop.xlane.xlu0 %2155
    %v2157 = vsub.f32 %v2152, %v2156
    %v2158 = vmul.f32 %v2157, 1.442695
    %v2159 = vpow.pop %v2158
    %v2160 = vld [vmem:[%s49] sm:$0xff]
    %v2161 = vld [vmem:[%s49 + $0x8] sm:$0xff]
    %v2162 = vld [vmem:[%s49 + $0x10] sm:$0xff]
    %v2163 = vld [vmem:[%s49 + $0x18] sm:$0xff]
    %v2165 = vsel %vm1162, %v2159, 0
    %2167 = vmatpush.msra.mxu0 0.0
    %2168 = vmatpush.msra.mxu0 0.0
    %2169 = vmatpush.msra.mxu0 0.0
    %2170 = vmatpush.msra.mxu0 0.0
    %2171 = vmatpush.msra.mxu0 0.0
    %2172 = vmatpush.msra.mxu0 0.0
    %2173 = vmatpush.msra.mxu0 0.0
    %2174 = vmatpush.msra.mxu0 0.0
    %2175 = vmatpush.msra.mxu0 0.0
    %2176 = vmatpush.msra.mxu0 0.0
    %2177 = vmatpush.msra.mxu0 0.0
    %2178 = vmatpush.msra.mxu0 0.0
    %2179 = vmatpush.msra.mxu0 %v2163
    %2180 = vmatpush.msra.mxu0 %v2162
    %2181 = vmatpush.msra.mxu0 %v2161
    %2182 = vmatpush.msra.mxu0 %v2160
    %2183 = vmatmul.f32.gmra.mxu0 %v2165
    %v2184 = vpop.f32.mrf.mxu0
    %v2185 = vadd.f32 0.0, %v2184
    %2186 = vdwg.mxu0
    %v2187 = vmax.f32 %v2185, 1e-30
    %v2188 = vrcp.pop %v2187
    %v2189 = vmul.f32 %v2187, %v2188
    %v2190 = vsub.f32 1.0, %v2189
    %v2191 = vmul.f32 %v2188, %v2190
    %v2192 = vadd.f32 %v2188, %v2191
    %vm2193 = vweird.f32 %v2187
    %vm2194 = vweird.f32 %v2188
    %vm2195 = vmor %vm2193, %vm2194
    %v2196 = vsel %vm2195, %v2188, %v2192
    %v2197 = vand.u32 2147483647, %v2187
    %vm2198 = vcmp.eq.f32.partialorder %v2197, 8.507059e+37
    %v2199 = vand.u32 %v2187, 2147483648
    %v2200 = vor.u32 1.1754944e-38, %v2199
    %v2201 = vsel %vm2198, %v2200, %v2196
    %v2202 = vmul.f32 1.0, %v2201
    %v2203 = vmul.f32 %v2159, %v2202
    %v2205 = vsel %vm1162, %v2203, 0
    %2207 = vmatpush.xpose.msra.mxu0 0.0
    %2208 = vmatpush.xpose.msra.mxu0 0.0
    %2209 = vmatpush.xpose.msra.mxu0 0.0
    %2210 = vmatpush.xpose.msra.mxu0 0.0
    %2211 = vmatpush.xpose.msra.mxu0 0.0
    %2212 = vmatpush.xpose.msra.mxu0 0.0
    %2213 = vmatpush.xpose.msra.mxu0 0.0
    %2214 = vmatpush.xpose.msra.mxu0 0.0
    %2215 = vmatpush.xpose.msra.mxu0 0.0
    %2216 = vmatpush.xpose.msra.mxu0 0.0
    %2217 = vmatpush.xpose.msra.mxu0 0.0
    %2218 = vmatpush.xpose.msra.mxu0 0.0
    %2219 = vmatpush.xpose.msra.mxu0 0.0
    %2220 = vmatpush.xpose.msra.mxu0 0.0
    %2221 = vmatpush.xpose.msra.mxu0 0.0
    %2222 = vmatpush.xpose.msra.mxu0 %v1543
    %2223 = vmatmul.f32.gmra.mxu0 %v2205
    %v2224 = vpop.f32.mrf.mxu0
    %v2225 = vadd.f32 0.0, %v2224
    %2226 = vdwg.mxu0
    %v2227 = vmul.f32 %v2225, 0.125
    %v2229 = vsel %vm1010, %v2137, 0
    %v2232 = vsel %vm1010, %v2138, 0
    %v2235 = vsel %vm566, %v1970, 0
    %2237 = vmatpush.msra.mxu0 0.0
    %2238 = vmatpush.msra.mxu0 0.0
    %2239 = vmatpush.msra.mxu0 0.0
    %2240 = vmatpush.msra.mxu0 0.0
    %2241 = vmatpush.msra.mxu0 0.0
    %2242 = vmatpush.msra.mxu0 0.0
    %2243 = vmatpush.msra.mxu0 0.0
    %2244 = vmatpush.msra.mxu0 0.0
    %2245 = vmatpush.msra.mxu0 0.0
    %2246 = vmatpush.msra.mxu0 0.0
    %2247 = vmatpush.msra.mxu0 0.0
    %2248 = vmatpush.msra.mxu0 0.0
    %2249 = vmatpush.msra.mxu0 0.0
    %2250 = vmatpush.msra.mxu0 0.0
    %2251 = vmatpush.msra.mxu0 0.0
    %2252 = vmatpush.msra.mxu0 %v2235
    %2253 = vmatmul.f32.gmra.mxu0 %v2229
    %v2254 = vpop.f32.mrf.mxu0
    %v2255 = vadd.f32 0.0, %v2254
    %2256 = vmatmul.f32.gmra.mxu0 %v2232
    %v2257 = vpop.f32.mrf.mxu0
    %v2258 = vadd.f32 0.0, %v2257
    %2259 = vdwg.mxu0
    %v2261 = vsel %vm1010, %v2227, 0
    %v2264 = vsel %vm566, %v1983, 0
    %2266 = vmatpush.msra.mxu0 0.0
    %2267 = vmatpush.msra.mxu0 0.0
    %2268 = vmatpush.msra.mxu0 0.0
    %2269 = vmatpush.msra.mxu0 0.0
    %2270 = vmatpush.msra.mxu0 0.0
    %2271 = vmatpush.msra.mxu0 0.0
    %2272 = vmatpush.msra.mxu0 0.0
    %2273 = vmatpush.msra.mxu0 0.0
    %2274 = vmatpush.msra.mxu0 0.0
    %2275 = vmatpush.msra.mxu0 0.0
    %2276 = vmatpush.msra.mxu0 0.0
    %2277 = vmatpush.msra.mxu0 0.0
    %2278 = vmatpush.msra.mxu0 0.0
    %2279 = vmatpush.msra.mxu0 0.0
    %2280 = vmatpush.msra.mxu0 0.0
    %2281 = vmatpush.msra.mxu0 %v2264
    %2282 = vmatmul.f32.gmra.mxu0 %v2261
    %v2283 = vpop.f32.mrf.mxu0
    %v2284 = vadd.f32 0.0, %v2283
    %2285 = vdwg.mxu0
    %v2287 = vsel %vm566, %v2284, 0
    %2289 = vmatpush.msra.mxu0 0.0
    %2290 = vmatpush.msra.mxu0 0.0
    %2291 = vmatpush.msra.mxu0 0.0
    %2292 = vmatpush.msra.mxu0 0.0
    %2293 = vmatpush.msra.mxu0 0.0
    %2294 = vmatpush.msra.mxu0 0.0
    %2295 = vmatpush.msra.mxu0 0.0
    %2296 = vmatpush.msra.mxu0 0.0
    %2297 = vmatpush.msra.mxu0 0.0
    %2298 = vmatpush.msra.mxu0 0.0
    %2299 = vmatpush.msra.mxu0 0.0
    %2300 = vmatpush.msra.mxu0 0.0
    %2301 = vmatpush.msra.mxu0 0.0
    %2302 = vmatpush.msra.mxu0 0.0
    %2303 = vmatpush.msra.mxu0 0.0
    %2304 = vmatpush.msra.mxu0 %v2287
    %2305 = vmatmul.f32.gmra.mxu0 %v2229
    %v2306 = vpop.f32.mrf.mxu0
    %v2307 = vadd.f32 0.0, %v2306
    %2308 = vmatmul.f32.gmra.mxu0 %v2232
    %v2309 = vpop.f32.mrf.mxu0
    %v2310 = vadd.f32 0.0, %v2309
    %2311 = vdwg.mxu0
    %v2312 = vld [vmem:[%s95] sm:$0xf]
    %v2313 = vld [vmem:[%s95 + $0x4] sm:$0xf]
    %v2314 = vld [vmem:[%s95 + $0x8] sm:$0xf]
    %v2315 = vld [vmem:[%s95 + $0xc] sm:$0xf]
    %v2316 = vld [vmem:[%s95 + $0x10] sm:$0xf]
    %v2317 = vld [vmem:[%s95 + $0x14] sm:$0xf]
    %v2318 = vld [vmem:[%s95 + $0x18] sm:$0xf]
    %v2319 = vld [vmem:[%s95 + $0x1c] sm:$0xf]
    %v2320 = vld [vmem:[#allocation17] sm:$0x1]
    %v2321 = vpack.c.bf16 %v2005, %v2004
    %v2323 = vperm.slane %v2320, 0
    %v2333 = vunpack.c.l.b16 %v2312
    %v2334 = vunpack.c.l.b16 %v2313
    %v2335 = vunpack.c.l.b16 %v2314
    %v2336 = vunpack.c.l.b16 %v2315
    %v2337 = vunpack.c.l.b16 %v2316
    %v2338 = vunpack.c.l.b16 %v2317
    %v2339 = vunpack.c.l.b16 %v2318
    %v2340 = vunpack.c.l.b16 %v2319
    %v2341 = vpack.c.b16 %v2334, %v2333
    %v2342 = vpack.c.b16 %v2336, %v2335
    %v2343 = vpack.c.b16 %v2338, %v2337
    %v2344 = vpack.c.b16 %v2340, %v2339
    %v2350 = vsel %vm608, %v2321, 0
    %2352 = vmatpush.bf16.msra.mxu0 0
    %2353 = vmatpush.bf16.msra.mxu0 0
    %2354 = vmatpush.bf16.msra.mxu0 0
    %2355 = vmatpush.bf16.msra.mxu0 0
    %2356 = vmatpush.bf16.msra.mxu0 %v2344
    %2357 = vmatpush.bf16.msra.mxu0 %v2343
    %2358 = vmatpush.bf16.msra.mxu0 %v2342
    %2359 = vmatpush.bf16.msra.mxu0 %v2341
    %2360 = vmatmul.bf16.gmra.mxu0 %v2350
    %v2361 = vpop.f32.mrf.mxu0
    %v2362 = vadd.f32 %v2323, %v2361
    %v2363 = vpop.f32.mrf.mxu0
    %v2364 = vadd.f32 %v2323, %v2363
    %2365 = vdwg.mxu0
    %vm2366 = vcmp.ge.f32.partialorder %v2362, 0.0
    %vm2367 = vcmp.ge.f32.partialorder %v2364, 0.0
    %v2368 = vmul.f32 %v2362, 0.01
    %v2369 = vmul.f32 %v2364, 0.01
    %v2370 = vsel %vm2366, %v2362, %v2368
    %v2371 = vsel %vm2367, %v2364, %v2369
    %v2372 = vpack.c.bf16 %v2258, %v2255
    %v2374 = vsel %vm608, %v2372, 0
    %2376 = vmatpush.bf16.msra.mxu0 0
    %2377 = vmatpush.bf16.msra.mxu0 0
    %2378 = vmatpush.bf16.msra.mxu0 0
    %2379 = vmatpush.bf16.msra.mxu0 0
    %2380 = vmatpush.bf16.msra.mxu0 %v2344
    %2381 = vmatpush.bf16.msra.mxu0 %v2343
    %2382 = vmatpush.bf16.msra.mxu0 %v2342
    %2383 = vmatpush.bf16.msra.mxu0 %v2341
    %2384 = vmatmul.bf16.gmra.mxu0 %v2374
    %v2385 = vpop.f32.mrf.mxu0
    %v2386 = vadd.f32 %v2323, %v2385
    %v2387 = vpop.f32.mrf.mxu0
    %v2388 = vadd.f32 %v2323, %v2387
    %2389 = vdwg.mxu0
    %vm2390 = vcmp.ge.f32.partialorder %v2386, 0.0
    %vm2391 = vcmp.ge.f32.partialorder %v2388, 0.0
    %v2392 = vmul.f32 %v2386, 0.01
    %v2393 = vmul.f32 %v2388, 0.01
    %v2394 = vsel %vm2390, %v2386, %v2392
    %v2395 = vsel %vm2391, %v2388, %v2393
    %v2396 = vpack.c.bf16 %v2310, %v2307
    %v2398 = vsel %vm608, %v2396, 0
    %2400 = vmatpush.bf16.msra.mxu0 0
    %2401 = vmatpush.bf16.msra.mxu0 0
    %2402 = vmatpush.bf16.msra.mxu0 0
    %2403 = vmatpush.bf16.msra.mxu0 0
    %2404 = vmatpush.bf16.msra.mxu0 %v2344
    %2405 = vmatpush.bf16.msra.mxu0 %v2343
    %2406 = vmatpush.bf16.msra.mxu0 %v2342
    %2407 = vmatpush.bf16.msra.mxu0 %v2341
    %2408 = vmatmul.bf16.gmra.mxu0 %v2398
    %v2409 = vpop.f32.mrf.mxu0
    %v2410 = vadd.f32 %v2323, %v2409
    %v2411 = vpop.f32.mrf.mxu0
    %v2412 = vadd.f32 %v2323, %v2411
    %2413 = vdwg.mxu0
    %vm2414 = vcmp.ge.f32.partialorder %v2410, 0.0
    %vm2415 = vcmp.ge.f32.partialorder %v2412, 0.0
    %v2416 = vmul.f32 %v2410, 0.01
    %v2417 = vmul.f32 %v2412, 0.01
    %v2418 = vsel %vm2414, %v2410, %v2416
    %v2419 = vsel %vm2415, %v2412, %v2417
    %v2420 = vld [vmem:[%s99] sm:$0xf]
    %v2421 = vld [vmem:[%s99 + $0x4] sm:$0xf]
    %v2422 = vld [vmem:[%s99 + $0x8] sm:$0xf]
    %v2423 = vld [vmem:[%s99 + $0xc] sm:$0xf]
    %v2424 = vpack.c.bf16 %v2371, %v2370
    %v2425 = vld [vmem:[%s101] sm:$0xf]
    %v2426 = vld [vmem:[%s101 + $0x4] sm:$0xf]
    %v2427 = vld [vmem:[%s101 + $0x8] sm:$0xf]
    %v2428 = vld [vmem:[%s101 + $0xc] sm:$0xf]
    %v2429 = vpack.c.bf16 %v2395, %v2394
    %v2434 = vunpack.c.l.b16 %v2425
    %v2435 = vunpack.c.l.b16 %v2426
    %v2436 = vunpack.c.l.b16 %v2427
    %v2437 = vunpack.c.l.b16 %v2428
    %v2438 = vpack.c.b16 %v2435, %v2434
    %v2439 = vpack.c.b16 %v2437, %v2436
    %v2443 = vsel %vm1162, %v2429, 0
    %2445 = vmatpush.bf16.msra.mxu0 0
    %2446 = vmatpush.bf16.msra.mxu0 0
    %2447 = vmatpush.bf16.msra.mxu0 0
    %2448 = vmatpush.bf16.msra.mxu0 0
    %2449 = vmatpush.bf16.msra.mxu0 0
    %2450 = vmatpush.bf16.msra.mxu0 0
    %2451 = vmatpush.bf16.msra.mxu0 %v2439
    %2452 = vmatpush.bf16.msra.mxu0 %v2438
    %2453 = vmatmul.bf16.gmra.mxu0 %v2443
    %v2454 = vpop.f32.mrf.mxu0
    %v2455 = vadd.f32 0.0, %v2454
    %v2456 = vpop.f32.mrf.mxu0
    %v2457 = vadd.f32 0.0, %v2456
    %2458 = vdwg.mxu0
    %v2463 = vunpack.c.l.b16 %v2420
    %v2464 = vunpack.c.l.b16 %v2421
    %v2465 = vunpack.c.l.b16 %v2422
    %v2466 = vunpack.c.l.b16 %v2423
    %v2467 = vpack.c.b16 %v2464, %v2463
    %v2468 = vpack.c.b16 %v2466, %v2465
    %v2472 = vsel %vm1162, %v2424, 0
    %2474 = vmatpush.bf16.msra.mxu0 0
    %2475 = vmatpush.bf16.msra.mxu0 0
    %2476 = vmatpush.bf16.msra.mxu0 0
    %2477 = vmatpush.bf16.msra.mxu0 0
    %2478 = vmatpush.bf16.msra.mxu0 0
    %2479 = vmatpush.bf16.msra.mxu0 0
    %2480 = vmatpush.bf16.msra.mxu0 %v2468
    %2481 = vmatpush.bf16.msra.mxu0 %v2467
    %2482 = vmatmul.bf16.gmra.mxu0 %v2472
    %v2483 = vpop.f32.mrf.mxu0
    %v2484 = vadd.f32 %v2455, %v2483
    %v2485 = vpop.f32.mrf.mxu0
    %v2486 = vadd.f32 %v2457, %v2485
    %2487 = vdwg.mxu0
    %v2488 = vld [vmem:[%s103] sm:$0xf]
    %v2489 = vld [vmem:[%s103 + $0x4] sm:$0xf]
    %v2490 = vld [vmem:[%s103 + $0x8] sm:$0xf]
    %v2491 = vld [vmem:[%s103 + $0xc] sm:$0xf]
    %v2492 = vpack.c.bf16 %v2419, %v2418
    %v2497 = vunpack.c.l.b16 %v2488
    %v2498 = vunpack.c.l.b16 %v2489
    %v2499 = vunpack.c.l.b16 %v2490
    %v2500 = vunpack.c.l.b16 %v2491
    %v2501 = vpack.c.b16 %v2498, %v2497
    %v2502 = vpack.c.b16 %v2500, %v2499
    %v2506 = vsel %vm1162, %v2492, 0
    %2508 = vmatpush.bf16.msra.mxu0 0
    %2509 = vmatpush.bf16.msra.mxu0 0
    %2510 = vmatpush.bf16.msra.mxu0 0
    %2511 = vmatpush.bf16.msra.mxu0 0
    %2512 = vmatpush.bf16.msra.mxu0 0
    %2513 = vmatpush.bf16.msra.mxu0 0
    %2514 = vmatpush.bf16.msra.mxu0 %v2502
    %2515 = vmatpush.bf16.msra.mxu0 %v2501
    %2516 = vmatmul.bf16.gmra.mxu0 %v2506
    %v2517 = vpop.f32.mrf.mxu0
    %v2518 = vadd.f32 0.0, %v2517
    %v2519 = vpop.f32.mrf.mxu0
    %v2520 = vadd.f32 0.0, %v2519
    %2521 = vdwg.mxu0
    %v2522 = vadd.f32 %v2484, %v2518
    %v2523 = vadd.f32 %v2486, %v2520
    %v2524 = vld [vmem:[#allocation18] sm:$0x1]
    %v2526 = vperm.slane %v2524, 0
    %v2528 = vadd.f32 %v2522, %v2526
    %v2529 = vadd.f32 %v2523, %v2526
    %vm2530 = vcmp.ge.f32.partialorder %v2528, 0.0
    %vm2531 = vcmp.ge.f32.partialorder %v2529, 0.0
    %v2532 = vmul.f32 %v2528, 0.01
    %v2533 = vmul.f32 %v2529, 0.01
    %v2534 = vsel %vm2530, %v2528, %v2532
    %v2535 = vsel %vm2531, %v2529, %v2533
    %v2536 = vld [vmem:[%s19] sm:$0xff]
    %v2537 = vld [vmem:[%s19 + $0x8] sm:$0xff]
    %v2538 = vstv %s346
    %v2539 = vmul.f32 %v2538, %v2536
    %v2540 = vmul.f32 %v2538, %v2537
    %s2541 = ssub.f32 1.0, %s346
    %v2542 = vstv %s2541
    %v2543 = vmul.f32 %v2542, %v2534
    %v2544 = vmul.f32 %v2542, %v2535
    %v2545 = vadd.f32 %v2539, %v2543
    %v2546 = vadd.f32 %v2540, %v2544
    %2547 = vst.msk [vmem:[#allocation20] sm:$0xff] %vm1162, %v2545
    %2548 = vst.msk [vmem:[#allocation20 + $0x8] sm:$0xff] %vm1162, %v2546
    // Predicated region
    $region250: #{tpu_custom_call.1} parent=1 // pred_check
      _
    $region251: #{tpu_custom_call.1} parent=1 // pred_check_branch
      %2550 = sbr.rel (0) target = $region253
    $region252: #{tpu_custom_call.1} parent=1 // pred_region
      %2552 = vsyncadd [#allocation6], 0
      %s2553 = sshll.u32 [#allocation20], 4
      %s2554 = int_to_ptr.vmem [resolvable:$true] %s2553
      %s2555 = sshll.u32 %s107, 4
      %s2556 = int_to_ptr.hbm [resolvable:$true] %s2555
      %2561 = dma.vmem_to_hbm [thread:$0]  %s2554, 256, %s2556, [#allocation6], 128, 128, 8
    $region253: #{tpu_custom_call.1} parent=1 // pred_fallthru
      _
    // Predicated region
    $region254: #{tpu_custom_call.1} parent=1 // pred_check
      _
    $region255: #{tpu_custom_call.1} parent=1 // pred_check_branch
      %2563 = sbr.rel (0) target = $region257
    $region256: #{tpu_custom_call.1} parent=1 // pred_region
      %2565 = dma.done [#allocation6], 256
    $region257: #{tpu_custom_call.1} parent=1 // pred_fallthru
      _
    %2566 = vsyncpa [#allocation5], 1
    %2567 = vsyncpa [#allocation10], 1
    %2568 = vsyncpa [#allocation13], 1
    %2569 = vsyncpa [#allocation16], 1
    %2570 = vsyncpa [#allocation19], 1
    %2571 = vsyncpa [#allocation6], 1
    %2572 = vsyncpa [#allocation7], 1

</llo_original>
